<compile_context>
chip_gen: v7x
topology: tpu7x:2x2x1
jax: 0.10.0
libtpu: 0.0.40
codegen_flags: <defaults>
</compile_context>

<pallas_src>
import functools

import jax
import jax.numpy as jnp
from jax import lax
from jax.experimental import pallas as pl
from jax.experimental.pallas import tpu as pltpu


C0 = 3       # real input channels
C0P = 8      # layer-1 input channels padded 3 -> 8 (sublane alignment)
CH = 32      # hidden channels
COUT = 4     # final output channels (R:3 + L:1)
# Tap order t = (dy+1)*3 + (dx+1) == kh*3 + kw  (matches the weight reshape).
TAPS = tuple((dy, dx) for dy in (-1, 0, 1) for dx in (-1, 0, 1))


def _decom_fused_kernel(x_ref, w1_ref, b1_ref, w2_ref, b2_ref, w3_ref, b3_ref,
                        w4_ref, b4_ref, o_ref, xcol1_ref, xcol2_ref, act_ref,
                        *, H, W):
    """One image per grid step: 4 fused conv+activation stages, all in VMEM."""
    HW = H * W

    # Column-validity masks: horizontal taps leak across row boundaries in the
    # flattened HW axis; vertical taps are handled by the zero-filled shift.
    col = lax.broadcasted_iota(jnp.int32, (1, HW), 1) % W
    col_mask = {-1: col >= 1, 0: None, 1: col <= (W - 2)}

    def shift_hw(x, s):
        # y[:, i] = x[:, i + s] if 0 <= i + s < HW else 0   (s is static)
        if s == 0:
            return x
        z = jnp.zeros((x.shape[0], abs(s)), x.dtype)
        if s > 0:
            return jnp.concatenate([x[:, s:], z], axis=1)
        return jnp.concatenate([z, x[:, :s]], axis=1)

    def build_xcol(src, xcol_ref, cin):
        # src: (cin, HW) f32.  Writes xcol[t*cin:(t+1)*cin, :] = tap_t(src).
        for t, (dy, dx) in enumerate(TAPS):
            tap = shift_hw(src, dy * W + dx)
            m = col_mask[dx]
            if m is not None:
                tap = jnp.where(m, tap, 0.0)
            xcol_ref[pl.ds(t * cin, cin), :] = tap.astype(jnp.bfloat16)

    def conv(xcol_ref, w_ref, b_ref, act):
        # (Cout, 9*Cin) @ (9*Cin, HW) on the MXU (bf16 in, f32 accumulate).
        y = jnp.dot(w_ref[...], xcol_ref[...],
                    preferred_element_type=jnp.float32)
        y = y + b_ref[...]                      # (Cout, 1) broadcast over HW
        if act == "leaky_relu":
            return jnp.where(y >= 0, y, 0.2 * y)
        return jnp.maximum(y, 0.0)

    # Layer 1: Cin padded to 8, K = 72.
    build_xcol(x_ref[0].astype(jnp.float32), xcol1_ref, C0P)
    act_ref[...] = conv(xcol1_ref, w1_ref, b1_ref, "leaky_relu")

    # Layers 2 and 3: K = 288; intermediates never leave VMEM.
    for w_ref, b_ref in ((w2_ref, b2_ref), (w3_ref, b3_ref)):
        build_xcol(act_ref[...], xcol2_ref, CH)
        act_ref[...] = conv(xcol2_ref, w_ref, b_ref, "leaky_relu")

    # Layer 4: Cout = 4, ReLU.  Output block (4, HW): HW lane-dense.
    build_xcol(act_ref[...], xcol2_ref, CH)
    o_ref[0] = conv(xcol2_ref, w4_ref, b4_ref, "relu").astype(o_ref.dtype)


def _im2col_weight(w_oihw, cin_pad=None):
    """(Cout, Cin, 3, 3) -> (Cout, 9*Cin'), column = (kh*3+kw)*Cin' + ci."""
    cout, cin, _, _ = w_oihw.shape
    if cin_pad is not None and cin_pad > cin:
        w_oihw = jnp.pad(w_oihw, ((0, 0), (0, cin_pad - cin), (0, 0), (0, 0)))
        cin = cin_pad
    return jnp.transpose(w_oihw, (0, 2, 3, 1)).reshape(cout, 9 * cin)


def inference_low_forward(params, x_nchw):
    """Equivalent of Inference_low.forward: returns (R, L), NCHW float32."""
    N, C, H, W = x_nchw.shape
    HW = H * W
    assert C == C0 and HW % 128 == 0

    # bf16 HBM storage / DMA for the image and the weights (f32 accumulate).
    x = jnp.pad(x_nchw, ((0, 0), (0, C0P - C), (0, 0), (0, 0)))
    x = x.reshape(N, C0P, HW).astype(jnp.bfloat16)

    (w1, b1), (w2, b2), (w3, b3), (w4, b4) = params
    w1m = _im2col_weight(w1, cin_pad=C0P).astype(jnp.bfloat16)   # (32, 72)
    w2m = _im2col_weight(w2).astype(jnp.bfloat16)                # (32, 288)
    w3m = _im2col_weight(w3).astype(jnp.bfloat16)                # (32, 288)
    w4m = _im2col_weight(w4).astype(jnp.bfloat16)                # (4, 288)
    b1c, b2c, b3c, b4c = (b.reshape(-1, 1).astype(jnp.float32)
                          for b in (b1, b2, b3, b4))

    def resident(a):  # full-array block, constant index -> stays in VMEM
        return pl.BlockSpec(a.shape, lambda n: (0,) * a.ndim)

    out = pl.pallas_call(
        functools.partial(_decom_fused_kernel, H=H, W=W),
        out_shape=jax.ShapeDtypeStruct((N, COUT, HW), jnp.float32),
        grid=(N,),
        in_specs=[
            pl.BlockSpec((1, C0P, HW), lambda n: (n, 0, 0)),
            resident(w1m), resident(b1c),
            resident(w2m), resident(b2c),
            resident(w3m), resident(b3c),
            resident(w4m), resident(b4c),
        ],
        out_specs=pl.BlockSpec((1, COUT, HW), lambda n: (n, 0, 0)),
        scratch_shapes=[
            pltpu.VMEM((9 * C0P, HW), jnp.bfloat16),   # layer-1 im2col
            pltpu.VMEM((9 * CH, HW), jnp.bfloat16),    # layers 2-4 im2col
            pltpu.VMEM((CH, HW), jnp.float32),         # hidden activation
        ],
        compiler_params=pltpu.CompilerParams(
            dimension_semantics=("parallel",)),
    )(x, w1m, b1c, w2m, b2c, w3m, b3c, w4m, b4c)

    out = out.reshape(N, COUT, H, W)
    return out[:, 0:3, :, :], out[:, 3:4, :, :]


def init_decom_params(key):
    """Deterministic params matching the Decom module's conv shapes (OIHW)."""
    specs = [(3, 32), (32, 32), (32, 32), (32, 4)]
    params = []
    for cin, cout in specs:
        key, kw, kb = jax.random.split(key, 3)
        bound = float(1.0 / (cin * 9) ** 0.5)
        w = jax.random.uniform(kw, (cout, cin, 3, 3), jnp.float32, -bound, bound)
        b = jax.random.uniform(kb, (cout,), jnp.float32, -bound, bound)
        params.append((w, b))
    return params


def _reference_forward(params, x_nchw):
    """Pure-JAX f32 reference (lax conv) for the correctness check."""
    x = x_nchw
    acts = ["leaky_relu", "leaky_relu", "leaky_relu", "relu"]
    for (w, b), a in zip(params, acts):
        x = lax.conv_general_dilated(
            x, w, (1, 1), ((1, 1), (1, 1)),
            dimension_numbers=("NCHW", "OIHW", "NCHW"))
        x = x + b[None, :, None, None]
        x = jnp.where(x >= 0, x, 0.2 * x) if a == "leaky_relu" else jnp.maximum(x, 0.0)
    return x[:, 0:3, :, :], x[:, 3:4, :, :]


if __name__ == "__main__":
    key = jax.random.PRNGKey(0)
    k_params, k_x = jax.random.split(key)

    params = init_decom_params(k_params)
    x = jax.random.normal(k_x, (2, 3, 16, 16), jnp.float32)

    # Use bf16-representable weights / inputs for both kernel and reference so
    # the only kernel-vs-reference delta is the bf16 intermediate rounding.
    q = lambda a: a.astype(jnp.bfloat16).astype(jnp.float32)
    params_q = [(q(w), q(b)) for w, b in params]
    x_q = q(x)

    fwd = jax.jit(inference_low_forward)
    R, L = fwd(params_q, x_q)
    R, L = jax.block_until_ready(R), jax.block_until_ready(L)

    R_ref, L_ref = _reference_forward(params_q, x_q)
    assert R.shape == (2, 3, 16, 16) and L.shape == (2, 1, 16, 16)
    assert jnp.allclose(R, R_ref, atol=3e-2, rtol=3e-2), \
        float(jnp.max(jnp.abs(R - R_ref)))
    assert jnp.allclose(L, L_ref, atol=3e-2, rtol=3e-2), \
        float(jnp.max(jnp.abs(L - L_ref)))

    print("KERNEL_OK")
</pallas_src>

<mosaic_0001>
module attributes {stable_mosaic.version = 11 : i64} {
  func.func @_decom_fused_kernel(%arg0: i32, %arg1: memref<1x8x256xbf16, #tpu.memory_space<vmem>>, %arg2: memref<32x72xbf16, #tpu.memory_space<vmem>>, %arg3: memref<32x1xf32, #tpu.memory_space<vmem>>, %arg4: memref<32x288xbf16, #tpu.memory_space<vmem>>, %arg5: memref<32x1xf32, #tpu.memory_space<vmem>>, %arg6: memref<32x288xbf16, #tpu.memory_space<vmem>>, %arg7: memref<32x1xf32, #tpu.memory_space<vmem>>, %arg8: memref<4x288xbf16, #tpu.memory_space<vmem>>, %arg9: memref<4x1xf32, #tpu.memory_space<vmem>>, %arg10: memref<1x4x256xf32, #tpu.memory_space<vmem>>, %arg11: memref<72x256xbf16, #tpu.memory_space<vmem>>, %arg12: memref<288x256xbf16, #tpu.memory_space<vmem>>, %arg13: memref<32x256xf32, #tpu.memory_space<vmem>>) attributes {dimension_semantics = [#tpu.dimension_semantics<parallel>], iteration_bounds = array<i64: 2>, scalar_prefetch = 0 : i64, scratch_operands = 3 : i64, tpu.core_type = #tpu.core_type<tc>, window_params = [{transform_indices = @transform_0, window_bounds = array<i64: 1, 8, 256>}, {pipeline_mode = #tpu.pipeline_mode<synchronous>, transform_indices = @transform_1, window_bounds = array<i64: 32, 72>}, {pipeline_mode = #tpu.pipeline_mode<synchronous>, transform_indices = @transform_2, window_bounds = array<i64: 32, 1>}, {pipeline_mode = #tpu.pipeline_mode<synchronous>, transform_indices = @transform_3, window_bounds = array<i64: 32, 288>}, {pipeline_mode = #tpu.pipeline_mode<synchronous>, transform_indices = @transform_4, window_bounds = array<i64: 32, 1>}, {pipeline_mode = #tpu.pipeline_mode<synchronous>, transform_indices = @transform_5, window_bounds = array<i64: 32, 288>}, {pipeline_mode = #tpu.pipeline_mode<synchronous>, transform_indices = @transform_6, window_bounds = array<i64: 32, 1>}, {pipeline_mode = #tpu.pipeline_mode<synchronous>, transform_indices = @transform_7, window_bounds = array<i64: 4, 288>}, {pipeline_mode = #tpu.pipeline_mode<synchronous>, transform_indices = @transform_8, window_bounds = array<i64: 4, 1>}, {transform_indices = @transform_9, window_bounds = array<i64: 1, 4, 256>}]} {
    %0 = tpu.iota {dimensions = array<i32: 1>} : vector<1x256xi32>
    %c16_i32 = arith.constant 16 : i32
    %c0_i32 = arith.constant 0 : i32
    %1 = arith.cmpi eq, %c16_i32, %c0_i32 : i32
    %c1_i32 = arith.constant 1 : i32
    %2 = arith.select %1, %c1_i32, %c16_i32 : i32
    %3 = vector.broadcast %2 : i32 to vector<1x256xi32>
    %4 = arith.remsi %0, %3 : vector<1x256xi32>
    %c0_i32_0 = arith.constant 0 : i32
    %5 = vector.broadcast %c0_i32_0 : i32 to vector<1x256xi32>
    %6 = arith.cmpi ne, %4, %5 : vector<1x256xi32>
    %c0_i32_1 = arith.constant 0 : i32
    %7 = vector.broadcast %c0_i32_1 : i32 to vector<1x256xi32>
    %8 = arith.cmpi slt, %4, %7 : vector<1x256xi32>
    %c0_i32_2 = arith.constant 0 : i32
    %9 = arith.cmpi slt, %2, %c0_i32_2 : i32
    %10 = vector.broadcast %9 : i1 to vector<1x256xi1>
    %11 = vector.broadcast %10 : vector<1x256xi1> to vector<1x256xi1>
    %12 = arith.xori %8, %11 : vector<1x256xi1>
    %13 = arith.andi %12, %6 : vector<1x256xi1>
    %14 = vector.broadcast %2 : i32 to vector<1x256xi32>
    %15 = arith.addi %4, %14 : vector<1x256xi32>
    %16 = arith.select %13, %15, %4 : vector<1x256xi1>, vector<1x256xi32>
    %c1_i32_3 = arith.constant 1 : i32
    %17 = vector.broadcast %c1_i32_3 : i32 to vector<1x256xi32>
    %18 = arith.cmpi sge, %16, %17 : vector<1x256xi32>
    %c14_i32 = arith.constant 14 : i32
    %19 = vector.broadcast %c14_i32 : i32 to vector<1x256xi32>
    %20 = arith.cmpi sle, %16, %19 : vector<1x256xi32>
    %c0 = arith.constant 0 : index
    %c0_4 = arith.constant 0 : index
    %c0_5 = arith.constant 0 : index
    %21 = vector.load %arg1[%c0, %c0_4, %c0_5] : memref<1x8x256xbf16, #tpu.memory_space<vmem>>, vector<1x8x256xbf16>
    %22 = vector.shape_cast %21 : vector<1x8x256xbf16> to vector<8x256xbf16>
    %23 = arith.extf %22 : vector<8x256xbf16> to vector<8x256xf32>
    %cst = arith.constant 0.000000e+00 : f32
    %24 = vector.broadcast %cst : f32 to vector<8x17xf32>
    %25 = vector.extract_strided_slice %23 {offsets = [0, 0], sizes = [8, 239], strides = [1, 1]} : vector<8x256xf32> to vector<8x239xf32>
    %26 = tpu.concatenate %24, %25 in 1 : vector<8x17xf32>, vector<8x239xf32> -> vector<8x256xf32>
    %cst_6 = arith.constant 0.000000e+00 : f32
    %27 = vector.shape_cast %18 : vector<1x256xi1> to vector<1x256xi1>
    %28 = vector.broadcast %27 : vector<1x256xi1> to vector<8x256xi1>
    %29 = vector.broadcast %cst_6 : f32 to vector<8x256xf32>
    %30 = arith.select %28, %26, %29 : vector<8x256xi1>, vector<8x256xf32>
    %31 = arith.truncf %30 : vector<8x256xf32> to vector<8x256xbf16>
    %c0_7 = arith.constant 0 : index
    %c0_8 = arith.constant 0 : index
    %32 = vector.load %arg11[%c0_7, %c0_8] : memref<72x256xbf16, #tpu.memory_space<vmem>>, vector<8x256xbf16>
    tpu.vector_store %arg11[%c0_7, %c0_8], %31 {strides = array<i32>} : memref<72x256xbf16, #tpu.memory_space<vmem>>, vector<8x256xbf16>,
    %cst_9 = arith.constant 0.000000e+00 : f32
    %33 = vector.broadcast %cst_9 : f32 to vector<8x16xf32>
    %34 = vector.extract_strided_slice %23 {offsets = [0, 0], sizes = [8, 240], strides = [1, 1]} : vector<8x256xf32> to vector<8x240xf32>
    %35 = tpu.concatenate %33, %34 in 1 : vector<8x16xf32>, vector<8x240xf32> -> vector<8x256xf32>
    %36 = arith.truncf %35 : vector<8x256xf32> to vector<8x256xbf16>
    %c8 = arith.constant 8 : index
    %c0_10 = arith.constant 0 : index
    %37 = vector.load %arg11[%c8, %c0_10] : memref<72x256xbf16, #tpu.memory_space<vmem>>, vector<8x256xbf16>
    tpu.vector_store %arg11[%c8, %c0_10], %36 {strides = array<i32>} : memref<72x256xbf16, #tpu.memory_space<vmem>>, vector<8x256xbf16>,
    %cst_11 = arith.constant 0.000000e+00 : f32
    %38 = vector.broadcast %cst_11 : f32 to vector<8x15xf32>
    %39 = vector.extract_strided_slice %23 {offsets = [0, 0], sizes = [8, 241], strides = [1, 1]} : vector<8x256xf32> to vector<8x241xf32>
    %40 = tpu.concatenate %38, %39 in 1 : vector<8x15xf32>, vector<8x241xf32> -> vector<8x256xf32>
    %cst_12 = arith.constant 0.000000e+00 : f32
    %41 = vector.shape_cast %20 : vector<1x256xi1> to vector<1x256xi1>
    %42 = vector.broadcast %41 : vector<1x256xi1> to vector<8x256xi1>
    %43 = vector.broadcast %cst_12 : f32 to vector<8x256xf32>
    %44 = arith.select %42, %40, %43 : vector<8x256xi1>, vector<8x256xf32>
    %45 = arith.truncf %44 : vector<8x256xf32> to vector<8x256xbf16>
    %c16 = arith.constant 16 : index
    %c0_13 = arith.constant 0 : index
    %46 = vector.load %arg11[%c16, %c0_13] : memref<72x256xbf16, #tpu.memory_space<vmem>>, vector<8x256xbf16>
    tpu.vector_store %arg11[%c16, %c0_13], %45 {strides = array<i32>} : memref<72x256xbf16, #tpu.memory_space<vmem>>, vector<8x256xbf16>,
    %cst_14 = arith.constant 0.000000e+00 : f32
    %47 = vector.broadcast %cst_14 : f32 to vector<8x1xf32>
    %48 = vector.extract_strided_slice %23 {offsets = [0, 0], sizes = [8, 255], strides = [1, 1]} : vector<8x256xf32> to vector<8x255xf32>
    %49 = tpu.concatenate %47, %48 in 1 : vector<8x1xf32>, vector<8x255xf32> -> vector<8x256xf32>
    %cst_15 = arith.constant 0.000000e+00 : f32
    %50 = vector.shape_cast %18 : vector<1x256xi1> to vector<1x256xi1>
    %51 = vector.broadcast %50 : vector<1x256xi1> to vector<8x256xi1>
    %52 = vector.broadcast %cst_15 : f32 to vector<8x256xf32>
    %53 = arith.select %51, %49, %52 : vector<8x256xi1>, vector<8x256xf32>
    %54 = arith.truncf %53 : vector<8x256xf32> to vector<8x256xbf16>
    %c24 = arith.constant 24 : index
    %c0_16 = arith.constant 0 : index
    %55 = vector.load %arg11[%c24, %c0_16] : memref<72x256xbf16, #tpu.memory_space<vmem>>, vector<8x256xbf16>
    tpu.vector_store %arg11[%c24, %c0_16], %54 {strides = array<i32>} : memref<72x256xbf16, #tpu.memory_space<vmem>>, vector<8x256xbf16>,
    %56 = arith.truncf %23 : vector<8x256xf32> to vector<8x256xbf16>
    %c32 = arith.constant 32 : index
    %c0_17 = arith.constant 0 : index
    %57 = vector.load %arg11[%c32, %c0_17] : memref<72x256xbf16, #tpu.memory_space<vmem>>, vector<8x256xbf16>
    tpu.vector_store %arg11[%c32, %c0_17], %56 {strides = array<i32>} : memref<72x256xbf16, #tpu.memory_space<vmem>>, vector<8x256xbf16>,
    %cst_18 = arith.constant 0.000000e+00 : f32
    %58 = vector.broadcast %cst_18 : f32 to vector<8x1xf32>
    %59 = vector.extract_strided_slice %23 {offsets = [0, 1], sizes = [8, 255], strides = [1, 1]} : vector<8x256xf32> to vector<8x255xf32>
    %60 = tpu.concatenate %59, %58 in 1 : vector<8x255xf32>, vector<8x1xf32> -> vector<8x256xf32>
    %cst_19 = arith.constant 0.000000e+00 : f32
    %61 = vector.shape_cast %20 : vector<1x256xi1> to vector<1x256xi1>
    %62 = vector.broadcast %61 : vector<1x256xi1> to vector<8x256xi1>
    %63 = vector.broadcast %cst_19 : f32 to vector<8x256xf32>
    %64 = arith.select %62, %60, %63 : vector<8x256xi1>, vector<8x256xf32>
    %65 = arith.truncf %64 : vector<8x256xf32> to vector<8x256xbf16>
    %c40 = arith.constant 40 : index
    %c0_20 = arith.constant 0 : index
    %66 = vector.load %arg11[%c40, %c0_20] : memref<72x256xbf16, #tpu.memory_space<vmem>>, vector<8x256xbf16>
    tpu.vector_store %arg11[%c40, %c0_20], %65 {strides = array<i32>} : memref<72x256xbf16, #tpu.memory_space<vmem>>, vector<8x256xbf16>,
    %cst_21 = arith.constant 0.000000e+00 : f32
    %67 = vector.broadcast %cst_21 : f32 to vector<8x15xf32>
    %68 = vector.extract_strided_slice %23 {offsets = [0, 15], sizes = [8, 241], strides = [1, 1]} : vector<8x256xf32> to vector<8x241xf32>
    %69 = tpu.concatenate %68, %67 in 1 : vector<8x241xf32>, vector<8x15xf32> -> vector<8x256xf32>
    %cst_22 = arith.constant 0.000000e+00 : f32
    %70 = vector.shape_cast %18 : vector<1x256xi1> to vector<1x256xi1>
    %71 = vector.broadcast %70 : vector<1x256xi1> to vector<8x256xi1>
    %72 = vector.broadcast %cst_22 : f32 to vector<8x256xf32>
    %73 = arith.select %71, %69, %72 : vector<8x256xi1>, vector<8x256xf32>
    %74 = arith.truncf %73 : vector<8x256xf32> to vector<8x256xbf16>
    %c48 = arith.constant 48 : index
    %c0_23 = arith.constant 0 : index
    %75 = vector.load %arg11[%c48, %c0_23] : memref<72x256xbf16, #tpu.memory_space<vmem>>, vector<8x256xbf16>
    tpu.vector_store %arg11[%c48, %c0_23], %74 {strides = array<i32>} : memref<72x256xbf16, #tpu.memory_space<vmem>>, vector<8x256xbf16>,
    %cst_24 = arith.constant 0.000000e+00 : f32
    %76 = vector.broadcast %cst_24 : f32 to vector<8x16xf32>
    %77 = vector.extract_strided_slice %23 {offsets = [0, 16], sizes = [8, 240], strides = [1, 1]} : vector<8x256xf32> to vector<8x240xf32>
    %78 = tpu.concatenate %77, %76 in 1 : vector<8x240xf32>, vector<8x16xf32> -> vector<8x256xf32>
    %79 = arith.truncf %78 : vector<8x256xf32> to vector<8x256xbf16>
    %c56 = arith.constant 56 : index
    %c0_25 = arith.constant 0 : index
    %80 = vector.load %arg11[%c56, %c0_25] : memref<72x256xbf16, #tpu.memory_space<vmem>>, vector<8x256xbf16>
    tpu.vector_store %arg11[%c56, %c0_25], %79 {strides = array<i32>} : memref<72x256xbf16, #tpu.memory_space<vmem>>, vector<8x256xbf16>,
    %cst_26 = arith.constant 0.000000e+00 : f32
    %81 = vector.broadcast %cst_26 : f32 to vector<8x17xf32>
    %82 = vector.extract_strided_slice %23 {offsets = [0, 17], sizes = [8, 239], strides = [1, 1]} : vector<8x256xf32> to vector<8x239xf32>
    %83 = tpu.concatenate %82, %81 in 1 : vector<8x239xf32>, vector<8x17xf32> -> vector<8x256xf32>
    %cst_27 = arith.constant 0.000000e+00 : f32
    %84 = vector.shape_cast %20 : vector<1x256xi1> to vector<1x256xi1>
    %85 = vector.broadcast %84 : vector<1x256xi1> to vector<8x256xi1>
    %86 = vector.broadcast %cst_27 : f32 to vector<8x256xf32>
    %87 = arith.select %85, %83, %86 : vector<8x256xi1>, vector<8x256xf32>
    %88 = arith.truncf %87 : vector<8x256xf32> to vector<8x256xbf16>
    %c64 = arith.constant 64 : index
    %c0_28 = arith.constant 0 : index
    %89 = vector.load %arg11[%c64, %c0_28] : memref<72x256xbf16, #tpu.memory_space<vmem>>, vector<8x256xbf16>
    tpu.vector_store %arg11[%c64, %c0_28], %88 {strides = array<i32>} : memref<72x256xbf16, #tpu.memory_space<vmem>>, vector<8x256xbf16>,
    %c0_29 = arith.constant 0 : index
    %c0_30 = arith.constant 0 : index
    %90 = vector.load %arg2[%c0_29, %c0_30] : memref<32x72xbf16, #tpu.memory_space<vmem>>, vector<32x72xbf16>
    %c0_31 = arith.constant 0 : index
    %c0_32 = arith.constant 0 : index
    %91 = vector.load %arg11[%c0_31, %c0_32] : memref<72x256xbf16, #tpu.memory_space<vmem>>, vector<72x256xbf16>
    %cst_33 = arith.constant dense<0.000000e+00> : vector<32x256xf32>
    %92 = tpu.matmul %90, %91, %cst_33 {dimension_numbers = #tpu.dot_dimension_numbers<[1], [0], [0], [1], [0, 0, 1, 1], [], []>} : vector<32x72xbf16>, vector<72x256xbf16>, vector<32x256xf32> -> vector<32x256xf32>
    %c0_34 = arith.constant 0 : index
    %c0_35 = arith.constant 0 : index
    %93 = vector.load %arg3[%c0_34, %c0_35] : memref<32x1xf32, #tpu.memory_space<vmem>>, vector<32x1xf32>
    %94 = vector.broadcast %93 : vector<32x1xf32> to vector<32x256xf32>
    %95 = arith.addf %92, %94 : vector<32x256xf32>
    %cst_36 = arith.constant 0.000000e+00 : f32
    %96 = vector.broadcast %cst_36 : f32 to vector<32x256xf32>
    %97 = arith.cmpf oge, %95, %96 : vector<32x256xf32>
    %cst_37 = arith.constant 2.000000e-01 : f32
    %98 = vector.broadcast %cst_37 : f32 to vector<32x256xf32>
    %99 = arith.mulf %98, %95 : vector<32x256xf32>
    %100 = arith.select %97, %95, %99 : vector<32x256xi1>, vector<32x256xf32>
    %c0_38 = arith.constant 0 : index
    %c0_39 = arith.constant 0 : index
    %101 = vector.load %arg13[%c0_38, %c0_39] : memref<32x256xf32, #tpu.memory_space<vmem>>, vector<32x256xf32>
    tpu.vector_store %arg13[%c0_38, %c0_39], %100 {strides = array<i32>} : memref<32x256xf32, #tpu.memory_space<vmem>>, vector<32x256xf32>,
    %c0_40 = arith.constant 0 : index
    %c0_41 = arith.constant 0 : index
    %102 = vector.load %arg13[%c0_40, %c0_41] : memref<32x256xf32, #tpu.memory_space<vmem>>, vector<32x256xf32>
    %cst_42 = arith.constant 0.000000e+00 : f32
    %103 = vector.broadcast %cst_42 : f32 to vector<32x17xf32>
    %104 = vector.extract_strided_slice %102 {offsets = [0, 0], sizes = [32, 239], strides = [1, 1]} : vector<32x256xf32> to vector<32x239xf32>
    %105 = tpu.concatenate %103, %104 in 1 : vector<32x17xf32>, vector<32x239xf32> -> vector<32x256xf32>
    %cst_43 = arith.constant 0.000000e+00 : f32
    %106 = vector.shape_cast %18 : vector<1x256xi1> to vector<1x256xi1>
    %107 = vector.broadcast %106 : vector<1x256xi1> to vector<32x256xi1>
    %108 = vector.broadcast %cst_43 : f32 to vector<32x256xf32>
    %109 = arith.select %107, %105, %108 : vector<32x256xi1>, vector<32x256xf32>
    %110 = arith.truncf %109 : vector<32x256xf32> to vector<32x256xbf16>
    %c0_44 = arith.constant 0 : index
    %c0_45 = arith.constant 0 : index
    %111 = vector.load %arg12[%c0_44, %c0_45] : memref<288x256xbf16, #tpu.memory_space<vmem>>, vector<32x256xbf16>
    tpu.vector_store %arg12[%c0_44, %c0_45], %110 {strides = array<i32>} : memref<288x256xbf16, #tpu.memory_space<vmem>>, vector<32x256xbf16>,
    %cst_46 = arith.constant 0.000000e+00 : f32
    %112 = vector.broadcast %cst_46 : f32 to vector<32x16xf32>
    %113 = vector.extract_strided_slice %102 {offsets = [0, 0], sizes = [32, 240], strides = [1, 1]} : vector<32x256xf32> to vector<32x240xf32>
    %114 = tpu.concatenate %112, %113 in 1 : vector<32x16xf32>, vector<32x240xf32> -> vector<32x256xf32>
    %115 = arith.truncf %114 : vector<32x256xf32> to vector<32x256xbf16>
    %c32_47 = arith.constant 32 : index
    %c0_48 = arith.constant 0 : index
    %116 = vector.load %arg12[%c32_47, %c0_48] : memref<288x256xbf16, #tpu.memory_space<vmem>>, vector<32x256xbf16>
    tpu.vector_store %arg12[%c32_47, %c0_48], %115 {strides = array<i32>} : memref<288x256xbf16, #tpu.memory_space<vmem>>, vector<32x256xbf16>,
    %cst_49 = arith.constant 0.000000e+00 : f32
    %117 = vector.broadcast %cst_49 : f32 to vector<32x15xf32>
    %118 = vector.extract_strided_slice %102 {offsets = [0, 0], sizes = [32, 241], strides = [1, 1]} : vector<32x256xf32> to vector<32x241xf32>
    %119 = tpu.concatenate %117, %118 in 1 : vector<32x15xf32>, vector<32x241xf32> -> vector<32x256xf32>
    %cst_50 = arith.constant 0.000000e+00 : f32
    %120 = vector.shape_cast %20 : vector<1x256xi1> to vector<1x256xi1>
    %121 = vector.broadcast %120 : vector<1x256xi1> to vector<32x256xi1>
    %122 = vector.broadcast %cst_50 : f32 to vector<32x256xf32>
    %123 = arith.select %121, %119, %122 : vector<32x256xi1>, vector<32x256xf32>
    %124 = arith.truncf %123 : vector<32x256xf32> to vector<32x256xbf16>
    %c64_51 = arith.constant 64 : index
    %c0_52 = arith.constant 0 : index
    %125 = vector.load %arg12[%c64_51, %c0_52] : memref<288x256xbf16, #tpu.memory_space<vmem>>, vector<32x256xbf16>
    tpu.vector_store %arg12[%c64_51, %c0_52], %124 {strides = array<i32>} : memref<288x256xbf16, #tpu.memory_space<vmem>>, vector<32x256xbf16>,
    %cst_53 = arith.constant 0.000000e+00 : f32
    %126 = vector.broadcast %cst_53 : f32 to vector<32x1xf32>
    %127 = vector.extract_strided_slice %102 {offsets = [0, 0], sizes = [32, 255], strides = [1, 1]} : vector<32x256xf32> to vector<32x255xf32>
    %128 = tpu.concatenate %126, %127 in 1 : vector<32x1xf32>, vector<32x255xf32> -> vector<32x256xf32>
    %cst_54 = arith.constant 0.000000e+00 : f32
    %129 = vector.shape_cast %18 : vector<1x256xi1> to vector<1x256xi1>
    %130 = vector.broadcast %129 : vector<1x256xi1> to vector<32x256xi1>
    %131 = vector.broadcast %cst_54 : f32 to vector<32x256xf32>
    %132 = arith.select %130, %128, %131 : vector<32x256xi1>, vector<32x256xf32>
    %133 = arith.truncf %132 : vector<32x256xf32> to vector<32x256xbf16>
    %c96 = arith.constant 96 : index
    %c0_55 = arith.constant 0 : index
    %134 = vector.load %arg12[%c96, %c0_55] : memref<288x256xbf16, #tpu.memory_space<vmem>>, vector<32x256xbf16>
    tpu.vector_store %arg12[%c96, %c0_55], %133 {strides = array<i32>} : memref<288x256xbf16, #tpu.memory_space<vmem>>, vector<32x256xbf16>,
    %135 = arith.truncf %102 : vector<32x256xf32> to vector<32x256xbf16>
    %c128 = arith.constant 128 : index
    %c0_56 = arith.constant 0 : index
    %136 = vector.load %arg12[%c128, %c0_56] : memref<288x256xbf16, #tpu.memory_space<vmem>>, vector<32x256xbf16>
    tpu.vector_store %arg12[%c128, %c0_56], %135 {strides = array<i32>} : memref<288x256xbf16, #tpu.memory_space<vmem>>, vector<32x256xbf16>,
    %cst_57 = arith.constant 0.000000e+00 : f32
    %137 = vector.broadcast %cst_57 : f32 to vector<32x1xf32>
    %138 = vector.extract_strided_slice %102 {offsets = [0, 1], sizes = [32, 255], strides = [1, 1]} : vector<32x256xf32> to vector<32x255xf32>
    %139 = tpu.concatenate %138, %137 in 1 : vector<32x255xf32>, vector<32x1xf32> -> vector<32x256xf32>
    %cst_58 = arith.constant 0.000000e+00 : f32
    %140 = vector.shape_cast %20 : vector<1x256xi1> to vector<1x256xi1>
    %141 = vector.broadcast %140 : vector<1x256xi1> to vector<32x256xi1>
    %142 = vector.broadcast %cst_58 : f32 to vector<32x256xf32>
    %143 = arith.select %141, %139, %142 : vector<32x256xi1>, vector<32x256xf32>
    %144 = arith.truncf %143 : vector<32x256xf32> to vector<32x256xbf16>
    %c160 = arith.constant 160 : index
    %c0_59 = arith.constant 0 : index
    %145 = vector.load %arg12[%c160, %c0_59] : memref<288x256xbf16, #tpu.memory_space<vmem>>, vector<32x256xbf16>
    tpu.vector_store %arg12[%c160, %c0_59], %144 {strides = array<i32>} : memref<288x256xbf16, #tpu.memory_space<vmem>>, vector<32x256xbf16>,
    %cst_60 = arith.constant 0.000000e+00 : f32
    %146 = vector.broadcast %cst_60 : f32 to vector<32x15xf32>
    %147 = vector.extract_strided_slice %102 {offsets = [0, 15], sizes = [32, 241], strides = [1, 1]} : vector<32x256xf32> to vector<32x241xf32>
    %148 = tpu.concatenate %147, %146 in 1 : vector<32x241xf32>, vector<32x15xf32> -> vector<32x256xf32>
    %cst_61 = arith.constant 0.000000e+00 : f32
    %149 = vector.shape_cast %18 : vector<1x256xi1> to vector<1x256xi1>
    %150 = vector.broadcast %149 : vector<1x256xi1> to vector<32x256xi1>
    %151 = vector.broadcast %cst_61 : f32 to vector<32x256xf32>
    %152 = arith.select %150, %148, %151 : vector<32x256xi1>, vector<32x256xf32>
    %153 = arith.truncf %152 : vector<32x256xf32> to vector<32x256xbf16>
    %c192 = arith.constant 192 : index
    %c0_62 = arith.constant 0 : index
    %154 = vector.load %arg12[%c192, %c0_62] : memref<288x256xbf16, #tpu.memory_space<vmem>>, vector<32x256xbf16>
    tpu.vector_store %arg12[%c192, %c0_62], %153 {strides = array<i32>} : memref<288x256xbf16, #tpu.memory_space<vmem>>, vector<32x256xbf16>,
    %cst_63 = arith.constant 0.000000e+00 : f32
    %155 = vector.broadcast %cst_63 : f32 to vector<32x16xf32>
    %156 = vector.extract_strided_slice %102 {offsets = [0, 16], sizes = [32, 240], strides = [1, 1]} : vector<32x256xf32> to vector<32x240xf32>
    %157 = tpu.concatenate %156, %155 in 1 : vector<32x240xf32>, vector<32x16xf32> -> vector<32x256xf32>
    %158 = arith.truncf %157 : vector<32x256xf32> to vector<32x256xbf16>
    %c224 = arith.constant 224 : index
    %c0_64 = arith.constant 0 : index
    %159 = vector.load %arg12[%c224, %c0_64] : memref<288x256xbf16, #tpu.memory_space<vmem>>, vector<32x256xbf16>
    tpu.vector_store %arg12[%c224, %c0_64], %158 {strides = array<i32>} : memref<288x256xbf16, #tpu.memory_space<vmem>>, vector<32x256xbf16>,
    %cst_65 = arith.constant 0.000000e+00 : f32
    %160 = vector.broadcast %cst_65 : f32 to vector<32x17xf32>
    %161 = vector.extract_strided_slice %102 {offsets = [0, 17], sizes = [32, 239], strides = [1, 1]} : vector<32x256xf32> to vector<32x239xf32>
    %162 = tpu.concatenate %161, %160 in 1 : vector<32x239xf32>, vector<32x17xf32> -> vector<32x256xf32>
    %cst_66 = arith.constant 0.000000e+00 : f32
    %163 = vector.shape_cast %20 : vector<1x256xi1> to vector<1x256xi1>
    %164 = vector.broadcast %163 : vector<1x256xi1> to vector<32x256xi1>
    %165 = vector.broadcast %cst_66 : f32 to vector<32x256xf32>
    %166 = arith.select %164, %162, %165 : vector<32x256xi1>, vector<32x256xf32>
    %167 = arith.truncf %166 : vector<32x256xf32> to vector<32x256xbf16>
    %c256 = arith.constant 256 : index
    %c0_67 = arith.constant 0 : index
    %168 = vector.load %arg12[%c256, %c0_67] : memref<288x256xbf16, #tpu.memory_space<vmem>>, vector<32x256xbf16>
    tpu.vector_store %arg12[%c256, %c0_67], %167 {strides = array<i32>} : memref<288x256xbf16, #tpu.memory_space<vmem>>, vector<32x256xbf16>,
    %c0_68 = arith.constant 0 : index
    %c0_69 = arith.constant 0 : index
    %169 = vector.load %arg4[%c0_68, %c0_69] : memref<32x288xbf16, #tpu.memory_space<vmem>>, vector<32x288xbf16>
    %c0_70 = arith.constant 0 : index
    %c0_71 = arith.constant 0 : index
    %170 = vector.load %arg12[%c0_70, %c0_71] : memref<288x256xbf16, #tpu.memory_space<vmem>>, vector<288x256xbf16>
    %cst_72 = arith.constant dense<0.000000e+00> : vector<32x256xf32>
    %171 = tpu.matmul %169, %170, %cst_72 {dimension_numbers = #tpu.dot_dimension_numbers<[1], [0], [0], [1], [0, 0, 1, 1], [], []>} : vector<32x288xbf16>, vector<288x256xbf16>, vector<32x256xf32> -> vector<32x256xf32>
    %c0_73 = arith.constant 0 : index
    %c0_74 = arith.constant 0 : index
    %172 = vector.load %arg5[%c0_73, %c0_74] : memref<32x1xf32, #tpu.memory_space<vmem>>, vector<32x1xf32>
    %173 = vector.broadcast %172 : vector<32x1xf32> to vector<32x256xf32>
    %174 = arith.addf %171, %173 : vector<32x256xf32>
    %cst_75 = arith.constant 0.000000e+00 : f32
    %175 = vector.broadcast %cst_75 : f32 to vector<32x256xf32>
    %176 = arith.cmpf oge, %174, %175 : vector<32x256xf32>
    %cst_76 = arith.constant 2.000000e-01 : f32
    %177 = vector.broadcast %cst_76 : f32 to vector<32x256xf32>
    %178 = arith.mulf %177, %174 : vector<32x256xf32>
    %179 = arith.select %176, %174, %178 : vector<32x256xi1>, vector<32x256xf32>
    %c0_77 = arith.constant 0 : index
    %c0_78 = arith.constant 0 : index
    %180 = vector.load %arg13[%c0_77, %c0_78] : memref<32x256xf32, #tpu.memory_space<vmem>>, vector<32x256xf32>
    tpu.vector_store %arg13[%c0_77, %c0_78], %179 {strides = array<i32>} : memref<32x256xf32, #tpu.memory_space<vmem>>, vector<32x256xf32>,
    %c0_79 = arith.constant 0 : index
    %c0_80 = arith.constant 0 : index
    %181 = vector.load %arg13[%c0_79, %c0_80] : memref<32x256xf32, #tpu.memory_space<vmem>>, vector<32x256xf32>
    %cst_81 = arith.constant 0.000000e+00 : f32
    %182 = vector.broadcast %cst_81 : f32 to vector<32x17xf32>
    %183 = vector.extract_strided_slice %181 {offsets = [0, 0], sizes = [32, 239], strides = [1, 1]} : vector<32x256xf32> to vector<32x239xf32>
    %184 = tpu.concatenate %182, %183 in 1 : vector<32x17xf32>, vector<32x239xf32> -> vector<32x256xf32>
    %cst_82 = arith.constant 0.000000e+00 : f32
    %185 = vector.shape_cast %18 : vector<1x256xi1> to vector<1x256xi1>
    %186 = vector.broadcast %185 : vector<1x256xi1> to vector<32x256xi1>
    %187 = vector.broadcast %cst_82 : f32 to vector<32x256xf32>
    %188 = arith.select %186, %184, %187 : vector<32x256xi1>, vector<32x256xf32>
    %189 = arith.truncf %188 : vector<32x256xf32> to vector<32x256xbf16>
    %c0_83 = arith.constant 0 : index
    %c0_84 = arith.constant 0 : index
    %190 = vector.load %arg12[%c0_83, %c0_84] : memref<288x256xbf16, #tpu.memory_space<vmem>>, vector<32x256xbf16>
    tpu.vector_store %arg12[%c0_83, %c0_84], %189 {strides = array<i32>} : memref<288x256xbf16, #tpu.memory_space<vmem>>, vector<32x256xbf16>,
    %cst_85 = arith.constant 0.000000e+00 : f32
    %191 = vector.broadcast %cst_85 : f32 to vector<32x16xf32>
    %192 = vector.extract_strided_slice %181 {offsets = [0, 0], sizes = [32, 240], strides = [1, 1]} : vector<32x256xf32> to vector<32x240xf32>
    %193 = tpu.concatenate %191, %192 in 1 : vector<32x16xf32>, vector<32x240xf32> -> vector<32x256xf32>
    %194 = arith.truncf %193 : vector<32x256xf32> to vector<32x256xbf16>
    %c32_86 = arith.constant 32 : index
    %c0_87 = arith.constant 0 : index
    %195 = vector.load %arg12[%c32_86, %c0_87] : memref<288x256xbf16, #tpu.memory_space<vmem>>, vector<32x256xbf16>
    tpu.vector_store %arg12[%c32_86, %c0_87], %194 {strides = array<i32>} : memref<288x256xbf16, #tpu.memory_space<vmem>>, vector<32x256xbf16>,
    %cst_88 = arith.constant 0.000000e+00 : f32
    %196 = vector.broadcast %cst_88 : f32 to vector<32x15xf32>
    %197 = vector.extract_strided_slice %181 {offsets = [0, 0], sizes = [32, 241], strides = [1, 1]} : vector<32x256xf32> to vector<32x241xf32>
    %198 = tpu.concatenate %196, %197 in 1 : vector<32x15xf32>, vector<32x241xf32> -> vector<32x256xf32>
    %cst_89 = arith.constant 0.000000e+00 : f32
    %199 = vector.shape_cast %20 : vector<1x256xi1> to vector<1x256xi1>
    %200 = vector.broadcast %199 : vector<1x256xi1> to vector<32x256xi1>
    %201 = vector.broadcast %cst_89 : f32 to vector<32x256xf32>
    %202 = arith.select %200, %198, %201 : vector<32x256xi1>, vector<32x256xf32>
    %203 = arith.truncf %202 : vector<32x256xf32> to vector<32x256xbf16>
    %c64_90 = arith.constant 64 : index
    %c0_91 = arith.constant 0 : index
    %204 = vector.load %arg12[%c64_90, %c0_91] : memref<288x256xbf16, #tpu.memory_space<vmem>>, vector<32x256xbf16>
    tpu.vector_store %arg12[%c64_90, %c0_91], %203 {strides = array<i32>} : memref<288x256xbf16, #tpu.memory_space<vmem>>, vector<32x256xbf16>,
    %cst_92 = arith.constant 0.000000e+00 : f32
    %205 = vector.broadcast %cst_92 : f32 to vector<32x1xf32>
    %206 = vector.extract_strided_slice %181 {offsets = [0, 0], sizes = [32, 255], strides = [1, 1]} : vector<32x256xf32> to vector<32x255xf32>
    %207 = tpu.concatenate %205, %206 in 1 : vector<32x1xf32>, vector<32x255xf32> -> vector<32x256xf32>
    %cst_93 = arith.constant 0.000000e+00 : f32
    %208 = vector.shape_cast %18 : vector<1x256xi1> to vector<1x256xi1>
    %209 = vector.broadcast %208 : vector<1x256xi1> to vector<32x256xi1>
    %210 = vector.broadcast %cst_93 : f32 to vector<32x256xf32>
    %211 = arith.select %209, %207, %210 : vector<32x256xi1>, vector<32x256xf32>
    %212 = arith.truncf %211 : vector<32x256xf32> to vector<32x256xbf16>
    %c96_94 = arith.constant 96 : index
    %c0_95 = arith.constant 0 : index
    %213 = vector.load %arg12[%c96_94, %c0_95] : memref<288x256xbf16, #tpu.memory_space<vmem>>, vector<32x256xbf16>
    tpu.vector_store %arg12[%c96_94, %c0_95], %212 {strides = array<i32>} : memref<288x256xbf16, #tpu.memory_space<vmem>>, vector<32x256xbf16>,
    %214 = arith.truncf %181 : vector<32x256xf32> to vector<32x256xbf16>
    %c128_96 = arith.constant 128 : index
    %c0_97 = arith.constant 0 : index
    %215 = vector.load %arg12[%c128_96, %c0_97] : memref<288x256xbf16, #tpu.memory_space<vmem>>, vector<32x256xbf16>
    tpu.vector_store %arg12[%c128_96, %c0_97], %214 {strides = array<i32>} : memref<288x256xbf16, #tpu.memory_space<vmem>>, vector<32x256xbf16>,
    %cst_98 = arith.constant 0.000000e+00 : f32
    %216 = vector.broadcast %cst_98 : f32 to vector<32x1xf32>
    %217 = vector.extract_strided_slice %181 {offsets = [0, 1], sizes = [32, 255], strides = [1, 1]} : vector<32x256xf32> to vector<32x255xf32>
    %218 = tpu.concatenate %217, %216 in 1 : vector<32x255xf32>, vector<32x1xf32> -> vector<32x256xf32>
    %cst_99 = arith.constant 0.000000e+00 : f32
    %219 = vector.shape_cast %20 : vector<1x256xi1> to vector<1x256xi1>
    %220 = vector.broadcast %219 : vector<1x256xi1> to vector<32x256xi1>
    %221 = vector.broadcast %cst_99 : f32 to vector<32x256xf32>
    %222 = arith.select %220, %218, %221 : vector<32x256xi1>, vector<32x256xf32>
    %223 = arith.truncf %222 : vector<32x256xf32> to vector<32x256xbf16>
    %c160_100 = arith.constant 160 : index
    %c0_101 = arith.constant 0 : index
    %224 = vector.load %arg12[%c160_100, %c0_101] : memref<288x256xbf16, #tpu.memory_space<vmem>>, vector<32x256xbf16>
    tpu.vector_store %arg12[%c160_100, %c0_101], %223 {strides = array<i32>} : memref<288x256xbf16, #tpu.memory_space<vmem>>, vector<32x256xbf16>,
    %cst_102 = arith.constant 0.000000e+00 : f32
    %225 = vector.broadcast %cst_102 : f32 to vector<32x15xf32>
    %226 = vector.extract_strided_slice %181 {offsets = [0, 15], sizes = [32, 241], strides = [1, 1]} : vector<32x256xf32> to vector<32x241xf32>
    %227 = tpu.concatenate %226, %225 in 1 : vector<32x241xf32>, vector<32x15xf32> -> vector<32x256xf32>
    %cst_103 = arith.constant 0.000000e+00 : f32
    %228 = vector.shape_cast %18 : vector<1x256xi1> to vector<1x256xi1>
    %229 = vector.broadcast %228 : vector<1x256xi1> to vector<32x256xi1>
    %230 = vector.broadcast %cst_103 : f32 to vector<32x256xf32>
    %231 = arith.select %229, %227, %230 : vector<32x256xi1>, vector<32x256xf32>
    %232 = arith.truncf %231 : vector<32x256xf32> to vector<32x256xbf16>
    %c192_104 = arith.constant 192 : index
    %c0_105 = arith.constant 0 : index
    %233 = vector.load %arg12[%c192_104, %c0_105] : memref<288x256xbf16, #tpu.memory_space<vmem>>, vector<32x256xbf16>
    tpu.vector_store %arg12[%c192_104, %c0_105], %232 {strides = array<i32>} : memref<288x256xbf16, #tpu.memory_space<vmem>>, vector<32x256xbf16>,
    %cst_106 = arith.constant 0.000000e+00 : f32
    %234 = vector.broadcast %cst_106 : f32 to vector<32x16xf32>
    %235 = vector.extract_strided_slice %181 {offsets = [0, 16], sizes = [32, 240], strides = [1, 1]} : vector<32x256xf32> to vector<32x240xf32>
    %236 = tpu.concatenate %235, %234 in 1 : vector<32x240xf32>, vector<32x16xf32> -> vector<32x256xf32>
    %237 = arith.truncf %236 : vector<32x256xf32> to vector<32x256xbf16>
    %c224_107 = arith.constant 224 : index
    %c0_108 = arith.constant 0 : index
    %238 = vector.load %arg12[%c224_107, %c0_108] : memref<288x256xbf16, #tpu.memory_space<vmem>>, vector<32x256xbf16>
    tpu.vector_store %arg12[%c224_107, %c0_108], %237 {strides = array<i32>} : memref<288x256xbf16, #tpu.memory_space<vmem>>, vector<32x256xbf16>,
    %cst_109 = arith.constant 0.000000e+00 : f32
    %239 = vector.broadcast %cst_109 : f32 to vector<32x17xf32>
    %240 = vector.extract_strided_slice %181 {offsets = [0, 17], sizes = [32, 239], strides = [1, 1]} : vector<32x256xf32> to vector<32x239xf32>
    %241 = tpu.concatenate %240, %239 in 1 : vector<32x239xf32>, vector<32x17xf32> -> vector<32x256xf32>
    %cst_110 = arith.constant 0.000000e+00 : f32
    %242 = vector.shape_cast %20 : vector<1x256xi1> to vector<1x256xi1>
    %243 = vector.broadcast %242 : vector<1x256xi1> to vector<32x256xi1>
    %244 = vector.broadcast %cst_110 : f32 to vector<32x256xf32>
    %245 = arith.select %243, %241, %244 : vector<32x256xi1>, vector<32x256xf32>
    %246 = arith.truncf %245 : vector<32x256xf32> to vector<32x256xbf16>
    %c256_111 = arith.constant 256 : index
    %c0_112 = arith.constant 0 : index
    %247 = vector.load %arg12[%c256_111, %c0_112] : memref<288x256xbf16, #tpu.memory_space<vmem>>, vector<32x256xbf16>
    tpu.vector_store %arg12[%c256_111, %c0_112], %246 {strides = array<i32>} : memref<288x256xbf16, #tpu.memory_space<vmem>>, vector<32x256xbf16>,
    %c0_113 = arith.constant 0 : index
    %c0_114 = arith.constant 0 : index
    %248 = vector.load %arg6[%c0_113, %c0_114] : memref<32x288xbf16, #tpu.memory_space<vmem>>, vector<32x288xbf16>
    %c0_115 = arith.constant 0 : index
    %c0_116 = arith.constant 0 : index
    %249 = vector.load %arg12[%c0_115, %c0_116] : memref<288x256xbf16, #tpu.memory_space<vmem>>, vector<288x256xbf16>
    %cst_117 = arith.constant dense<0.000000e+00> : vector<32x256xf32>
    %250 = tpu.matmul %248, %249, %cst_117 {dimension_numbers = #tpu.dot_dimension_numbers<[1], [0], [0], [1], [0, 0, 1, 1], [], []>} : vector<32x288xbf16>, vector<288x256xbf16>, vector<32x256xf32> -> vector<32x256xf32>
    %c0_118 = arith.constant 0 : index
    %c0_119 = arith.constant 0 : index
    %251 = vector.load %arg7[%c0_118, %c0_119] : memref<32x1xf32, #tpu.memory_space<vmem>>, vector<32x1xf32>
    %252 = vector.broadcast %251 : vector<32x1xf32> to vector<32x256xf32>
    %253 = arith.addf %250, %252 : vector<32x256xf32>
    %cst_120 = arith.constant 0.000000e+00 : f32
    %254 = vector.broadcast %cst_120 : f32 to vector<32x256xf32>
    %255 = arith.cmpf oge, %253, %254 : vector<32x256xf32>
    %cst_121 = arith.constant 2.000000e-01 : f32
    %256 = vector.broadcast %cst_121 : f32 to vector<32x256xf32>
    %257 = arith.mulf %256, %253 : vector<32x256xf32>
    %258 = arith.select %255, %253, %257 : vector<32x256xi1>, vector<32x256xf32>
    %c0_122 = arith.constant 0 : index
    %c0_123 = arith.constant 0 : index
    %259 = vector.load %arg13[%c0_122, %c0_123] : memref<32x256xf32, #tpu.memory_space<vmem>>, vector<32x256xf32>
    tpu.vector_store %arg13[%c0_122, %c0_123], %258 {strides = array<i32>} : memref<32x256xf32, #tpu.memory_space<vmem>>, vector<32x256xf32>,
    %c0_124 = arith.constant 0 : index
    %c0_125 = arith.constant 0 : index
    %260 = vector.load %arg13[%c0_124, %c0_125] : memref<32x256xf32, #tpu.memory_space<vmem>>, vector<32x256xf32>
    %cst_126 = arith.constant 0.000000e+00 : f32
    %261 = vector.broadcast %cst_126 : f32 to vector<32x17xf32>
    %262 = vector.extract_strided_slice %260 {offsets = [0, 0], sizes = [32, 239], strides = [1, 1]} : vector<32x256xf32> to vector<32x239xf32>
    %263 = tpu.concatenate %261, %262 in 1 : vector<32x17xf32>, vector<32x239xf32> -> vector<32x256xf32>
    %cst_127 = arith.constant 0.000000e+00 : f32
    %264 = vector.shape_cast %18 : vector<1x256xi1> to vector<1x256xi1>
    %265 = vector.broadcast %264 : vector<1x256xi1> to vector<32x256xi1>
    %266 = vector.broadcast %cst_127 : f32 to vector<32x256xf32>
    %267 = arith.select %265, %263, %266 : vector<32x256xi1>, vector<32x256xf32>
    %268 = arith.truncf %267 : vector<32x256xf32> to vector<32x256xbf16>
    %c0_128 = arith.constant 0 : index
    %c0_129 = arith.constant 0 : index
    %269 = vector.load %arg12[%c0_128, %c0_129] : memref<288x256xbf16, #tpu.memory_space<vmem>>, vector<32x256xbf16>
    tpu.vector_store %arg12[%c0_128, %c0_129], %268 {strides = array<i32>} : memref<288x256xbf16, #tpu.memory_space<vmem>>, vector<32x256xbf16>,
    %cst_130 = arith.constant 0.000000e+00 : f32
    %270 = vector.broadcast %cst_130 : f32 to vector<32x16xf32>
    %271 = vector.extract_strided_slice %260 {offsets = [0, 0], sizes = [32, 240], strides = [1, 1]} : vector<32x256xf32> to vector<32x240xf32>
    %272 = tpu.concatenate %270, %271 in 1 : vector<32x16xf32>, vector<32x240xf32> -> vector<32x256xf32>
    %273 = arith.truncf %272 : vector<32x256xf32> to vector<32x256xbf16>
    %c32_131 = arith.constant 32 : index
    %c0_132 = arith.constant 0 : index
    %274 = vector.load %arg12[%c32_131, %c0_132] : memref<288x256xbf16, #tpu.memory_space<vmem>>, vector<32x256xbf16>
    tpu.vector_store %arg12[%c32_131, %c0_132], %273 {strides = array<i32>} : memref<288x256xbf16, #tpu.memory_space<vmem>>, vector<32x256xbf16>,
    %cst_133 = arith.constant 0.000000e+00 : f32
    %275 = vector.broadcast %cst_133 : f32 to vector<32x15xf32>
    %276 = vector.extract_strided_slice %260 {offsets = [0, 0], sizes = [32, 241], strides = [1, 1]} : vector<32x256xf32> to vector<32x241xf32>
    %277 = tpu.concatenate %275, %276 in 1 : vector<32x15xf32>, vector<32x241xf32> -> vector<32x256xf32>
    %cst_134 = arith.constant 0.000000e+00 : f32
    %278 = vector.shape_cast %20 : vector<1x256xi1> to vector<1x256xi1>
    %279 = vector.broadcast %278 : vector<1x256xi1> to vector<32x256xi1>
    %280 = vector.broadcast %cst_134 : f32 to vector<32x256xf32>
    %281 = arith.select %279, %277, %280 : vector<32x256xi1>, vector<32x256xf32>
    %282 = arith.truncf %281 : vector<32x256xf32> to vector<32x256xbf16>
    %c64_135 = arith.constant 64 : index
    %c0_136 = arith.constant 0 : index
    %283 = vector.load %arg12[%c64_135, %c0_136] : memref<288x256xbf16, #tpu.memory_space<vmem>>, vector<32x256xbf16>
    tpu.vector_store %arg12[%c64_135, %c0_136], %282 {strides = array<i32>} : memref<288x256xbf16, #tpu.memory_space<vmem>>, vector<32x256xbf16>,
    %cst_137 = arith.constant 0.000000e+00 : f32
    %284 = vector.broadcast %cst_137 : f32 to vector<32x1xf32>
    %285 = vector.extract_strided_slice %260 {offsets = [0, 0], sizes = [32, 255], strides = [1, 1]} : vector<32x256xf32> to vector<32x255xf32>
    %286 = tpu.concatenate %284, %285 in 1 : vector<32x1xf32>, vector<32x255xf32> -> vector<32x256xf32>
    %cst_138 = arith.constant 0.000000e+00 : f32
    %287 = vector.shape_cast %18 : vector<1x256xi1> to vector<1x256xi1>
    %288 = vector.broadcast %287 : vector<1x256xi1> to vector<32x256xi1>
    %289 = vector.broadcast %cst_138 : f32 to vector<32x256xf32>
    %290 = arith.select %288, %286, %289 : vector<32x256xi1>, vector<32x256xf32>
    %291 = arith.truncf %290 : vector<32x256xf32> to vector<32x256xbf16>
    %c96_139 = arith.constant 96 : index
    %c0_140 = arith.constant 0 : index
    %292 = vector.load %arg12[%c96_139, %c0_140] : memref<288x256xbf16, #tpu.memory_space<vmem>>, vector<32x256xbf16>
    tpu.vector_store %arg12[%c96_139, %c0_140], %291 {strides = array<i32>} : memref<288x256xbf16, #tpu.memory_space<vmem>>, vector<32x256xbf16>,
    %293 = arith.truncf %260 : vector<32x256xf32> to vector<32x256xbf16>
    %c128_141 = arith.constant 128 : index
    %c0_142 = arith.constant 0 : index
    %294 = vector.load %arg12[%c128_141, %c0_142] : memref<288x256xbf16, #tpu.memory_space<vmem>>, vector<32x256xbf16>
    tpu.vector_store %arg12[%c128_141, %c0_142], %293 {strides = array<i32>} : memref<288x256xbf16, #tpu.memory_space<vmem>>, vector<32x256xbf16>,
    %cst_143 = arith.constant 0.000000e+00 : f32
    %295 = vector.broadcast %cst_143 : f32 to vector<32x1xf32>
    %296 = vector.extract_strided_slice %260 {offsets = [0, 1], sizes = [32, 255], strides = [1, 1]} : vector<32x256xf32> to vector<32x255xf32>
    %297 = tpu.concatenate %296, %295 in 1 : vector<32x255xf32>, vector<32x1xf32> -> vector<32x256xf32>
    %cst_144 = arith.constant 0.000000e+00 : f32
    %298 = vector.shape_cast %20 : vector<1x256xi1> to vector<1x256xi1>
    %299 = vector.broadcast %298 : vector<1x256xi1> to vector<32x256xi1>
    %300 = vector.broadcast %cst_144 : f32 to vector<32x256xf32>
    %301 = arith.select %299, %297, %300 : vector<32x256xi1>, vector<32x256xf32>
    %302 = arith.truncf %301 : vector<32x256xf32> to vector<32x256xbf16>
    %c160_145 = arith.constant 160 : index
    %c0_146 = arith.constant 0 : index
    %303 = vector.load %arg12[%c160_145, %c0_146] : memref<288x256xbf16, #tpu.memory_space<vmem>>, vector<32x256xbf16>
    tpu.vector_store %arg12[%c160_145, %c0_146], %302 {strides = array<i32>} : memref<288x256xbf16, #tpu.memory_space<vmem>>, vector<32x256xbf16>,
    %cst_147 = arith.constant 0.000000e+00 : f32
    %304 = vector.broadcast %cst_147 : f32 to vector<32x15xf32>
    %305 = vector.extract_strided_slice %260 {offsets = [0, 15], sizes = [32, 241], strides = [1, 1]} : vector<32x256xf32> to vector<32x241xf32>
    %306 = tpu.concatenate %305, %304 in 1 : vector<32x241xf32>, vector<32x15xf32> -> vector<32x256xf32>
    %cst_148 = arith.constant 0.000000e+00 : f32
    %307 = vector.shape_cast %18 : vector<1x256xi1> to vector<1x256xi1>
    %308 = vector.broadcast %307 : vector<1x256xi1> to vector<32x256xi1>
    %309 = vector.broadcast %cst_148 : f32 to vector<32x256xf32>
    %310 = arith.select %308, %306, %309 : vector<32x256xi1>, vector<32x256xf32>
    %311 = arith.truncf %310 : vector<32x256xf32> to vector<32x256xbf16>
    %c192_149 = arith.constant 192 : index
    %c0_150 = arith.constant 0 : index
    %312 = vector.load %arg12[%c192_149, %c0_150] : memref<288x256xbf16, #tpu.memory_space<vmem>>, vector<32x256xbf16>
    tpu.vector_store %arg12[%c192_149, %c0_150], %311 {strides = array<i32>} : memref<288x256xbf16, #tpu.memory_space<vmem>>, vector<32x256xbf16>,
    %cst_151 = arith.constant 0.000000e+00 : f32
    %313 = vector.broadcast %cst_151 : f32 to vector<32x16xf32>
    %314 = vector.extract_strided_slice %260 {offsets = [0, 16], sizes = [32, 240], strides = [1, 1]} : vector<32x256xf32> to vector<32x240xf32>
    %315 = tpu.concatenate %314, %313 in 1 : vector<32x240xf32>, vector<32x16xf32> -> vector<32x256xf32>
    %316 = arith.truncf %315 : vector<32x256xf32> to vector<32x256xbf16>
    %c224_152 = arith.constant 224 : index
    %c0_153 = arith.constant 0 : index
    %317 = vector.load %arg12[%c224_152, %c0_153] : memref<288x256xbf16, #tpu.memory_space<vmem>>, vector<32x256xbf16>
    tpu.vector_store %arg12[%c224_152, %c0_153], %316 {strides = array<i32>} : memref<288x256xbf16, #tpu.memory_space<vmem>>, vector<32x256xbf16>,
    %cst_154 = arith.constant 0.000000e+00 : f32
    %318 = vector.broadcast %cst_154 : f32 to vector<32x17xf32>
    %319 = vector.extract_strided_slice %260 {offsets = [0, 17], sizes = [32, 239], strides = [1, 1]} : vector<32x256xf32> to vector<32x239xf32>
    %320 = tpu.concatenate %319, %318 in 1 : vector<32x239xf32>, vector<32x17xf32> -> vector<32x256xf32>
    %cst_155 = arith.constant 0.000000e+00 : f32
    %321 = vector.shape_cast %20 : vector<1x256xi1> to vector<1x256xi1>
    %322 = vector.broadcast %321 : vector<1x256xi1> to vector<32x256xi1>
    %323 = vector.broadcast %cst_155 : f32 to vector<32x256xf32>
    %324 = arith.select %322, %320, %323 : vector<32x256xi1>, vector<32x256xf32>
    %325 = arith.truncf %324 : vector<32x256xf32> to vector<32x256xbf16>
    %c256_156 = arith.constant 256 : index
    %c0_157 = arith.constant 0 : index
    %326 = vector.load %arg12[%c256_156, %c0_157] : memref<288x256xbf16, #tpu.memory_space<vmem>>, vector<32x256xbf16>
    tpu.vector_store %arg12[%c256_156, %c0_157], %325 {strides = array<i32>} : memref<288x256xbf16, #tpu.memory_space<vmem>>, vector<32x256xbf16>,
    %c0_158 = arith.constant 0 : index
    %c0_159 = arith.constant 0 : index
    %327 = vector.load %arg8[%c0_158, %c0_159] : memref<4x288xbf16, #tpu.memory_space<vmem>>, vector<4x288xbf16>
    %c0_160 = arith.constant 0 : index
    %c0_161 = arith.constant 0 : index
    %328 = vector.load %arg12[%c0_160, %c0_161] : memref<288x256xbf16, #tpu.memory_space<vmem>>, vector<288x256xbf16>
    %cst_162 = arith.constant dense<0.000000e+00> : vector<4x256xf32>
    %329 = tpu.matmul %327, %328, %cst_162 {dimension_numbers = #tpu.dot_dimension_numbers<[1], [0], [0], [1], [0, 0, 1, 1], [], []>} : vector<4x288xbf16>, vector<288x256xbf16>, vector<4x256xf32> -> vector<4x256xf32>
    %c0_163 = arith.constant 0 : index
    %c0_164 = arith.constant 0 : index
    %330 = vector.load %arg9[%c0_163, %c0_164] : memref<4x1xf32, #tpu.memory_space<vmem>>, vector<4x1xf32>
    %331 = vector.broadcast %330 : vector<4x1xf32> to vector<4x256xf32>
    %332 = arith.addf %329, %331 : vector<4x256xf32>
    %cst_165 = arith.constant 0.000000e+00 : f32
    %333 = vector.broadcast %cst_165 : f32 to vector<4x256xf32>
    %334 = arith.maximumf %332, %333 : vector<4x256xf32>
    %c0_166 = arith.constant 0 : index
    %c0_167 = arith.constant 0 : index
    %c0_168 = arith.constant 0 : index
    %335 = vector.load %arg10[%c0_166, %c0_167, %c0_168] : memref<1x4x256xf32, #tpu.memory_space<vmem>>, vector<1x4x256xf32>
    %336 = vector.shape_cast %335 : vector<1x4x256xf32> to vector<4x256xf32>
    %337 = vector.shape_cast %334 : vector<4x256xf32> to vector<1x4x256xf32>
    tpu.vector_store %arg10[%c0_166, %c0_167, %c0_168], %337 {strides = array<i32>} : memref<1x4x256xf32, #tpu.memory_space<vmem>>, vector<1x4x256xf32>,
    return
  }
  func.func @transform_0(%arg0: i32) -> (i32, i32, i32) {
    %c0_i32 = arith.constant 0 : i32
    %c0_i32_0 = arith.constant 0 : i32
    %c0_i32_1 = arith.constant 0 : i32
    return %arg0, %c0_i32, %c0_i32_0 : i32, i32, i32
  }
  func.func @transform_1(%arg0: i32) -> (i32, i32) {
    %c0_i32 = arith.constant 0 : i32
    %c0_i32_0 = arith.constant 0 : i32
    %c0_i32_1 = arith.constant 0 : i32
    return %c0_i32, %c0_i32_0 : i32, i32
  }
  func.func @transform_2(%arg0: i32) -> (i32, i32) {
    %c0_i32 = arith.constant 0 : i32
    %c0_i32_0 = arith.constant 0 : i32
    %c0_i32_1 = arith.constant 0 : i32
    return %c0_i32, %c0_i32_0 : i32, i32
  }
  func.func @transform_3(%arg0: i32) -> (i32, i32) {
    %c0_i32 = arith.constant 0 : i32
    %c0_i32_0 = arith.constant 0 : i32
    %c0_i32_1 = arith.constant 0 : i32
    return %c0_i32, %c0_i32_0 : i32, i32
  }
  func.func @transform_4(%arg0: i32) -> (i32, i32) {
    %c0_i32 = arith.constant 0 : i32
    %c0_i32_0 = arith.constant 0 : i32
    %c0_i32_1 = arith.constant 0 : i32
    return %c0_i32, %c0_i32_0 : i32, i32
  }
  func.func @transform_5(%arg0: i32) -> (i32, i32) {
    %c0_i32 = arith.constant 0 : i32
    %c0_i32_0 = arith.constant 0 : i32
    %c0_i32_1 = arith.constant 0 : i32
    return %c0_i32, %c0_i32_0 : i32, i32
  }
  func.func @transform_6(%arg0: i32) -> (i32, i32) {
    %c0_i32 = arith.constant 0 : i32
    %c0_i32_0 = arith.constant 0 : i32
    %c0_i32_1 = arith.constant 0 : i32
    return %c0_i32, %c0_i32_0 : i32, i32
  }
  func.func @transform_7(%arg0: i32) -> (i32, i32) {
    %c0_i32 = arith.constant 0 : i32
    %c0_i32_0 = arith.constant 0 : i32
    %c0_i32_1 = arith.constant 0 : i32
    return %c0_i32, %c0_i32_0 : i32, i32
  }
  func.func @transform_8(%arg0: i32) -> (i32, i32) {
    %c0_i32 = arith.constant 0 : i32
    %c0_i32_0 = arith.constant 0 : i32
    %c0_i32_1 = arith.constant 0 : i32
    return %c0_i32, %c0_i32_0 : i32, i32
  }
  func.func @transform_9(%arg0: i32) -> (i32, i32, i32) {
    %c0_i32 = arith.constant 0 : i32
    %c0_i32_0 = arith.constant 0 : i32
    %c0_i32_1 = arith.constant 0 : i32
    return %arg0, %c0_i32, %c0_i32_0 : i32, i32, i32
  }
}

</mosaic_0001>

<llo_original>
// kernel: inference_low_forward.1
$region0: #{inference_low_forward.1}
  #allocation0 [shape = 'u32[]', space=smem, size = 0x4, offset = 0x4, fixed_abs, tag = 'smem constant byte address 0x4 - core index']
  #allocation1 [shape = 'u32[144,128]{1,0:T(1,128)}', space=vmem, size = 0x12000, scoped, tag = 'internal scratch']
  #allocation2 [shape = 'bf16[72,256]{1,0:T(8,128)(2,1)}', space=vmem, size = 0x9000, scoped, tag = 'scratch operand']
  #allocation3 [shape = 'bf16[288,256]{1,0:T(16,128)(2,1)}', space=vmem, size = 0x24000, scoped, tag = 'scratch operand']
  #allocation4 [shape = 'f32[32,256]{1,0:T(8,128)}', space=vmem, size = 0x8000, scoped, tag = 'scratch operand']
  %s0 = inlined_call_operand.vmem [shape: bf16[2,8,256], index: 0, kind: input, shape index: {}]
  %s1 = inlined_call_operand.vmem [shape: bf16[32,72], index: 1, kind: input, shape index: {}]
  %s2 = inlined_call_operand.vmem [shape: f32[32,1], index: 2, kind: input, shape index: {}]
  %s3 = inlined_call_operand.vmem [shape: bf16[32,288], index: 3, kind: input, shape index: {}]
  %s4 = inlined_call_operand.vmem [shape: f32[32,1], index: 4, kind: input, shape index: {}]
  %s5 = inlined_call_operand.vmem [shape: bf16[32,288], index: 5, kind: input, shape index: {}]
  %s6 = inlined_call_operand.vmem [shape: f32[32,1], index: 6, kind: input, shape index: {}]
  %s7 = inlined_call_operand.vmem [shape: bf16[4,288], index: 7, kind: input, shape index: {}]
  %s8 = inlined_call_operand.vmem [shape: f32[4,1], index: 8, kind: input, shape index: {}]
  %s9 = inlined_call_operand.vmem [shape: f32[2,4,256], index: 9, kind: output, shape index: {}]
  %s10 = sld [smem:[#allocation0]]
  $region69: #{inference_low_forward.1} parent=0
    _
  %s12 = ssub.s32 1, %s10
  %s13 = scalar_select 0, %s12, %s10
  loop: start=0, step=1, limit=4
  $region2: #{inference_low_forward.1} parent=0 // loop_pre_header
    _
  $region3: #{inference_low_forward.1} parent=0 // loop_header
    %s15 = sphi 0, %s19
    %p16 = scmp.ge.s32.totalorder %s15, 4
    %s25 = sphi 0, %s27
    %s28 = sphi 0, %s25
    %s29 = sphi 0, %s28
    %s45 = sphi 0, %s29
    %s49 = sphi 0, %s49
    %s51 = sphi 0, %s49
    %s52 = sphi 0, %s51
    %s66 = sphi 0, %s52
    %s70 = sphi 0, %s70
    %s72 = sphi 0, %s70
    %s73 = sphi 0, %s72
    %s87 = sphi 0, %s73
    %s91 = sphi 0, %s91
    %s93 = sphi 0, %s91
    %s94 = sphi 0, %s93
    %s108 = sphi 0, %s94
    %s112 = sphi 0, %s112
    %s114 = sphi 0, %s112
    %s115 = sphi 0, %s114
    %s129 = sphi 0, %s115
    %s133 = sphi 0, %s133
    %s135 = sphi 0, %s133
    %s136 = sphi 0, %s135
    %s150 = sphi 0, %s136
    %s154 = sphi 0, %s154
    %s156 = sphi 0, %s154
    %s157 = sphi 0, %s156
    %s171 = sphi 0, %s157
    %s175 = sphi 0, %s175
    %s177 = sphi 0, %s175
    %s178 = sphi 0, %s177
    %s192 = sphi 0, %s178
    %s196 = sphi 0, %s196
    %s198 = sphi 0, %s196
    %s199 = sphi 0, %s198
    %s213 = sphi 0, %s199
    %s219 = sphi 0, %s221
    %s222 = sphi 0, %s219
    %s223 = sphi 0, %s222
    %s239 = sphi 0, %s223
  $region4: #{inference_low_forward.1} parent=0 // loop_header_branch
    %18 = sbr.rel (%p16) target = $region8
  $region5: #{inference_low_forward.1} parent=0 // loop_body
    %s20 = ssub.s32 %s15, 1
    %s21 = ssub.s32 %s15, 2
    %s22 = sadd.s32 %s15, 1
    %s23 = ssub.s32 %s15, %s22
    %p24 = scmp.eq.s32.totalorder %s23, 0
    %s26 = sadd.s32 %s25, 1
    %s27 = scalar_select %p24, %s25, %s26
    %p30 = pneg %p24
    %p31 = scmp.eq.s32.totalorder %s15, 1
    %p32 = por %p30, %p31
    %p33 = scmp.ne.s32.totalorder %s25, %s28
    %p34 = scmp.eq.s32.totalorder %s15, 0
    %p35 = por %p33, %p34
    %p36 = scmp.ne.s32.totalorder %s25, %s28
    %p37 = scmp.eq.s32.totalorder %s20, 1
    %p38 = por %p36, %p37
    %p39 = scmp.ne.s32.totalorder %s28, %s29
    %p40 = scmp.eq.s32.totalorder %s20, 0
    %p41 = por %p39, %p40
    %p42 = scmp.ne.s32.totalorder %s28, %s29
    %p43 = scmp.eq.s32.totalorder %s21, 1
    %p44 = por %p42, %p43
    %p46 = scmp.ne.s32.totalorder %s29, %s45
    %p47 = scmp.eq.s32.totalorder %s21, 0
    %p48 = por %p46, %p47
    %s50 = sadd.s32 %s49, 1
    %p53 = scmp.eq.s32.totalorder %s15, 1
    %p54 = scmp.ne.s32.totalorder %s49, %s51
    %p55 = scmp.eq.s32.totalorder %s15, 0
    %p56 = por %p54, %p55
    %p57 = scmp.ne.s32.totalorder %s49, %s51
    %p58 = scmp.eq.s32.totalorder %s20, 1
    %p59 = por %p57, %p58
    %p60 = scmp.ne.s32.totalorder %s51, %s52
    %p61 = scmp.eq.s32.totalorder %s20, 0
    %p62 = por %p60, %p61
    %p63 = scmp.ne.s32.totalorder %s51, %s52
    %p64 = scmp.eq.s32.totalorder %s21, 1
    %p65 = por %p63, %p64
    %p67 = scmp.ne.s32.totalorder %s52, %s66
    %p68 = scmp.eq.s32.totalorder %s21, 0
    %p69 = por %p67, %p68
    %s71 = sadd.s32 %s70, 1
    %p74 = scmp.eq.s32.totalorder %s15, 1
    %p75 = scmp.ne.s32.totalorder %s70, %s72
    %p76 = scmp.eq.s32.totalorder %s15, 0
    %p77 = por %p75, %p76
    %p78 = scmp.ne.s32.totalorder %s70, %s72
    %p79 = scmp.eq.s32.totalorder %s20, 1
    %p80 = por %p78, %p79
    %p81 = scmp.ne.s32.totalorder %s72, %s73
    %p82 = scmp.eq.s32.totalorder %s20, 0
    %p83 = por %p81, %p82
    %p84 = scmp.ne.s32.totalorder %s72, %s73
    %p85 = scmp.eq.s32.totalorder %s21, 1
    %p86 = por %p84, %p85
    %p88 = scmp.ne.s32.totalorder %s73, %s87
    %p89 = scmp.eq.s32.totalorder %s21, 0
    %p90 = por %p88, %p89
    %s92 = sadd.s32 %s91, 1
    %p95 = scmp.eq.s32.totalorder %s15, 1
    %p96 = scmp.ne.s32.totalorder %s91, %s93
    %p97 = scmp.eq.s32.totalorder %s15, 0
    %p98 = por %p96, %p97
    %p99 = scmp.ne.s32.totalorder %s91, %s93
    %p100 = scmp.eq.s32.totalorder %s20, 1
    %p101 = por %p99, %p100
    %p102 = scmp.ne.s32.totalorder %s93, %s94
    %p103 = scmp.eq.s32.totalorder %s20, 0
    %p104 = por %p102, %p103
    %p105 = scmp.ne.s32.totalorder %s93, %s94
    %p106 = scmp.eq.s32.totalorder %s21, 1
    %p107 = por %p105, %p106
    %p109 = scmp.ne.s32.totalorder %s94, %s108
    %p110 = scmp.eq.s32.totalorder %s21, 0
    %p111 = por %p109, %p110
    %s113 = sadd.s32 %s112, 1
    %p116 = scmp.eq.s32.totalorder %s15, 1
    %p117 = scmp.ne.s32.totalorder %s112, %s114
    %p118 = scmp.eq.s32.totalorder %s15, 0
    %p119 = por %p117, %p118
    %p120 = scmp.ne.s32.totalorder %s112, %s114
    %p121 = scmp.eq.s32.totalorder %s20, 1
    %p122 = por %p120, %p121
    %p123 = scmp.ne.s32.totalorder %s114, %s115
    %p124 = scmp.eq.s32.totalorder %s20, 0
    %p125 = por %p123, %p124
    %p126 = scmp.ne.s32.totalorder %s114, %s115
    %p127 = scmp.eq.s32.totalorder %s21, 1
    %p128 = por %p126, %p127
    %p130 = scmp.ne.s32.totalorder %s115, %s129
    %p131 = scmp.eq.s32.totalorder %s21, 0
    %p132 = por %p130, %p131
    %s134 = sadd.s32 %s133, 1
    %p137 = scmp.eq.s32.totalorder %s15, 1
    %p138 = scmp.ne.s32.totalorder %s133, %s135
    %p139 = scmp.eq.s32.totalorder %s15, 0
    %p140 = por %p138, %p139
    %p141 = scmp.ne.s32.totalorder %s133, %s135
    %p142 = scmp.eq.s32.totalorder %s20, 1
    %p143 = por %p141, %p142
    %p144 = scmp.ne.s32.totalorder %s135, %s136
    %p145 = scmp.eq.s32.totalorder %s20, 0
    %p146 = por %p144, %p145
    %p147 = scmp.ne.s32.totalorder %s135, %s136
    %p148 = scmp.eq.s32.totalorder %s21, 1
    %p149 = por %p147, %p148
    %p151 = scmp.ne.s32.totalorder %s136, %s150
    %p152 = scmp.eq.s32.totalorder %s21, 0
    %p153 = por %p151, %p152
    %s155 = sadd.s32 %s154, 1
    %p158 = scmp.eq.s32.totalorder %s15, 1
    %p159 = scmp.ne.s32.totalorder %s154, %s156
    %p160 = scmp.eq.s32.totalorder %s15, 0
    %p161 = por %p159, %p160
    %p162 = scmp.ne.s32.totalorder %s154, %s156
    %p163 = scmp.eq.s32.totalorder %s20, 1
    %p164 = por %p162, %p163
    %p165 = scmp.ne.s32.totalorder %s156, %s157
    %p166 = scmp.eq.s32.totalorder %s20, 0
    %p167 = por %p165, %p166
    %p168 = scmp.ne.s32.totalorder %s156, %s157
    %p169 = scmp.eq.s32.totalorder %s21, 1
    %p170 = por %p168, %p169
    %p172 = scmp.ne.s32.totalorder %s157, %s171
    %p173 = scmp.eq.s32.totalorder %s21, 0
    %p174 = por %p172, %p173
    %s176 = sadd.s32 %s175, 1
    %p179 = scmp.eq.s32.totalorder %s15, 1
    %p180 = scmp.ne.s32.totalorder %s175, %s177
    %p181 = scmp.eq.s32.totalorder %s15, 0
    %p182 = por %p180, %p181
    %p183 = scmp.ne.s32.totalorder %s175, %s177
    %p184 = scmp.eq.s32.totalorder %s20, 1
    %p185 = por %p183, %p184
    %p186 = scmp.ne.s32.totalorder %s177, %s178
    %p187 = scmp.eq.s32.totalorder %s20, 0
    %p188 = por %p186, %p187
    %p189 = scmp.ne.s32.totalorder %s177, %s178
    %p190 = scmp.eq.s32.totalorder %s21, 1
    %p191 = por %p189, %p190
    %p193 = scmp.ne.s32.totalorder %s178, %s192
    %p194 = scmp.eq.s32.totalorder %s21, 0
    %p195 = por %p193, %p194
    %s197 = sadd.s32 %s196, 1
    %p200 = scmp.eq.s32.totalorder %s15, 1
    %p201 = scmp.ne.s32.totalorder %s196, %s198
    %p202 = scmp.eq.s32.totalorder %s15, 0
    %p203 = por %p201, %p202
    %p204 = scmp.ne.s32.totalorder %s196, %s198
    %p205 = scmp.eq.s32.totalorder %s20, 1
    %p206 = por %p204, %p205
    %p207 = scmp.ne.s32.totalorder %s198, %s199
    %p208 = scmp.eq.s32.totalorder %s20, 0
    %p209 = por %p207, %p208
    %p210 = scmp.ne.s32.totalorder %s198, %s199
    %p211 = scmp.eq.s32.totalorder %s21, 1
    %p212 = por %p210, %p211
    %p214 = scmp.ne.s32.totalorder %s199, %s213
    %p215 = scmp.eq.s32.totalorder %s21, 0
    %p216 = por %p214, %p215
    %s217 = ssub.s32 %s15, %s22
    %p218 = scmp.eq.s32.totalorder %s217, 0
    %s220 = sadd.s32 %s219, 1
    %s221 = scalar_select %p218, %s219, %s220
    %p224 = pneg %p218
    %p225 = scmp.eq.s32.totalorder %s15, 1
    %p226 = por %p224, %p225
    %p227 = scmp.ne.s32.totalorder %s219, %s222
    %p228 = scmp.eq.s32.totalorder %s15, 0
    %p229 = por %p227, %p228
    %p230 = scmp.ne.s32.totalorder %s219, %s222
    %p231 = scmp.eq.s32.totalorder %s20, 1
    %p232 = por %p230, %p231
    %p233 = scmp.ne.s32.totalorder %s222, %s223
    %p234 = scmp.eq.s32.totalorder %s20, 0
    %p235 = por %p233, %p234
    %p236 = scmp.ne.s32.totalorder %s222, %s223
    %p237 = scmp.eq.s32.totalorder %s21, 1
    %p238 = por %p236, %p237
    %p240 = scmp.ne.s32.totalorder %s223, %s239
    %p241 = scmp.eq.s32.totalorder %s21, 0
    %p242 = por %p240, %p241
    %p243 = scmp.le.s32.totalorder 1, %s15
    %p244 = scmp.lt.s32.totalorder %s15, 3
    %p245 = pnand %p243, %p244
    %p246 = pneg %p245
    // Predicated region
    $region9: #{inference_low_forward.1} parent=5 // pred_check
      _
    $region10: #{inference_low_forward.1} parent=5 // pred_check_branch
      %248 = sbr.rel (%p245) target = $region12
    $region11: #{inference_low_forward.1} parent=5 // pred_region
      %s249 = ssub.s32 %s15, 1
      // Predicated region
      $region13: #{inference_low_forward.1} parent=11 // pred_check
        %p250 = pneg %p62
      $region14: #{inference_low_forward.1} parent=11 // pred_check_branch
        %252 = sbr.rel (%p250) target = $region16
      $region15: #{inference_low_forward.1} parent=11 // pred_region
        _
      $region16: #{inference_low_forward.1} parent=11 // pred_fallthru
        _
      // Predicated region
      $region17: #{inference_low_forward.1} parent=11 // pred_check
        %p253 = pneg %p83
      $region18: #{inference_low_forward.1} parent=11 // pred_check_branch
        %255 = sbr.rel (%p253) target = $region20
      $region19: #{inference_low_forward.1} parent=11 // pred_region
        _
      $region20: #{inference_low_forward.1} parent=11 // pred_fallthru
        _
      // Predicated region
      $region21: #{inference_low_forward.1} parent=11 // pred_check
        %p256 = pneg %p104
      $region22: #{inference_low_forward.1} parent=11 // pred_check_branch
        %258 = sbr.rel (%p256) target = $region24
      $region23: #{inference_low_forward.1} parent=11 // pred_region
        _
      $region24: #{inference_low_forward.1} parent=11 // pred_fallthru
        _
      // Predicated region
      $region25: #{inference_low_forward.1} parent=11 // pred_check
        %p259 = pneg %p125
      $region26: #{inference_low_forward.1} parent=11 // pred_check_branch
        %261 = sbr.rel (%p259) target = $region28
      $region27: #{inference_low_forward.1} parent=11 // pred_region
        _
      $region28: #{inference_low_forward.1} parent=11 // pred_fallthru
        _
      // Predicated region
      $region29: #{inference_low_forward.1} parent=11 // pred_check
        %p262 = pneg %p146
      $region30: #{inference_low_forward.1} parent=11 // pred_check_branch
        %264 = sbr.rel (%p262) target = $region32
      $region31: #{inference_low_forward.1} parent=11 // pred_region
        _
      $region32: #{inference_low_forward.1} parent=11 // pred_fallthru
        _
      // Predicated region
      $region33: #{inference_low_forward.1} parent=11 // pred_check
        %p265 = pneg %p167
      $region34: #{inference_low_forward.1} parent=11 // pred_check_branch
        %267 = sbr.rel (%p265) target = $region36
      $region35: #{inference_low_forward.1} parent=11 // pred_region
        _
      $region36: #{inference_low_forward.1} parent=11 // pred_fallthru
        _
      // Predicated region
      $region37: #{inference_low_forward.1} parent=11 // pred_check
        %p268 = pneg %p188
      $region38: #{inference_low_forward.1} parent=11 // pred_check_branch
        %270 = sbr.rel (%p268) target = $region40
      $region39: #{inference_low_forward.1} parent=11 // pred_region
        _
      $region40: #{inference_low_forward.1} parent=11 // pred_fallthru
        _
      // Predicated region
      $region41: #{inference_low_forward.1} parent=11 // pred_check
        %p271 = pneg %p209
      $region42: #{inference_low_forward.1} parent=11 // pred_check_branch
        %273 = sbr.rel (%p271) target = $region44
      $region43: #{inference_low_forward.1} parent=11 // pred_region
        _
      $region44: #{inference_low_forward.1} parent=11 // pred_fallthru
        _
    $region12: #{inference_low_forward.1} parent=5 // pred_fallthru
      _
    %p274 = scmp.lt.s32.totalorder %s15, 2
    // Predicated region
    $region45: #{inference_low_forward.1} parent=5 // pred_check
      %p275 = pneg %p274
    $region46: #{inference_low_forward.1} parent=5 // pred_check_branch
      %277 = sbr.rel (%p275) target = $region48
    $region47: #{inference_low_forward.1} parent=5 // pred_region
      // Predicated region
      $region49: #{inference_low_forward.1} parent=47 // pred_check
        %p278 = pneg %p35
      $region50: #{inference_low_forward.1} parent=47 // pred_check_branch
        %280 = sbr.rel (%p278) target = $region52
      $region51: #{inference_low_forward.1} parent=47 // pred_region
        %p281 = scmp.lt.s32.totalorder %s15, 1
        %s282 = scalar_select %p281, %s15, 1
        %s283 = smul.addr %s282, 2
        %s284 = smul.addr %s283, 4
        %s285 = scalar_lea.vmem %s0, %s284
      $region52: #{inference_low_forward.1} parent=47 // pred_fallthru
        _
    $region48: #{inference_low_forward.1} parent=5 // pred_fallthru
      _
    %p286 = scmp.le.s32.totalorder 1, %s15
    %p287 = scmp.lt.s32.totalorder %s15, 3
    %p288 = pnand %p286, %p287
    %p289 = pneg %p288
    // Predicated region
    $region53: #{inference_low_forward.1} parent=5 // pred_check
      _
    $region54: #{inference_low_forward.1} parent=5 // pred_check_branch
      %291 = sbr.rel (%p288) target = $region56
    $region55: #{inference_low_forward.1} parent=5 // pred_region
      %s292 = ssub.s32 %s15, 1
      %p293 = scmp.lt.s32.totalorder %s20, 1
      %s294 = scalar_select %p293, %s20, 1
      %s295 = smul.addr %s294, 2
      %s296 = smul.addr %s295, 4
      %s297 = scalar_lea.vmem %s0, %s296
      %p298 = pneg %p41
      %p299 = pneg %p38
      %p300 = pneg %p62
      %p301 = pneg %p59
      %p302 = pneg %p83
      %p303 = pneg %p80
      %p304 = pneg %p104
      %p305 = pneg %p101
      %p306 = pneg %p125
      %p307 = pneg %p122
      %p308 = pneg %p146
      %p309 = pneg %p143
      %p310 = pneg %p167
      %p311 = pneg %p164
      %p312 = pneg %p188
      %p313 = pneg %p185
      %p314 = pneg %p209
      %p315 = pneg %p206
      %p316 = pneg %p235
      %p317 = pneg %p232
      %p318 = scmp.lt.s32.totalorder %s20, 1
      %s319 = scalar_select %p318, %s20, 1
      %s320 = smul.addr %s319, 2
      %s321 = smul.addr %s320, 4
      %s322 = scalar_lea.vmem %s9, %s321
      %p323 = scmp.lt.s32.totalorder %s20, 1
      %s324 = scalar_select %p323, %s20, 1
      %s325 = smul.addr %s324, 2
      %s326 = smul.addr %s325, 4
      %s327 = scalar_lea.vmem %s0, %s326
      %p328 = scmp.lt.s32.totalorder %s20, 1
      %s329 = scalar_select %p328, %s20, 1
      %s330 = smul.addr %s329, 2
      %s331 = smul.addr %s330, 4
      %s332 = scalar_lea.vmem %s9, %s331
      %v334 = vlaneseq
      %v335 = vand.u32 %v334, 127
      %v336 = vadd.s32 %v335, 128
      %vm337 = vcmp.lt.s32.totalorder %v335, 0
      %v338 = vsub.s32 0, %v335
      %v339 = vsel %vm337, %v338, %v335
      %v340 = vshrl.u32 %v339, 4
      %v341 = vand.u32 %v339, 15
      %v342 = vsub.s32 0, %v341
      %v343 = vsel %vm337, %v342, %v341
      %vm344 = vcmp.lt.s32.totalorder %v336, 0
      %v345 = vsub.s32 0, %v336
      %v346 = vsel %vm344, %v345, %v336
      %v347 = vshrl.u32 %v346, 4
      %v348 = vand.u32 %v346, 15
      %v349 = vsub.s32 0, %v348
      %v350 = vsel %vm344, %v349, %v348
      %vm351 = vcmp.ne.s32.totalorder %v343, 0
      %vm352 = vcmp.ne.s32.totalorder %v350, 0
      %vm353 = vcmp.lt.s32.totalorder %v343, 0
      %vm354 = vcmp.lt.s32.totalorder %v350, 0
      %vm355 = vmand %vm353, %vm351
      %vm356 = vmand %vm354, %vm352
      %v357 = vadd.s32 %v343, 16
      %v358 = vadd.s32 %v350, 16
      %v359 = vsel %vm355, %v357, %v343
      %v360 = vsel %vm356, %v358, %v350
      %vm361 = vcmp.ge.s32.totalorder %v359, 1
      %vm362 = vcmp.ge.s32.totalorder %v360, 1
      %vm363 = vcmp.le.s32.totalorder %v359, 14
      %vm364 = vcmp.le.s32.totalorder %v360, 14
      %v365 = vld [vmem:[%s327] sm:$0xff]
      %v366 = vunpack.c.l.bf16 %v365
      %v367 = vunpack.c.h.bf16 %v365
      %370 = vrot.lane.b32.xlu0 %v366, 17
      %v371 = vpop.permute.xlu0 %370
      %372 = vrot.lane.b32.xlu0 %v367, 17
      %v373 = vpop.permute.xlu0 %372
      %vm374 = vcmask 138240
      %v375 = vsel %vm374, %v371, %v373
      %v378 = vsel %vm374, 0.0, %v371
      %v379 = vsel %vm361, 1, 0
      %v380 = vsel %vm362, 1, 0
      %vm381 = vcmp.eq.s32.totalorder %v379, 1
      %vm382 = vcmp.eq.s32.totalorder %v380, 1
      %v383 = vsel %vm381, %v378, 0.0
      %v384 = vsel %vm382, %v375, 0.0
      %v385 = vpack.c.bf16 %v383, %v383
      %v386 = vpack.c.bf16 %v384, %v384
      %v389 = vunpack.c.l.b16 %v385
      %v390 = vunpack.c.l.b16 %v386
      %v391 = vpack.c.b16 %v390, %v389
      %393 = vst [vmem:[#allocation2] sm:$0xff] %v391
      %394 = vrot.lane.b32.xlu0 %v366, 16
      %v395 = vpop.permute.xlu0 %394
      %396 = vrot.lane.b32.xlu0 %v367, 16
      %v397 = vpop.permute.xlu0 %396
      %vm398 = vcmask 130048
      %v399 = vsel %vm398, %v395, %v397
      %v402 = vsel %vm398, 0.0, %v395
      %v403 = vpack.c.bf16 %v402, %v402
      %v404 = vpack.c.bf16 %v399, %v399
      %v407 = vunpack.c.l.b16 %v403
      %v408 = vunpack.c.l.b16 %v404
      %v409 = vpack.c.b16 %v408, %v407
      %411 = vst [vmem:[#allocation2 + $0x8] sm:$0xff] %v409
      %412 = vrot.lane.b32.xlu0 %v366, 15
      %v413 = vpop.permute.xlu0 %412
      %414 = vrot.lane.b32.xlu0 %v367, 15
      %v415 = vpop.permute.xlu0 %414
      %vm416 = vcmask 121856
      %v417 = vsel %vm416, %v413, %v415
      %v420 = vsel %vm416, 0.0, %v413
      %v421 = vsel %vm363, 1, 0
      %v422 = vsel %vm364, 1, 0
      %vm423 = vcmp.eq.s32.totalorder %v421, 1
      %vm424 = vcmp.eq.s32.totalorder %v422, 1
      %v425 = vsel %vm423, %v420, 0.0
      %v426 = vsel %vm424, %v417, 0.0
      %v427 = vpack.c.bf16 %v425, %v425
      %v428 = vpack.c.bf16 %v426, %v426
      %v431 = vunpack.c.l.b16 %v427
      %v432 = vunpack.c.l.b16 %v428
      %v433 = vpack.c.b16 %v432, %v431
      %435 = vst [vmem:[#allocation2 + $0x10] sm:$0xff] %v433
      %436 = vrot.lane.b32.xlu0 %v366, 1
      %v437 = vpop.permute.xlu0 %436
      %438 = vrot.lane.b32.xlu0 %v367, 1
      %v439 = vpop.permute.xlu0 %438
      %vm440 = vcmask 7168
      %v441 = vsel %vm440, %v437, %v439
      %v444 = vsel %vm440, 0.0, %v437
      %v445 = vsel %vm381, %v444, 0.0
      %v446 = vsel %vm382, %v441, 0.0
      %v447 = vpack.c.bf16 %v445, %v445
      %v448 = vpack.c.bf16 %v446, %v446
      %v451 = vunpack.c.l.b16 %v447
      %v452 = vunpack.c.l.b16 %v448
      %v453 = vpack.c.b16 %v452, %v451
      %455 = vst [vmem:[#allocation2 + $0x18] sm:$0xff] %v453
      %456 = vst [vmem:[#allocation2 + $0x20] sm:$0xff] %v365
      %457 = vrot.lane.b32.xlu0 %v366, 127
      %v458 = vpop.permute.xlu0 %457
      %459 = vrot.lane.b32.xlu0 %v367, 127
      %v460 = vpop.permute.xlu0 %459
      %vm461 = vcmask 1039360
      %v462 = vsel %vm461, %v458, %v460
      %v465 = vsel %vm461, %v460, 0.0
      %v466 = vsel %vm423, %v462, 0.0
      %v467 = vsel %vm424, %v465, 0.0
      %v468 = vpack.c.bf16 %v466, %v466
      %v469 = vpack.c.bf16 %v467, %v467
      %v472 = vunpack.c.l.b16 %v468
      %v473 = vunpack.c.l.b16 %v469
      %v474 = vpack.c.b16 %v473, %v472
      %476 = vst [vmem:[#allocation2 + $0x28] sm:$0xff] %v474
      %477 = vrot.lane.b32.xlu0 %v366, 113
      %v478 = vpop.permute.xlu0 %477
      %479 = vrot.lane.b32.xlu0 %v367, 113
      %v480 = vpop.permute.xlu0 %479
      %vm481 = vcmask 924672
      %v482 = vsel %vm481, %v478, %v480
      %v485 = vsel %vm481, %v480, 0.0
      %v486 = vsel %vm381, %v482, 0.0
      %v487 = vsel %vm382, %v485, 0.0
      %v488 = vpack.c.bf16 %v486, %v486
      %v489 = vpack.c.bf16 %v487, %v487
      %v492 = vunpack.c.l.b16 %v488
      %v493 = vunpack.c.l.b16 %v489
      %v494 = vpack.c.b16 %v493, %v492
      %496 = vst [vmem:[#allocation2 + $0x30] sm:$0xff] %v494
      %497 = vrot.lane.b32.xlu0 %v366, 112
      %v498 = vpop.permute.xlu0 %497
      %499 = vrot.lane.b32.xlu0 %v367, 112
      %v500 = vpop.permute.xlu0 %499
      %vm501 = vcmask 916480
      %v502 = vsel %vm501, %v498, %v500
      %v505 = vsel %vm501, %v500, 0.0
      %v506 = vpack.c.bf16 %v502, %v502
      %v507 = vpack.c.bf16 %v505, %v505
      %v510 = vunpack.c.l.b16 %v506
      %v511 = vunpack.c.l.b16 %v507
      %v512 = vpack.c.b16 %v511, %v510
      %514 = vst [vmem:[#allocation2 + $0x38] sm:$0xff] %v512
      %515 = vrot.lane.b32.xlu0 %v366, 111
      %v516 = vpop.permute.xlu0 %515
      %517 = vrot.lane.b32.xlu0 %v367, 111
      %v518 = vpop.permute.xlu0 %517
      %vm519 = vcmask 908288
      %v520 = vsel %vm519, %v516, %v518
      %v523 = vsel %vm519, %v518, 0.0
      %v524 = vsel %vm423, %v520, 0.0
      %v525 = vsel %vm424, %v523, 0.0
      %v526 = vpack.c.bf16 %v524, %v524
      %v527 = vpack.c.bf16 %v525, %v525
      %v530 = vunpack.c.l.b16 %v526
      %v531 = vunpack.c.l.b16 %v527
      %v532 = vpack.c.b16 %v531, %v530
      %534 = vst [vmem:[#allocation2 + $0x40] sm:$0xff] %v532
      %v535 = vld [vmem:[%s1] sm:$0xf]
      %v536 = vld [vmem:[%s1 + $0x4] sm:$0xf]
      %v537 = vld [vmem:[%s1 + $0x8] sm:$0xf]
      %v538 = vld [vmem:[%s1 + $0xc] sm:$0xf]
      %v539 = vld [vmem:[#allocation2] sm:$0xff]
      %v540 = vld [vmem:[#allocation2 + $0x8] sm:$0xff]
      %v541 = vld [vmem:[#allocation2 + $0x10] sm:$0xff]
      %v542 = vld [vmem:[#allocation2 + $0x18] sm:$0xff]
      %v543 = vld [vmem:[#allocation2 + $0x20] sm:$0xff]
      %v544 = vld [vmem:[#allocation2 + $0x28] sm:$0xff]
      %v545 = vld [vmem:[#allocation2 + $0x30] sm:$0xff]
      %v546 = vld [vmem:[#allocation2 + $0x38] sm:$0xff]
      %v547 = vld [vmem:[#allocation2 + $0x40] sm:$0xff]
      %v548 = vld [vmem:[%s2] sm:$0xff]
      %v549 = vld [vmem:[%s2 + $0x8] sm:$0xff]
      %v550 = vld [vmem:[%s2 + $0x10] sm:$0xff]
      %v551 = vld [vmem:[%s2 + $0x18] sm:$0xff]
      %553 = vset.pattern.permute.xlu0 0
      %554 = vperm.xlu0 %553, %v548
      %v555 = vpop.permute.xlu0 %554
      %558 = vset.pattern.permute.xlu0 0
      %559 = vperm.xlu0 %558, %v549
      %v560 = vpop.permute.xlu0 %559
      %563 = vset.pattern.permute.xlu0 0
      %564 = vperm.xlu0 %563, %v550
      %v565 = vpop.permute.xlu0 %564
      %568 = vset.pattern.permute.xlu0 0
      %569 = vperm.xlu0 %568, %v551
      %v570 = vpop.permute.xlu0 %569
      %v576 = vunpack.c.l.b16 %v535
      %v577 = vunpack.c.l.b16 %v536
      %v578 = vunpack.c.l.b16 %v537
      %v579 = vunpack.c.l.b16 %v538
      %v580 = vpack.c.b16 %v577, %v576
      %v581 = vpack.c.b16 %v579, %v578
      %v591 = vunpack.c.l.b16 %v539
      %v592 = vunpack.c.h.b16 %v539
      %v593 = vunpack.c.l.b16 %v540
      %v594 = vunpack.c.h.b16 %v540
      %v595 = vunpack.c.l.b16 %v541
      %v596 = vunpack.c.h.b16 %v541
      %v597 = vunpack.c.l.b16 %v542
      %v598 = vunpack.c.h.b16 %v542
      %v599 = vunpack.c.l.b16 %v543
      %v600 = vunpack.c.h.b16 %v543
      %v601 = vunpack.c.l.b16 %v544
      %v602 = vunpack.c.h.b16 %v544
      %v603 = vunpack.c.l.b16 %v545
      %v604 = vunpack.c.h.b16 %v545
      %v605 = vunpack.c.l.b16 %v546
      %v606 = vunpack.c.h.b16 %v546
      %v607 = vunpack.c.l.b16 %v547
      %v608 = vunpack.c.h.b16 %v547
      %v609 = vpack.c.b16 %v593, %v591
      %v610 = vpack.c.b16 %v594, %v592
      %v611 = vpack.c.b16 %v597, %v595
      %v612 = vpack.c.b16 %v598, %v596
      %v613 = vpack.c.b16 %v601, %v599
      %v614 = vpack.c.b16 %v602, %v600
      %v615 = vpack.c.b16 %v605, %v603
      %v616 = vpack.c.b16 %v606, %v604
      %v617 = vpack.c.b16 %v607, %v607
      %v618 = vpack.c.b16 %v608, %v608
      %vm627 = vcmask 588800
      %v629 = vsel %vm627, %v580, 0
      %v632 = vsel %vm627, %v581, 0
      %vm634 = vcmask 1043456
      %v636 = vsel %vm634, %v617, 0
      %v639 = vsel %vm634, %v618, 0
      %641 = vmatprep.subr.bf16.mxu0 %v610
      %642 = vmatpush1.bf16.msra.mxu0 %v609
      %643 = vmatprep.subr.bf16.mxu0 %v612
      %644 = vmatpush1.bf16.msra.mxu0 %v611
      %645 = vmatprep.subr.bf16.mxu0 %v614
      %646 = vmatpush1.bf16.msra.mxu0 %v613
      %647 = vmatprep.subr.bf16.mxu0 %v616
      %648 = vmatpush1.bf16.msra.mxu0 %v615
      %649 = vmatprep.subr.bf16.mxu0 %v639
      %650 = vmatpush1.bf16.msra.mxu0 %v636
      %651 = vmatprep.subr.bf16.mxu0 0
      %652 = vmatpush1.bf16.msra.mxu0 0
      %653 = vmatprep.subr.bf16.mxu0 0
      %654 = vmatpush1.bf16.msra.mxu0 0
      %655 = vmatprep.subr.bf16.mxu0 0
      %656 = vmatpush1.bf16.msra.mxu0 0
      %657 = vmatprep.subr.bf16.mxu0 0
      %658 = vmatpush1.bf16.msra.mxu0 0
      %659 = vmatprep.subr.bf16.mxu0 0
      %660 = vmatpush1.bf16.msra.mxu0 0
      %661 = vmatprep.subr.bf16.mxu0 0
      %662 = vmatpush1.bf16.msra.mxu0 0
      %663 = vmatprep.subr.bf16.mxu0 0
      %664 = vmatpush1.bf16.msra.mxu0 0
      %665 = vmatprep.subr.bf16.mxu0 0
      %666 = vmatpush1.bf16.msra.mxu0 0
      %667 = vmatprep.subr.bf16.mxu0 0
      %668 = vmatpush1.bf16.msra.mxu0 0
      %669 = vmatprep.subr.bf16.mxu0 0
      %670 = vmatpush1.bf16.msra.mxu0 0
      %671 = vmatprep.subr.bf16.mxu0 0
      %672 = vmatpush1.bf16.msra.mxu0 0
      %673 = vmatprep.mubr.bf16.mxu0 0
      %674 = vmatmul.mubr.bf16.gmra.mrb[0].mxu0 %v629
      %v675 = vpop.f32.mrb[0].mxu0
      %v676 = vadd.f32 %v555, %v675
      %v677 = vpop.f32.mrb[0].mxu0
      %v678 = vadd.f32 %v555, %v677
      %v679 = vpop.f32.mrb[0].mxu0
      %v680 = vadd.f32 %v560, %v679
      %v681 = vpop.f32.mrb[0].mxu0
      %v682 = vadd.f32 %v560, %v681
      %683 = vmatprep.mubr.bf16.mxu0 0
      %684 = vmatmul.mubr.bf16.gmra.mrb[0].mxu0 %v632
      %v685 = vpop.f32.mrb[0].mxu0
      %v686 = vadd.f32 %v565, %v685
      %v687 = vpop.f32.mrb[0].mxu0
      %v688 = vadd.f32 %v565, %v687
      %v689 = vpop.f32.mrb[0].mxu0
      %v690 = vadd.f32 %v570, %v689
      %v691 = vpop.f32.mrb[0].mxu0
      %v692 = vadd.f32 %v570, %v691
      %693 = vdwg.mxu0
      %vm694 = vcmp.ge.f32.partialorder %v676, 0.0
      %vm695 = vcmp.ge.f32.partialorder %v678, 0.0
      %vm696 = vcmp.ge.f32.partialorder %v680, 0.0
      %vm697 = vcmp.ge.f32.partialorder %v682, 0.0
      %vm698 = vcmp.ge.f32.partialorder %v686, 0.0
      %vm699 = vcmp.ge.f32.partialorder %v688, 0.0
      %vm700 = vcmp.ge.f32.partialorder %v690, 0.0
      %vm701 = vcmp.ge.f32.partialorder %v692, 0.0
      %v702 = vmul.f32 %v676, 0.2
      %v703 = vmul.f32 %v678, 0.2
      %v704 = vmul.f32 %v680, 0.2
      %v705 = vmul.f32 %v682, 0.2
      %v706 = vmul.f32 %v686, 0.2
      %v707 = vmul.f32 %v688, 0.2
      %v708 = vmul.f32 %v690, 0.2
      %v709 = vmul.f32 %v692, 0.2
      %v710 = vsel %vm694, %v676, %v702
      %v711 = vsel %vm695, %v678, %v703
      %v712 = vsel %vm696, %v680, %v704
      %v713 = vsel %vm697, %v682, %v705
      %v714 = vsel %vm698, %v686, %v706
      %v715 = vsel %vm699, %v688, %v707
      %v716 = vsel %vm700, %v690, %v708
      %v717 = vsel %vm701, %v692, %v709
      %718 = vst [vmem:[#allocation4] sm:$0xff] %v710
      %719 = vst [vmem:[#allocation4 + $0x8] sm:$0xff] %v711
      %720 = vst [vmem:[#allocation4 + $0x10] sm:$0xff] %v712
      %721 = vst [vmem:[#allocation4 + $0x18] sm:$0xff] %v713
      %722 = vst [vmem:[#allocation4 + $0x20] sm:$0xff] %v714
      %723 = vst [vmem:[#allocation4 + $0x28] sm:$0xff] %v715
      %724 = vst [vmem:[#allocation4 + $0x30] sm:$0xff] %v716
      %725 = vst [vmem:[#allocation4 + $0x38] sm:$0xff] %v717
      %v726 = vld [vmem:[#allocation4] sm:$0xff]
      %v727 = vld [vmem:[#allocation4 + $0x8] sm:$0xff]
      %v728 = vld [vmem:[#allocation4 + $0x10] sm:$0xff]
      %v729 = vld [vmem:[#allocation4 + $0x18] sm:$0xff]
      %v730 = vld [vmem:[#allocation4 + $0x20] sm:$0xff]
      %v731 = vld [vmem:[#allocation4 + $0x28] sm:$0xff]
      %v732 = vld [vmem:[#allocation4 + $0x30] sm:$0xff]
      %v733 = vld [vmem:[#allocation4 + $0x38] sm:$0xff]
      %742 = vrot.lane.b32.xlu0 %v726, 17
      %v743 = vpop.permute.xlu0 %742
      %744 = vrot.lane.b32.xlu0 %v727, 17
      %v745 = vpop.permute.xlu0 %744
      %746 = vrot.lane.b32.xlu0 %v728, 17
      %v747 = vpop.permute.xlu0 %746
      %748 = vrot.lane.b32.xlu0 %v729, 17
      %v749 = vpop.permute.xlu0 %748
      %750 = vrot.lane.b32.xlu0 %v730, 17
      %v751 = vpop.permute.xlu0 %750
      %752 = vrot.lane.b32.xlu0 %v731, 17
      %v753 = vpop.permute.xlu0 %752
      %754 = vrot.lane.b32.xlu0 %v732, 17
      %v755 = vpop.permute.xlu0 %754
      %756 = vrot.lane.b32.xlu0 %v733, 17
      %v757 = vpop.permute.xlu0 %756
      %v758 = vsel %vm374, %v743, %v745
      %v759 = vsel %vm374, %v747, %v749
      %v760 = vsel %vm374, %v751, %v753
      %v761 = vsel %vm374, %v755, %v757
      %v770 = vsel %vm374, 0.0, %v743
      %v771 = vsel %vm374, 0.0, %v747
      %v772 = vsel %vm374, 0.0, %v751
      %v773 = vsel %vm374, 0.0, %v755
      %v774 = vsel %vm381, %v770, 0.0
      %v775 = vsel %vm382, %v758, 0.0
      %v776 = vsel %vm381, %v771, 0.0
      %v777 = vsel %vm382, %v759, 0.0
      %v778 = vsel %vm381, %v772, 0.0
      %v779 = vsel %vm382, %v760, 0.0
      %v780 = vsel %vm381, %v773, 0.0
      %v781 = vsel %vm382, %v761, 0.0
      %v782 = vpack.c.bf16 %v776, %v774
      %v783 = vpack.c.bf16 %v777, %v775
      %v784 = vpack.c.bf16 %v780, %v778
      %v785 = vpack.c.bf16 %v781, %v779
      %786 = vst [vmem:[#allocation3] sm:$0xff] %v782
      %787 = vst [vmem:[#allocation3 + $0x8] sm:$0xff] %v783
      %788 = vst [vmem:[#allocation3 + $0x10] sm:$0xff] %v784
      %789 = vst [vmem:[#allocation3 + $0x18] sm:$0xff] %v785
      %790 = vrot.lane.b32.xlu0 %v726, 16
      %v791 = vpop.permute.xlu0 %790
      %792 = vrot.lane.b32.xlu0 %v727, 16
      %v793 = vpop.permute.xlu0 %792
      %794 = vrot.lane.b32.xlu0 %v728, 16
      %v795 = vpop.permute.xlu0 %794
      %796 = vrot.lane.b32.xlu0 %v729, 16
      %v797 = vpop.permute.xlu0 %796
      %798 = vrot.lane.b32.xlu0 %v730, 16
      %v799 = vpop.permute.xlu0 %798
      %800 = vrot.lane.b32.xlu0 %v731, 16
      %v801 = vpop.permute.xlu0 %800
      %802 = vrot.lane.b32.xlu0 %v732, 16
      %v803 = vpop.permute.xlu0 %802
      %804 = vrot.lane.b32.xlu0 %v733, 16
      %v805 = vpop.permute.xlu0 %804
      %v806 = vsel %vm398, %v791, %v793
      %v807 = vsel %vm398, %v795, %v797
      %v808 = vsel %vm398, %v799, %v801
      %v809 = vsel %vm398, %v803, %v805
      %v818 = vsel %vm398, 0.0, %v791
      %v819 = vsel %vm398, 0.0, %v795
      %v820 = vsel %vm398, 0.0, %v799
      %v821 = vsel %vm398, 0.0, %v803
      %v822 = vpack.c.bf16 %v819, %v818
      %v823 = vpack.c.bf16 %v807, %v806
      %v824 = vpack.c.bf16 %v821, %v820
      %v825 = vpack.c.bf16 %v809, %v808
      %826 = vst [vmem:[#allocation3 + $0x20] sm:$0xff] %v822
      %827 = vst [vmem:[#allocation3 + $0x28] sm:$0xff] %v823
      %828 = vst [vmem:[#allocation3 + $0x30] sm:$0xff] %v824
      %829 = vst [vmem:[#allocation3 + $0x38] sm:$0xff] %v825
      %830 = vrot.lane.b32.xlu0 %v726, 15
      %v831 = vpop.permute.xlu0 %830
      %832 = vrot.lane.b32.xlu0 %v727, 15
      %v833 = vpop.permute.xlu0 %832
      %834 = vrot.lane.b32.xlu0 %v728, 15
      %v835 = vpop.permute.xlu0 %834
      %836 = vrot.lane.b32.xlu0 %v729, 15
      %v837 = vpop.permute.xlu0 %836
      %838 = vrot.lane.b32.xlu0 %v730, 15
      %v839 = vpop.permute.xlu0 %838
      %840 = vrot.lane.b32.xlu0 %v731, 15
      %v841 = vpop.permute.xlu0 %840
      %842 = vrot.lane.b32.xlu0 %v732, 15
      %v843 = vpop.permute.xlu0 %842
      %844 = vrot.lane.b32.xlu0 %v733, 15
      %v845 = vpop.permute.xlu0 %844
      %v846 = vsel %vm416, %v831, %v833
      %v847 = vsel %vm416, %v835, %v837
      %v848 = vsel %vm416, %v839, %v841
      %v849 = vsel %vm416, %v843, %v845
      %v858 = vsel %vm416, 0.0, %v831
      %v859 = vsel %vm416, 0.0, %v835
      %v860 = vsel %vm416, 0.0, %v839
      %v861 = vsel %vm416, 0.0, %v843
      %v862 = vsel %vm423, %v858, 0.0
      %v863 = vsel %vm424, %v846, 0.0
      %v864 = vsel %vm423, %v859, 0.0
      %v865 = vsel %vm424, %v847, 0.0
      %v866 = vsel %vm423, %v860, 0.0
      %v867 = vsel %vm424, %v848, 0.0
      %v868 = vsel %vm423, %v861, 0.0
      %v869 = vsel %vm424, %v849, 0.0
      %v870 = vpack.c.bf16 %v864, %v862
      %v871 = vpack.c.bf16 %v865, %v863
      %v872 = vpack.c.bf16 %v868, %v866
      %v873 = vpack.c.bf16 %v869, %v867
      %874 = vst [vmem:[#allocation3 + $0x40] sm:$0xff] %v870
      %875 = vst [vmem:[#allocation3 + $0x48] sm:$0xff] %v871
      %876 = vst [vmem:[#allocation3 + $0x50] sm:$0xff] %v872
      %877 = vst [vmem:[#allocation3 + $0x58] sm:$0xff] %v873
      %878 = vrot.lane.b32.xlu0 %v726, 1
      %v879 = vpop.permute.xlu0 %878
      %880 = vrot.lane.b32.xlu0 %v727, 1
      %v881 = vpop.permute.xlu0 %880
      %882 = vrot.lane.b32.xlu0 %v728, 1
      %v883 = vpop.permute.xlu0 %882
      %884 = vrot.lane.b32.xlu0 %v729, 1
      %v885 = vpop.permute.xlu0 %884
      %886 = vrot.lane.b32.xlu0 %v730, 1
      %v887 = vpop.permute.xlu0 %886
      %888 = vrot.lane.b32.xlu0 %v731, 1
      %v889 = vpop.permute.xlu0 %888
      %890 = vrot.lane.b32.xlu0 %v732, 1
      %v891 = vpop.permute.xlu0 %890
      %892 = vrot.lane.b32.xlu0 %v733, 1
      %v893 = vpop.permute.xlu0 %892
      %v894 = vsel %vm440, %v879, %v881
      %v895 = vsel %vm440, %v883, %v885
      %v896 = vsel %vm440, %v887, %v889
      %v897 = vsel %vm440, %v891, %v893
      %v906 = vsel %vm440, 0.0, %v879
      %v907 = vsel %vm440, 0.0, %v883
      %v908 = vsel %vm440, 0.0, %v887
      %v909 = vsel %vm440, 0.0, %v891
      %v910 = vsel %vm381, %v906, 0.0
      %v911 = vsel %vm382, %v894, 0.0
      %v912 = vsel %vm381, %v907, 0.0
      %v913 = vsel %vm382, %v895, 0.0
      %v914 = vsel %vm381, %v908, 0.0
      %v915 = vsel %vm382, %v896, 0.0
      %v916 = vsel %vm381, %v909, 0.0
      %v917 = vsel %vm382, %v897, 0.0
      %v918 = vpack.c.bf16 %v912, %v910
      %v919 = vpack.c.bf16 %v913, %v911
      %v920 = vpack.c.bf16 %v916, %v914
      %v921 = vpack.c.bf16 %v917, %v915
      %922 = vst [vmem:[#allocation3 + $0x60] sm:$0xff] %v918
      %923 = vst [vmem:[#allocation3 + $0x68] sm:$0xff] %v919
      %924 = vst [vmem:[#allocation3 + $0x70] sm:$0xff] %v920
      %925 = vst [vmem:[#allocation3 + $0x78] sm:$0xff] %v921
      %v926 = vpack.c.bf16 %v728, %v726
      %v927 = vpack.c.bf16 %v729, %v727
      %v928 = vpack.c.bf16 %v732, %v730
      %v929 = vpack.c.bf16 %v733, %v731
      %930 = vst [vmem:[#allocation3 + $0x80] sm:$0xff] %v926
      %931 = vst [vmem:[#allocation3 + $0x88] sm:$0xff] %v927
      %932 = vst [vmem:[#allocation3 + $0x90] sm:$0xff] %v928
      %933 = vst [vmem:[#allocation3 + $0x98] sm:$0xff] %v929
      %934 = vrot.lane.b32.xlu0 %v726, 127
      %v935 = vpop.permute.xlu0 %934
      %936 = vrot.lane.b32.xlu0 %v727, 127
      %v937 = vpop.permute.xlu0 %936
      %938 = vrot.lane.b32.xlu0 %v728, 127
      %v939 = vpop.permute.xlu0 %938
      %940 = vrot.lane.b32.xlu0 %v729, 127
      %v941 = vpop.permute.xlu0 %940
      %942 = vrot.lane.b32.xlu0 %v730, 127
      %v943 = vpop.permute.xlu0 %942
      %944 = vrot.lane.b32.xlu0 %v731, 127
      %v945 = vpop.permute.xlu0 %944
      %946 = vrot.lane.b32.xlu0 %v732, 127
      %v947 = vpop.permute.xlu0 %946
      %948 = vrot.lane.b32.xlu0 %v733, 127
      %v949 = vpop.permute.xlu0 %948
      %v950 = vsel %vm461, %v935, %v937
      %v951 = vsel %vm461, %v939, %v941
      %v952 = vsel %vm461, %v943, %v945
      %v953 = vsel %vm461, %v947, %v949
      %v962 = vsel %vm461, %v937, 0.0
      %v963 = vsel %vm461, %v941, 0.0
      %v964 = vsel %vm461, %v945, 0.0
      %v965 = vsel %vm461, %v949, 0.0
      %v966 = vsel %vm423, %v950, 0.0
      %v967 = vsel %vm424, %v962, 0.0
      %v968 = vsel %vm423, %v951, 0.0
      %v969 = vsel %vm424, %v963, 0.0
      %v970 = vsel %vm423, %v952, 0.0
      %v971 = vsel %vm424, %v964, 0.0
      %v972 = vsel %vm423, %v953, 0.0
      %v973 = vsel %vm424, %v965, 0.0
      %v974 = vpack.c.bf16 %v968, %v966
      %v975 = vpack.c.bf16 %v969, %v967
      %v976 = vpack.c.bf16 %v972, %v970
      %v977 = vpack.c.bf16 %v973, %v971
      %978 = vst [vmem:[#allocation3 + $0xa0] sm:$0xff] %v974
      %979 = vst [vmem:[#allocation3 + $0xa8] sm:$0xff] %v975
      %980 = vst [vmem:[#allocation3 + $0xb0] sm:$0xff] %v976
      %981 = vst [vmem:[#allocation3 + $0xb8] sm:$0xff] %v977
      %982 = vrot.lane.b32.xlu0 %v726, 113
      %v983 = vpop.permute.xlu0 %982
      %984 = vrot.lane.b32.xlu0 %v727, 113
      %v985 = vpop.permute.xlu0 %984
      %986 = vrot.lane.b32.xlu0 %v728, 113
      %v987 = vpop.permute.xlu0 %986
      %988 = vrot.lane.b32.xlu0 %v729, 113
      %v989 = vpop.permute.xlu0 %988
      %990 = vrot.lane.b32.xlu0 %v730, 113
      %v991 = vpop.permute.xlu0 %990
      %992 = vrot.lane.b32.xlu0 %v731, 113
      %v993 = vpop.permute.xlu0 %992
      %994 = vrot.lane.b32.xlu0 %v732, 113
      %v995 = vpop.permute.xlu0 %994
      %996 = vrot.lane.b32.xlu0 %v733, 113
      %v997 = vpop.permute.xlu0 %996
      %v998 = vsel %vm481, %v983, %v985
      %v999 = vsel %vm481, %v987, %v989
      %v1000 = vsel %vm481, %v991, %v993
      %v1001 = vsel %vm481, %v995, %v997
      %v1010 = vsel %vm481, %v985, 0.0
      %v1011 = vsel %vm481, %v989, 0.0
      %v1012 = vsel %vm481, %v993, 0.0
      %v1013 = vsel %vm481, %v997, 0.0
      %v1014 = vsel %vm381, %v998, 0.0
      %v1015 = vsel %vm382, %v1010, 0.0
      %v1016 = vsel %vm381, %v999, 0.0
      %v1017 = vsel %vm382, %v1011, 0.0
      %v1018 = vsel %vm381, %v1000, 0.0
      %v1019 = vsel %vm382, %v1012, 0.0
      %v1020 = vsel %vm381, %v1001, 0.0
      %v1021 = vsel %vm382, %v1013, 0.0
      %v1022 = vpack.c.bf16 %v1016, %v1014
      %v1023 = vpack.c.bf16 %v1017, %v1015
      %v1024 = vpack.c.bf16 %v1020, %v1018
      %v1025 = vpack.c.bf16 %v1021, %v1019
      %1026 = vst [vmem:[#allocation3 + $0xc0] sm:$0xff] %v1022
      %1027 = vst [vmem:[#allocation3 + $0xc8] sm:$0xff] %v1023
      %1028 = vst [vmem:[#allocation3 + $0xd0] sm:$0xff] %v1024
      %1029 = vst [vmem:[#allocation3 + $0xd8] sm:$0xff] %v1025
      %1030 = vrot.lane.b32.xlu0 %v726, 112
      %v1031 = vpop.permute.xlu0 %1030
      %1032 = vrot.lane.b32.xlu0 %v727, 112
      %v1033 = vpop.permute.xlu0 %1032
      %1034 = vrot.lane.b32.xlu0 %v728, 112
      %v1035 = vpop.permute.xlu0 %1034
      %1036 = vrot.lane.b32.xlu0 %v729, 112
      %v1037 = vpop.permute.xlu0 %1036
      %1038 = vrot.lane.b32.xlu0 %v730, 112
      %v1039 = vpop.permute.xlu0 %1038
      %1040 = vrot.lane.b32.xlu0 %v731, 112
      %v1041 = vpop.permute.xlu0 %1040
      %1042 = vrot.lane.b32.xlu0 %v732, 112
      %v1043 = vpop.permute.xlu0 %1042
      %1044 = vrot.lane.b32.xlu0 %v733, 112
      %v1045 = vpop.permute.xlu0 %1044
      %v1046 = vsel %vm501, %v1031, %v1033
      %v1047 = vsel %vm501, %v1035, %v1037
      %v1048 = vsel %vm501, %v1039, %v1041
      %v1049 = vsel %vm501, %v1043, %v1045
      %v1058 = vsel %vm501, %v1033, 0.0
      %v1059 = vsel %vm501, %v1037, 0.0
      %v1060 = vsel %vm501, %v1041, 0.0
      %v1061 = vsel %vm501, %v1045, 0.0
      %v1062 = vpack.c.bf16 %v1047, %v1046
      %v1063 = vpack.c.bf16 %v1059, %v1058
      %v1064 = vpack.c.bf16 %v1049, %v1048
      %v1065 = vpack.c.bf16 %v1061, %v1060
      %1066 = vst [vmem:[#allocation3 + $0xe0] sm:$0xff] %v1062
      %1067 = vst [vmem:[#allocation3 + $0xe8] sm:$0xff] %v1063
      %1068 = vst [vmem:[#allocation3 + $0xf0] sm:$0xff] %v1064
      %1069 = vst [vmem:[#allocation3 + $0xf8] sm:$0xff] %v1065
      %1070 = vrot.lane.b32.xlu0 %v726, 111
      %v1071 = vpop.permute.xlu0 %1070
      %1072 = vrot.lane.b32.xlu0 %v727, 111
      %v1073 = vpop.permute.xlu0 %1072
      %1074 = vrot.lane.b32.xlu0 %v728, 111
      %v1075 = vpop.permute.xlu0 %1074
      %1076 = vrot.lane.b32.xlu0 %v729, 111
      %v1077 = vpop.permute.xlu0 %1076
      %1078 = vrot.lane.b32.xlu0 %v730, 111
      %v1079 = vpop.permute.xlu0 %1078
      %1080 = vrot.lane.b32.xlu0 %v731, 111
      %v1081 = vpop.permute.xlu0 %1080
      %1082 = vrot.lane.b32.xlu0 %v732, 111
      %v1083 = vpop.permute.xlu0 %1082
      %1084 = vrot.lane.b32.xlu0 %v733, 111
      %v1085 = vpop.permute.xlu0 %1084
      %v1086 = vsel %vm519, %v1071, %v1073
      %v1087 = vsel %vm519, %v1075, %v1077
      %v1088 = vsel %vm519, %v1079, %v1081
      %v1089 = vsel %vm519, %v1083, %v1085
      %v1098 = vsel %vm519, %v1073, 0.0
      %v1099 = vsel %vm519, %v1077, 0.0
      %v1100 = vsel %vm519, %v1081, 0.0
      %v1101 = vsel %vm519, %v1085, 0.0
      %v1102 = vsel %vm423, %v1086, 0.0
      %v1103 = vsel %vm424, %v1098, 0.0
      %v1104 = vsel %vm423, %v1087, 0.0
      %v1105 = vsel %vm424, %v1099, 0.0
      %v1106 = vsel %vm423, %v1088, 0.0
      %v1107 = vsel %vm424, %v1100, 0.0
      %v1108 = vsel %vm423, %v1089, 0.0
      %v1109 = vsel %vm424, %v1101, 0.0
      %v1110 = vpack.c.bf16 %v1104, %v1102
      %v1111 = vpack.c.bf16 %v1105, %v1103
      %v1112 = vpack.c.bf16 %v1108, %v1106
      %v1113 = vpack.c.bf16 %v1109, %v1107
      %1114 = vst [vmem:[#allocation3 + $0x100] sm:$0xff] %v1110
      %1115 = vst [vmem:[#allocation3 + $0x108] sm:$0xff] %v1111
      %1116 = vst [vmem:[#allocation3 + $0x110] sm:$0xff] %v1112
      %1117 = vst [vmem:[#allocation3 + $0x118] sm:$0xff] %v1113
      %v1118 = vld [vmem:[%s3] sm:$0xff]
      %v1119 = vld [vmem:[%s3 + $0x8] sm:$0xf]
      %v1120 = vld [vmem:[%s3 + $0xc] sm:$0xff]
      %v1121 = vld [vmem:[%s3 + $0x14] sm:$0xf]
      %v1122 = vld [vmem:[%s3 + $0x18] sm:$0xff]
      %v1123 = vld [vmem:[%s3 + $0x20] sm:$0xf]
      %v1124 = vld [vmem:[%s3 + $0x24] sm:$0xff]
      %v1125 = vld [vmem:[%s3 + $0x2c] sm:$0xf]
      %v1126 = vld [vmem:[#allocation3] sm:$0xff]
      %v1127 = vld [vmem:[#allocation3 + $0x8] sm:$0xff]
      %v1128 = vld [vmem:[#allocation3 + $0x10] sm:$0xff]
      %v1129 = vld [vmem:[#allocation3 + $0x18] sm:$0xff]
      %v1130 = vld [vmem:[#allocation3 + $0x20] sm:$0xff]
      %v1131 = vld [vmem:[#allocation3 + $0x28] sm:$0xff]
      %v1132 = vld [vmem:[#allocation3 + $0x30] sm:$0xff]
      %v1133 = vld [vmem:[#allocation3 + $0x38] sm:$0xff]
      %v1134 = vld [vmem:[#allocation3 + $0x40] sm:$0xff]
      %v1135 = vld [vmem:[#allocation3 + $0x48] sm:$0xff]
      %v1136 = vld [vmem:[#allocation3 + $0x50] sm:$0xff]
      %v1137 = vld [vmem:[#allocation3 + $0x58] sm:$0xff]
      %v1138 = vld [vmem:[#allocation3 + $0x60] sm:$0xff]
      %v1139 = vld [vmem:[#allocation3 + $0x68] sm:$0xff]
      %v1140 = vld [vmem:[#allocation3 + $0x70] sm:$0xff]
      %v1141 = vld [vmem:[#allocation3 + $0x78] sm:$0xff]
      %v1142 = vld [vmem:[#allocation3 + $0x80] sm:$0xff]
      %v1143 = vld [vmem:[#allocation3 + $0x88] sm:$0xff]
      %v1144 = vld [vmem:[#allocation3 + $0x90] sm:$0xff]
      %v1145 = vld [vmem:[#allocation3 + $0x98] sm:$0xff]
      %v1146 = vld [vmem:[#allocation3 + $0xa0] sm:$0xff]
      %v1147 = vld [vmem:[#allocation3 + $0xa8] sm:$0xff]
      %v1148 = vld [vmem:[#allocation3 + $0xb0] sm:$0xff]
      %v1149 = vld [vmem:[#allocation3 + $0xb8] sm:$0xff]
      %v1150 = vld [vmem:[#allocation3 + $0xc0] sm:$0xff]
      %v1151 = vld [vmem:[#allocation3 + $0xc8] sm:$0xff]
      %v1152 = vld [vmem:[#allocation3 + $0xd0] sm:$0xff]
      %v1153 = vld [vmem:[#allocation3 + $0xd8] sm:$0xff]
      %v1154 = vld [vmem:[#allocation3 + $0xe0] sm:$0xff]
      %v1155 = vld [vmem:[#allocation3 + $0xe8] sm:$0xff]
      %v1156 = vld [vmem:[#allocation3 + $0xf0] sm:$0xff]
      %v1157 = vld [vmem:[#allocation3 + $0xf8] sm:$0xff]
      %v1158 = vld [vmem:[#allocation3 + $0x100] sm:$0xff]
      %v1159 = vld [vmem:[#allocation3 + $0x108] sm:$0xff]
      %v1160 = vld [vmem:[#allocation3 + $0x110] sm:$0xff]
      %v1161 = vld [vmem:[#allocation3 + $0x118] sm:$0xff]
      %v1162 = vld [vmem:[%s4] sm:$0xff]
      %v1163 = vld [vmem:[%s4 + $0x8] sm:$0xff]
      %v1164 = vld [vmem:[%s4 + $0x10] sm:$0xff]
      %v1165 = vld [vmem:[%s4 + $0x18] sm:$0xff]
      %1167 = vset.pattern.permute.xlu0 0
      %1168 = vperm.xlu0 %1167, %v1162
      %v1169 = vpop.permute.xlu0 %1168
      %1172 = vset.pattern.permute.xlu0 0
      %1173 = vperm.xlu0 %1172, %v1163
      %v1174 = vpop.permute.xlu0 %1173
      %1177 = vset.pattern.permute.xlu0 0
      %1178 = vperm.xlu0 %1177, %v1164
      %v1179 = vpop.permute.xlu0 %1178
      %1182 = vset.pattern.permute.xlu0 0
      %1183 = vperm.xlu0 %1182, %v1165
      %v1184 = vpop.permute.xlu0 %1183
      %v1194 = vunpack.c.l.b16 %v1118
      %v1195 = vunpack.c.h.b16 %v1118
      %v1196 = vunpack.c.l.b16 %v1119
      %v1197 = vunpack.c.l.b16 %v1120
      %v1198 = vunpack.c.h.b16 %v1120
      %v1199 = vunpack.c.l.b16 %v1121
      %v1200 = vunpack.c.l.b16 %v1122
      %v1201 = vunpack.c.h.b16 %v1122
      %v1202 = vunpack.c.l.b16 %v1123
      %v1203 = vunpack.c.l.b16 %v1124
      %v1204 = vunpack.c.h.b16 %v1124
      %v1205 = vunpack.c.l.b16 %v1125
      %v1206 = vpack.c.b16 %v1197, %v1194
      %v1207 = vpack.c.b16 %v1198, %v1195
      %v1208 = vpack.c.b16 %v1199, %v1196
      %v1209 = vpack.c.b16 %v1203, %v1200
      %v1210 = vpack.c.b16 %v1204, %v1201
      %v1211 = vpack.c.b16 %v1205, %v1202
      %vm1216 = vcmask 261120
      %v1218 = vsel %vm1216, %v1208, 0
      %v1221 = vsel %vm1216, %v1211, 0
      %1223 = vmatprep.subr.bf16.mxu0 %v1127
      %1224 = vmatpush1.bf16.msra.mxu0 %v1126
      %1225 = vmatprep.subr.bf16.mxu0 %v1129
      %1226 = vmatpush1.bf16.msra.mxu0 %v1128
      %1227 = vmatprep.subr.bf16.mxu0 %v1131
      %1228 = vmatpush1.bf16.msra.mxu0 %v1130
      %1229 = vmatprep.subr.bf16.mxu0 %v1133
      %1230 = vmatpush1.bf16.msra.mxu0 %v1132
      %1231 = vmatprep.subr.bf16.mxu0 %v1135
      %1232 = vmatpush1.bf16.msra.mxu0 %v1134
      %1233 = vmatprep.subr.bf16.mxu0 %v1137
      %1234 = vmatpush1.bf16.msra.mxu0 %v1136
      %1235 = vmatprep.subr.bf16.mxu0 %v1139
      %1236 = vmatpush1.bf16.msra.mxu0 %v1138
      %1237 = vmatprep.subr.bf16.mxu0 %v1141
      %1238 = vmatpush1.bf16.msra.mxu0 %v1140
      %1239 = vmatprep.subr.bf16.mxu0 %v1143
      %1240 = vmatpush1.bf16.msra.mxu0 %v1142
      %1241 = vmatprep.subr.bf16.mxu0 %v1145
      %1242 = vmatpush1.bf16.msra.mxu0 %v1144
      %1243 = vmatprep.subr.bf16.mxu0 %v1147
      %1244 = vmatpush1.bf16.msra.mxu0 %v1146
      %1245 = vmatprep.subr.bf16.mxu0 %v1149
      %1246 = vmatpush1.bf16.msra.mxu0 %v1148
      %1247 = vmatprep.subr.bf16.mxu0 %v1151
      %1248 = vmatpush1.bf16.msra.mxu0 %v1150
      %1249 = vmatprep.subr.bf16.mxu0 %v1153
      %1250 = vmatpush1.bf16.msra.mxu0 %v1152
      %1251 = vmatprep.subr.bf16.mxu0 %v1155
      %1252 = vmatpush1.bf16.msra.mxu0 %v1154
      %1253 = vmatprep.subr.bf16.mxu0 %v1157
      %1254 = vmatpush1.bf16.msra.mxu0 %v1156
      %1255 = vmatprep.mubr.bf16.mxu0 %v1207
      %1256 = vmatmul.mubr.bf16.gmra.mrb[0].mxu0 %v1206
      %v1257 = vpop.f32.mrb[0].mxu0
      %v1258 = vadd.f32 %v1169, %v1257
      %v1259 = vpop.f32.mrb[0].mxu0
      %v1260 = vadd.f32 %v1169, %v1259
      %v1261 = vpop.f32.mrb[0].mxu0
      %v1262 = vadd.f32 %v1174, %v1261
      %v1263 = vpop.f32.mrb[0].mxu0
      %v1264 = vadd.f32 %v1174, %v1263
      %1265 = vmatprep.mubr.bf16.mxu0 %v1210
      %1266 = vmatmul.mubr.bf16.gmra.mrb[0].mxu0 %v1209
      %v1267 = vpop.f32.mrb[0].mxu0
      %v1268 = vadd.f32 %v1179, %v1267
      %v1269 = vpop.f32.mrb[0].mxu0
      %v1270 = vadd.f32 %v1179, %v1269
      %v1271 = vpop.f32.mrb[0].mxu0
      %v1272 = vadd.f32 %v1184, %v1271
      %v1273 = vpop.f32.mrb[0].mxu0
      %v1274 = vadd.f32 %v1184, %v1273
      %1275 = vdwg.mxu0
      %1276 = vmatprep.subr.bf16.mxu0 %v1159
      %1277 = vmatpush1.bf16.msra.mxu0 %v1158
      %1278 = vmatprep.subr.bf16.mxu0 %v1161
      %1279 = vmatpush1.bf16.msra.mxu0 %v1160
      %1280 = vmatprep.subr.bf16.mxu0 0
      %1281 = vmatpush1.bf16.msra.mxu0 0
      %1282 = vmatprep.subr.bf16.mxu0 0
      %1283 = vmatpush1.bf16.msra.mxu0 0
      %1284 = vmatprep.subr.bf16.mxu0 0
      %1285 = vmatpush1.bf16.msra.mxu0 0
      %1286 = vmatprep.subr.bf16.mxu0 0
      %1287 = vmatpush1.bf16.msra.mxu0 0
      %1288 = vmatprep.subr.bf16.mxu0 0
      %1289 = vmatpush1.bf16.msra.mxu0 0
      %1290 = vmatprep.subr.bf16.mxu0 0
      %1291 = vmatpush1.bf16.msra.mxu0 0
      %1292 = vmatprep.subr.bf16.mxu0 0
      %1293 = vmatpush1.bf16.msra.mxu0 0
      %1294 = vmatprep.subr.bf16.mxu0 0
      %1295 = vmatpush1.bf16.msra.mxu0 0
      %1296 = vmatprep.subr.bf16.mxu0 0
      %1297 = vmatpush1.bf16.msra.mxu0 0
      %1298 = vmatprep.subr.bf16.mxu0 0
      %1299 = vmatpush1.bf16.msra.mxu0 0
      %1300 = vmatprep.subr.bf16.mxu0 0
      %1301 = vmatpush1.bf16.msra.mxu0 0
      %1302 = vmatprep.subr.bf16.mxu0 0
      %1303 = vmatpush1.bf16.msra.mxu0 0
      %1304 = vmatprep.subr.bf16.mxu0 0
      %1305 = vmatpush1.bf16.msra.mxu0 0
      %1306 = vmatprep.subr.bf16.mxu0 0
      %1307 = vmatpush1.bf16.msra.mxu0 0
      %1308 = vmatprep.mubr.bf16.mxu0 0
      %1309 = vmatmul.mubr.bf16.gmra.mrb[0].mxu0 %v1218
      %v1310 = vpop.f32.mrb[0].mxu0
      %v1311 = vadd.f32 %v1258, %v1310
      %v1312 = vpop.f32.mrb[0].mxu0
      %v1313 = vadd.f32 %v1260, %v1312
      %v1314 = vpop.f32.mrb[0].mxu0
      %v1315 = vadd.f32 %v1262, %v1314
      %v1316 = vpop.f32.mrb[0].mxu0
      %v1317 = vadd.f32 %v1264, %v1316
      %1318 = vmatprep.mubr.bf16.mxu0 0
      %1319 = vmatmul.mubr.bf16.gmra.mrb[0].mxu0 %v1221
      %v1320 = vpop.f32.mrb[0].mxu0
      %v1321 = vadd.f32 %v1268, %v1320
      %v1322 = vpop.f32.mrb[0].mxu0
      %v1323 = vadd.f32 %v1270, %v1322
      %v1324 = vpop.f32.mrb[0].mxu0
      %v1325 = vadd.f32 %v1272, %v1324
      %v1326 = vpop.f32.mrb[0].mxu0
      %v1327 = vadd.f32 %v1274, %v1326
      %1328 = vdwg.mxu0
      %vm1329 = vcmp.ge.f32.partialorder %v1311, 0.0
      %vm1330 = vcmp.ge.f32.partialorder %v1313, 0.0
      %vm1331 = vcmp.ge.f32.partialorder %v1315, 0.0
      %vm1332 = vcmp.ge.f32.partialorder %v1317, 0.0
      %vm1333 = vcmp.ge.f32.partialorder %v1321, 0.0
      %vm1334 = vcmp.ge.f32.partialorder %v1323, 0.0
      %vm1335 = vcmp.ge.f32.partialorder %v1325, 0.0
      %vm1336 = vcmp.ge.f32.partialorder %v1327, 0.0
      %v1337 = vmul.f32 %v1311, 0.2
      %v1338 = vmul.f32 %v1313, 0.2
      %v1339 = vmul.f32 %v1315, 0.2
      %v1340 = vmul.f32 %v1317, 0.2
      %v1341 = vmul.f32 %v1321, 0.2
      %v1342 = vmul.f32 %v1323, 0.2
      %v1343 = vmul.f32 %v1325, 0.2
      %v1344 = vmul.f32 %v1327, 0.2
      %v1345 = vsel %vm1329, %v1311, %v1337
      %v1346 = vsel %vm1330, %v1313, %v1338
      %v1347 = vsel %vm1331, %v1315, %v1339
      %v1348 = vsel %vm1332, %v1317, %v1340
      %v1349 = vsel %vm1333, %v1321, %v1341
      %v1350 = vsel %vm1334, %v1323, %v1342
      %v1351 = vsel %vm1335, %v1325, %v1343
      %v1352 = vsel %vm1336, %v1327, %v1344
      %1353 = vst [vmem:[#allocation4] sm:$0xff] %v1345
      %1354 = vst [vmem:[#allocation4 + $0x8] sm:$0xff] %v1346
      %1355 = vst [vmem:[#allocation4 + $0x10] sm:$0xff] %v1347
      %1356 = vst [vmem:[#allocation4 + $0x18] sm:$0xff] %v1348
      %1357 = vst [vmem:[#allocation4 + $0x20] sm:$0xff] %v1349
      %1358 = vst [vmem:[#allocation4 + $0x28] sm:$0xff] %v1350
      %1359 = vst [vmem:[#allocation4 + $0x30] sm:$0xff] %v1351
      %1360 = vst [vmem:[#allocation4 + $0x38] sm:$0xff] %v1352
      %v1361 = vld [vmem:[#allocation4] sm:$0xff]
      %v1362 = vld [vmem:[#allocation4 + $0x8] sm:$0xff]
      %v1363 = vld [vmem:[#allocation4 + $0x10] sm:$0xff]
      %v1364 = vld [vmem:[#allocation4 + $0x18] sm:$0xff]
      %v1365 = vld [vmem:[#allocation4 + $0x20] sm:$0xff]
      %v1366 = vld [vmem:[#allocation4 + $0x28] sm:$0xff]
      %v1367 = vld [vmem:[#allocation4 + $0x30] sm:$0xff]
      %v1368 = vld [vmem:[#allocation4 + $0x38] sm:$0xff]
      %1377 = vrot.lane.b32.xlu0 %v1361, 17
      %v1378 = vpop.permute.xlu0 %1377
      %1379 = vrot.lane.b32.xlu0 %v1362, 17
      %v1380 = vpop.permute.xlu0 %1379
      %1381 = vrot.lane.b32.xlu0 %v1363, 17
      %v1382 = vpop.permute.xlu0 %1381
      %1383 = vrot.lane.b32.xlu0 %v1364, 17
      %v1384 = vpop.permute.xlu0 %1383
      %1385 = vrot.lane.b32.xlu0 %v1365, 17
      %v1386 = vpop.permute.xlu0 %1385
      %1387 = vrot.lane.b32.xlu0 %v1366, 17
      %v1388 = vpop.permute.xlu0 %1387
      %1389 = vrot.lane.b32.xlu0 %v1367, 17
      %v1390 = vpop.permute.xlu0 %1389
      %1391 = vrot.lane.b32.xlu0 %v1368, 17
      %v1392 = vpop.permute.xlu0 %1391
      %v1393 = vsel %vm374, %v1378, %v1380
      %v1394 = vsel %vm374, %v1382, %v1384
      %v1395 = vsel %vm374, %v1386, %v1388
      %v1396 = vsel %vm374, %v1390, %v1392
      %v1405 = vsel %vm374, 0.0, %v1378
      %v1406 = vsel %vm374, 0.0, %v1382
      %v1407 = vsel %vm374, 0.0, %v1386
      %v1408 = vsel %vm374, 0.0, %v1390
      %v1409 = vsel %vm381, %v1405, 0.0
      %v1410 = vsel %vm382, %v1393, 0.0
      %v1411 = vsel %vm381, %v1406, 0.0
      %v1412 = vsel %vm382, %v1394, 0.0
      %v1413 = vsel %vm381, %v1407, 0.0
      %v1414 = vsel %vm382, %v1395, 0.0
      %v1415 = vsel %vm381, %v1408, 0.0
      %v1416 = vsel %vm382, %v1396, 0.0
      %v1417 = vpack.c.bf16 %v1411, %v1409
      %v1418 = vpack.c.bf16 %v1412, %v1410
      %v1419 = vpack.c.bf16 %v1415, %v1413
      %v1420 = vpack.c.bf16 %v1416, %v1414
      %1421 = vst [vmem:[#allocation3] sm:$0xff] %v1417
      %1422 = vst [vmem:[#allocation3 + $0x8] sm:$0xff] %v1418
      %1423 = vst [vmem:[#allocation3 + $0x10] sm:$0xff] %v1419
      %1424 = vst [vmem:[#allocation3 + $0x18] sm:$0xff] %v1420
      %1425 = vrot.lane.b32.xlu0 %v1361, 16
      %v1426 = vpop.permute.xlu0 %1425
      %1427 = vrot.lane.b32.xlu0 %v1362, 16
      %v1428 = vpop.permute.xlu0 %1427
      %1429 = vrot.lane.b32.xlu0 %v1363, 16
      %v1430 = vpop.permute.xlu0 %1429
      %1431 = vrot.lane.b32.xlu0 %v1364, 16
      %v1432 = vpop.permute.xlu0 %1431
      %1433 = vrot.lane.b32.xlu0 %v1365, 16
      %v1434 = vpop.permute.xlu0 %1433
      %1435 = vrot.lane.b32.xlu0 %v1366, 16
      %v1436 = vpop.permute.xlu0 %1435
      %1437 = vrot.lane.b32.xlu0 %v1367, 16
      %v1438 = vpop.permute.xlu0 %1437
      %1439 = vrot.lane.b32.xlu0 %v1368, 16
      %v1440 = vpop.permute.xlu0 %1439
      %v1441 = vsel %vm398, %v1426, %v1428
      %v1442 = vsel %vm398, %v1430, %v1432
      %v1443 = vsel %vm398, %v1434, %v1436
      %v1444 = vsel %vm398, %v1438, %v1440
      %v1453 = vsel %vm398, 0.0, %v1426
      %v1454 = vsel %vm398, 0.0, %v1430
      %v1455 = vsel %vm398, 0.0, %v1434
      %v1456 = vsel %vm398, 0.0, %v1438
      %v1457 = vpack.c.bf16 %v1454, %v1453
      %v1458 = vpack.c.bf16 %v1442, %v1441
      %v1459 = vpack.c.bf16 %v1456, %v1455
      %v1460 = vpack.c.bf16 %v1444, %v1443
      %1461 = vst [vmem:[#allocation3 + $0x20] sm:$0xff] %v1457
      %1462 = vst [vmem:[#allocation3 + $0x28] sm:$0xff] %v1458
      %1463 = vst [vmem:[#allocation3 + $0x30] sm:$0xff] %v1459
      %1464 = vst [vmem:[#allocation3 + $0x38] sm:$0xff] %v1460
      %1465 = vrot.lane.b32.xlu0 %v1361, 15
      %v1466 = vpop.permute.xlu0 %1465
      %1467 = vrot.lane.b32.xlu0 %v1362, 15
      %v1468 = vpop.permute.xlu0 %1467
      %1469 = vrot.lane.b32.xlu0 %v1363, 15
      %v1470 = vpop.permute.xlu0 %1469
      %1471 = vrot.lane.b32.xlu0 %v1364, 15
      %v1472 = vpop.permute.xlu0 %1471
      %1473 = vrot.lane.b32.xlu0 %v1365, 15
      %v1474 = vpop.permute.xlu0 %1473
      %1475 = vrot.lane.b32.xlu0 %v1366, 15
      %v1476 = vpop.permute.xlu0 %1475
      %1477 = vrot.lane.b32.xlu0 %v1367, 15
      %v1478 = vpop.permute.xlu0 %1477
      %1479 = vrot.lane.b32.xlu0 %v1368, 15
      %v1480 = vpop.permute.xlu0 %1479
      %v1481 = vsel %vm416, %v1466, %v1468
      %v1482 = vsel %vm416, %v1470, %v1472
      %v1483 = vsel %vm416, %v1474, %v1476
      %v1484 = vsel %vm416, %v1478, %v1480
      %v1493 = vsel %vm416, 0.0, %v1466
      %v1494 = vsel %vm416, 0.0, %v1470
      %v1495 = vsel %vm416, 0.0, %v1474
      %v1496 = vsel %vm416, 0.0, %v1478
      %v1497 = vsel %vm423, %v1493, 0.0
      %v1498 = vsel %vm424, %v1481, 0.0
      %v1499 = vsel %vm423, %v1494, 0.0
      %v1500 = vsel %vm424, %v1482, 0.0
      %v1501 = vsel %vm423, %v1495, 0.0
      %v1502 = vsel %vm424, %v1483, 0.0
      %v1503 = vsel %vm423, %v1496, 0.0
      %v1504 = vsel %vm424, %v1484, 0.0
      %v1505 = vpack.c.bf16 %v1499, %v1497
      %v1506 = vpack.c.bf16 %v1500, %v1498
      %v1507 = vpack.c.bf16 %v1503, %v1501
      %v1508 = vpack.c.bf16 %v1504, %v1502
      %1509 = vst [vmem:[#allocation3 + $0x40] sm:$0xff] %v1505
      %1510 = vst [vmem:[#allocation3 + $0x48] sm:$0xff] %v1506
      %1511 = vst [vmem:[#allocation3 + $0x50] sm:$0xff] %v1507
      %1512 = vst [vmem:[#allocation3 + $0x58] sm:$0xff] %v1508
      %1513 = vrot.lane.b32.xlu0 %v1361, 1
      %v1514 = vpop.permute.xlu0 %1513
      %1515 = vrot.lane.b32.xlu0 %v1362, 1
      %v1516 = vpop.permute.xlu0 %1515
      %1517 = vrot.lane.b32.xlu0 %v1363, 1
      %v1518 = vpop.permute.xlu0 %1517
      %1519 = vrot.lane.b32.xlu0 %v1364, 1
      %v1520 = vpop.permute.xlu0 %1519
      %1521 = vrot.lane.b32.xlu0 %v1365, 1
      %v1522 = vpop.permute.xlu0 %1521
      %1523 = vrot.lane.b32.xlu0 %v1366, 1
      %v1524 = vpop.permute.xlu0 %1523
      %1525 = vrot.lane.b32.xlu0 %v1367, 1
      %v1526 = vpop.permute.xlu0 %1525
      %1527 = vrot.lane.b32.xlu0 %v1368, 1
      %v1528 = vpop.permute.xlu0 %1527
      %v1529 = vsel %vm440, %v1514, %v1516
      %v1530 = vsel %vm440, %v1518, %v1520
      %v1531 = vsel %vm440, %v1522, %v1524
      %v1532 = vsel %vm440, %v1526, %v1528
      %v1541 = vsel %vm440, 0.0, %v1514
      %v1542 = vsel %vm440, 0.0, %v1518
      %v1543 = vsel %vm440, 0.0, %v1522
      %v1544 = vsel %vm440, 0.0, %v1526
      %v1545 = vsel %vm381, %v1541, 0.0
      %v1546 = vsel %vm382, %v1529, 0.0
      %v1547 = vsel %vm381, %v1542, 0.0
      %v1548 = vsel %vm382, %v1530, 0.0
      %v1549 = vsel %vm381, %v1543, 0.0
      %v1550 = vsel %vm382, %v1531, 0.0
      %v1551 = vsel %vm381, %v1544, 0.0
      %v1552 = vsel %vm382, %v1532, 0.0
      %v1553 = vpack.c.bf16 %v1547, %v1545
      %v1554 = vpack.c.bf16 %v1548, %v1546
      %v1555 = vpack.c.bf16 %v1551, %v1549
      %v1556 = vpack.c.bf16 %v1552, %v1550
      %1557 = vst [vmem:[#allocation3 + $0x60] sm:$0xff] %v1553
      %1558 = vst [vmem:[#allocation3 + $0x68] sm:$0xff] %v1554
      %1559 = vst [vmem:[#allocation3 + $0x70] sm:$0xff] %v1555
      %1560 = vst [vmem:[#allocation3 + $0x78] sm:$0xff] %v1556
      %v1561 = vpack.c.bf16 %v1363, %v1361
      %v1562 = vpack.c.bf16 %v1364, %v1362
      %v1563 = vpack.c.bf16 %v1367, %v1365
      %v1564 = vpack.c.bf16 %v1368, %v1366
      %1565 = vst [vmem:[#allocation3 + $0x80] sm:$0xff] %v1561
      %1566 = vst [vmem:[#allocation3 + $0x88] sm:$0xff] %v1562
      %1567 = vst [vmem:[#allocation3 + $0x90] sm:$0xff] %v1563
      %1568 = vst [vmem:[#allocation3 + $0x98] sm:$0xff] %v1564
      %1569 = vrot.lane.b32.xlu0 %v1361, 127
      %v1570 = vpop.permute.xlu0 %1569
      %1571 = vrot.lane.b32.xlu0 %v1362, 127
      %v1572 = vpop.permute.xlu0 %1571
      %1573 = vrot.lane.b32.xlu0 %v1363, 127
      %v1574 = vpop.permute.xlu0 %1573
      %1575 = vrot.lane.b32.xlu0 %v1364, 127
      %v1576 = vpop.permute.xlu0 %1575
      %1577 = vrot.lane.b32.xlu0 %v1365, 127
      %v1578 = vpop.permute.xlu0 %1577
      %1579 = vrot.lane.b32.xlu0 %v1366, 127
      %v1580 = vpop.permute.xlu0 %1579
      %1581 = vrot.lane.b32.xlu0 %v1367, 127
      %v1582 = vpop.permute.xlu0 %1581
      %1583 = vrot.lane.b32.xlu0 %v1368, 127
      %v1584 = vpop.permute.xlu0 %1583
      %v1585 = vsel %vm461, %v1570, %v1572
      %v1586 = vsel %vm461, %v1574, %v1576
      %v1587 = vsel %vm461, %v1578, %v1580
      %v1588 = vsel %vm461, %v1582, %v1584
      %v1597 = vsel %vm461, %v1572, 0.0
      %v1598 = vsel %vm461, %v1576, 0.0
      %v1599 = vsel %vm461, %v1580, 0.0
      %v1600 = vsel %vm461, %v1584, 0.0
      %v1601 = vsel %vm423, %v1585, 0.0
      %v1602 = vsel %vm424, %v1597, 0.0
      %v1603 = vsel %vm423, %v1586, 0.0
      %v1604 = vsel %vm424, %v1598, 0.0
      %v1605 = vsel %vm423, %v1587, 0.0
      %v1606 = vsel %vm424, %v1599, 0.0
      %v1607 = vsel %vm423, %v1588, 0.0
      %v1608 = vsel %vm424, %v1600, 0.0
      %v1609 = vpack.c.bf16 %v1603, %v1601
      %v1610 = vpack.c.bf16 %v1604, %v1602
      %v1611 = vpack.c.bf16 %v1607, %v1605
      %v1612 = vpack.c.bf16 %v1608, %v1606
      %1613 = vst [vmem:[#allocation3 + $0xa0] sm:$0xff] %v1609
      %1614 = vst [vmem:[#allocation3 + $0xa8] sm:$0xff] %v1610
      %1615 = vst [vmem:[#allocation3 + $0xb0] sm:$0xff] %v1611
      %1616 = vst [vmem:[#allocation3 + $0xb8] sm:$0xff] %v1612
      %1617 = vrot.lane.b32.xlu0 %v1361, 113
      %v1618 = vpop.permute.xlu0 %1617
      %1619 = vrot.lane.b32.xlu0 %v1362, 113
      %v1620 = vpop.permute.xlu0 %1619
      %1621 = vrot.lane.b32.xlu0 %v1363, 113
      %v1622 = vpop.permute.xlu0 %1621
      %1623 = vrot.lane.b32.xlu0 %v1364, 113
      %v1624 = vpop.permute.xlu0 %1623
      %1625 = vrot.lane.b32.xlu0 %v1365, 113
      %v1626 = vpop.permute.xlu0 %1625
      %1627 = vrot.lane.b32.xlu0 %v1366, 113
      %v1628 = vpop.permute.xlu0 %1627
      %1629 = vrot.lane.b32.xlu0 %v1367, 113
      %v1630 = vpop.permute.xlu0 %1629
      %1631 = vrot.lane.b32.xlu0 %v1368, 113
      %v1632 = vpop.permute.xlu0 %1631
      %v1633 = vsel %vm481, %v1618, %v1620
      %v1634 = vsel %vm481, %v1622, %v1624
      %v1635 = vsel %vm481, %v1626, %v1628
      %v1636 = vsel %vm481, %v1630, %v1632
      %v1645 = vsel %vm481, %v1620, 0.0
      %v1646 = vsel %vm481, %v1624, 0.0
      %v1647 = vsel %vm481, %v1628, 0.0
      %v1648 = vsel %vm481, %v1632, 0.0
      %v1649 = vsel %vm381, %v1633, 0.0
      %v1650 = vsel %vm382, %v1645, 0.0
      %v1651 = vsel %vm381, %v1634, 0.0
      %v1652 = vsel %vm382, %v1646, 0.0
      %v1653 = vsel %vm381, %v1635, 0.0
      %v1654 = vsel %vm382, %v1647, 0.0
      %v1655 = vsel %vm381, %v1636, 0.0
      %v1656 = vsel %vm382, %v1648, 0.0
      %v1657 = vpack.c.bf16 %v1651, %v1649
      %v1658 = vpack.c.bf16 %v1652, %v1650
      %v1659 = vpack.c.bf16 %v1655, %v1653
      %v1660 = vpack.c.bf16 %v1656, %v1654
      %1661 = vst [vmem:[#allocation3 + $0xc0] sm:$0xff] %v1657
      %1662 = vst [vmem:[#allocation3 + $0xc8] sm:$0xff] %v1658
      %1663 = vst [vmem:[#allocation3 + $0xd0] sm:$0xff] %v1659
      %1664 = vst [vmem:[#allocation3 + $0xd8] sm:$0xff] %v1660
      %1665 = vrot.lane.b32.xlu0 %v1361, 112
      %v1666 = vpop.permute.xlu0 %1665
      %1667 = vrot.lane.b32.xlu0 %v1362, 112
      %v1668 = vpop.permute.xlu0 %1667
      %1669 = vrot.lane.b32.xlu0 %v1363, 112
      %v1670 = vpop.permute.xlu0 %1669
      %1671 = vrot.lane.b32.xlu0 %v1364, 112
      %v1672 = vpop.permute.xlu0 %1671
      %1673 = vrot.lane.b32.xlu0 %v1365, 112
      %v1674 = vpop.permute.xlu0 %1673
      %1675 = vrot.lane.b32.xlu0 %v1366, 112
      %v1676 = vpop.permute.xlu0 %1675
      %1677 = vrot.lane.b32.xlu0 %v1367, 112
      %v1678 = vpop.permute.xlu0 %1677
      %1679 = vrot.lane.b32.xlu0 %v1368, 112
      %v1680 = vpop.permute.xlu0 %1679
      %v1681 = vsel %vm501, %v1666, %v1668
      %v1682 = vsel %vm501, %v1670, %v1672
      %v1683 = vsel %vm501, %v1674, %v1676
      %v1684 = vsel %vm501, %v1678, %v1680
      %v1693 = vsel %vm501, %v1668, 0.0
      %v1694 = vsel %vm501, %v1672, 0.0
      %v1695 = vsel %vm501, %v1676, 0.0
      %v1696 = vsel %vm501, %v1680, 0.0
      %v1697 = vpack.c.bf16 %v1682, %v1681
      %v1698 = vpack.c.bf16 %v1694, %v1693
      %v1699 = vpack.c.bf16 %v1684, %v1683
      %v1700 = vpack.c.bf16 %v1696, %v1695
      %1701 = vst [vmem:[#allocation3 + $0xe0] sm:$0xff] %v1697
      %1702 = vst [vmem:[#allocation3 + $0xe8] sm:$0xff] %v1698
      %1703 = vst [vmem:[#allocation3 + $0xf0] sm:$0xff] %v1699
      %1704 = vst [vmem:[#allocation3 + $0xf8] sm:$0xff] %v1700
      %1705 = vrot.lane.b32.xlu0 %v1361, 111
      %v1706 = vpop.permute.xlu0 %1705
      %1707 = vrot.lane.b32.xlu0 %v1362, 111
      %v1708 = vpop.permute.xlu0 %1707
      %1709 = vrot.lane.b32.xlu0 %v1363, 111
      %v1710 = vpop.permute.xlu0 %1709
      %1711 = vrot.lane.b32.xlu0 %v1364, 111
      %v1712 = vpop.permute.xlu0 %1711
      %1713 = vrot.lane.b32.xlu0 %v1365, 111
      %v1714 = vpop.permute.xlu0 %1713
      %1715 = vrot.lane.b32.xlu0 %v1366, 111
      %v1716 = vpop.permute.xlu0 %1715
      %1717 = vrot.lane.b32.xlu0 %v1367, 111
      %v1718 = vpop.permute.xlu0 %1717
      %1719 = vrot.lane.b32.xlu0 %v1368, 111
      %v1720 = vpop.permute.xlu0 %1719
      %v1721 = vsel %vm519, %v1706, %v1708
      %v1722 = vsel %vm519, %v1710, %v1712
      %v1723 = vsel %vm519, %v1714, %v1716
      %v1724 = vsel %vm519, %v1718, %v1720
      %v1733 = vsel %vm519, %v1708, 0.0
      %v1734 = vsel %vm519, %v1712, 0.0
      %v1735 = vsel %vm519, %v1716, 0.0
      %v1736 = vsel %vm519, %v1720, 0.0
      %v1737 = vsel %vm423, %v1721, 0.0
      %v1738 = vsel %vm424, %v1733, 0.0
      %v1739 = vsel %vm423, %v1722, 0.0
      %v1740 = vsel %vm424, %v1734, 0.0
      %v1741 = vsel %vm423, %v1723, 0.0
      %v1742 = vsel %vm424, %v1735, 0.0
      %v1743 = vsel %vm423, %v1724, 0.0
      %v1744 = vsel %vm424, %v1736, 0.0
      %v1745 = vpack.c.bf16 %v1739, %v1737
      %v1746 = vpack.c.bf16 %v1740, %v1738
      %v1747 = vpack.c.bf16 %v1743, %v1741
      %v1748 = vpack.c.bf16 %v1744, %v1742
      %1749 = vst [vmem:[#allocation3 + $0x100] sm:$0xff] %v1745
      %1750 = vst [vmem:[#allocation3 + $0x108] sm:$0xff] %v1746
      %1751 = vst [vmem:[#allocation3 + $0x110] sm:$0xff] %v1747
      %1752 = vst [vmem:[#allocation3 + $0x118] sm:$0xff] %v1748
      %v1753 = vld [vmem:[%s5] sm:$0xff]
      %v1754 = vld [vmem:[%s5 + $0x8] sm:$0xf]
      %v1755 = vld [vmem:[%s5 + $0xc] sm:$0xff]
      %v1756 = vld [vmem:[%s5 + $0x14] sm:$0xf]
      %v1757 = vld [vmem:[%s5 + $0x18] sm:$0xff]
      %v1758 = vld [vmem:[%s5 + $0x20] sm:$0xf]
      %v1759 = vld [vmem:[%s5 + $0x24] sm:$0xff]
      %v1760 = vld [vmem:[%s5 + $0x2c] sm:$0xf]
      %v1761 = vld [vmem:[#allocation3] sm:$0xff]
      %v1762 = vld [vmem:[#allocation3 + $0x8] sm:$0xff]
      %v1763 = vld [vmem:[#allocation3 + $0x10] sm:$0xff]
      %v1764 = vld [vmem:[#allocation3 + $0x18] sm:$0xff]
      %v1765 = vld [vmem:[#allocation3 + $0x20] sm:$0xff]
      %v1766 = vld [vmem:[#allocation3 + $0x28] sm:$0xff]
      %v1767 = vld [vmem:[#allocation3 + $0x30] sm:$0xff]
      %v1768 = vld [vmem:[#allocation3 + $0x38] sm:$0xff]
      %v1769 = vld [vmem:[#allocation3 + $0x40] sm:$0xff]
      %v1770 = vld [vmem:[#allocation3 + $0x48] sm:$0xff]
      %v1771 = vld [vmem:[#allocation3 + $0x50] sm:$0xff]
      %v1772 = vld [vmem:[#allocation3 + $0x58] sm:$0xff]
      %v1773 = vld [vmem:[#allocation3 + $0x60] sm:$0xff]
      %v1774 = vld [vmem:[#allocation3 + $0x68] sm:$0xff]
      %v1775 = vld [vmem:[#allocation3 + $0x70] sm:$0xff]
      %v1776 = vld [vmem:[#allocation3 + $0x78] sm:$0xff]
      %v1777 = vld [vmem:[#allocation3 + $0x80] sm:$0xff]
      %v1778 = vld [vmem:[#allocation3 + $0x88] sm:$0xff]
      %v1779 = vld [vmem:[#allocation3 + $0x90] sm:$0xff]
      %v1780 = vld [vmem:[#allocation3 + $0x98] sm:$0xff]
      %v1781 = vld [vmem:[#allocation3 + $0xa0] sm:$0xff]
      %v1782 = vld [vmem:[#allocation3 + $0xa8] sm:$0xff]
      %v1783 = vld [vmem:[#allocation3 + $0xb0] sm:$0xff]
      %v1784 = vld [vmem:[#allocation3 + $0xb8] sm:$0xff]
      %v1785 = vld [vmem:[#allocation3 + $0xc0] sm:$0xff]
      %v1786 = vld [vmem:[#allocation3 + $0xc8] sm:$0xff]
      %v1787 = vld [vmem:[#allocation3 + $0xd0] sm:$0xff]
      %v1788 = vld [vmem:[#allocation3 + $0xd8] sm:$0xff]
      %v1789 = vld [vmem:[#allocation3 + $0xe0] sm:$0xff]
      %v1790 = vld [vmem:[#allocation3 + $0xe8] sm:$0xff]
      %v1791 = vld [vmem:[#allocation3 + $0xf0] sm:$0xff]
      %v1792 = vld [vmem:[#allocation3 + $0xf8] sm:$0xff]
      %v1793 = vld [vmem:[#allocation3 + $0x100] sm:$0xff]
      %v1794 = vld [vmem:[#allocation3 + $0x108] sm:$0xff]
      %v1795 = vld [vmem:[#allocation3 + $0x110] sm:$0xff]
      %v1796 = vld [vmem:[#allocation3 + $0x118] sm:$0xff]
      %v1797 = vld [vmem:[%s6] sm:$0xff]
      %v1798 = vld [vmem:[%s6 + $0x8] sm:$0xff]
      %v1799 = vld [vmem:[%s6 + $0x10] sm:$0xff]
      %v1800 = vld [vmem:[%s6 + $0x18] sm:$0xff]
      %1802 = vset.pattern.permute.xlu0 0
      %1803 = vperm.xlu0 %1802, %v1797
      %v1804 = vpop.permute.xlu0 %1803
      %1807 = vset.pattern.permute.xlu0 0
      %1808 = vperm.xlu0 %1807, %v1798
      %v1809 = vpop.permute.xlu0 %1808
      %1812 = vset.pattern.permute.xlu0 0
      %1813 = vperm.xlu0 %1812, %v1799
      %v1814 = vpop.permute.xlu0 %1813
      %1817 = vset.pattern.permute.xlu0 0
      %1818 = vperm.xlu0 %1817, %v1800
      %v1819 = vpop.permute.xlu0 %1818
      %v1829 = vunpack.c.l.b16 %v1753
      %v1830 = vunpack.c.h.b16 %v1753
      %v1831 = vunpack.c.l.b16 %v1754
      %v1832 = vunpack.c.l.b16 %v1755
      %v1833 = vunpack.c.h.b16 %v1755
      %v1834 = vunpack.c.l.b16 %v1756
      %v1835 = vunpack.c.l.b16 %v1757
      %v1836 = vunpack.c.h.b16 %v1757
      %v1837 = vunpack.c.l.b16 %v1758
      %v1838 = vunpack.c.l.b16 %v1759
      %v1839 = vunpack.c.h.b16 %v1759
      %v1840 = vunpack.c.l.b16 %v1760
      %v1841 = vpack.c.b16 %v1832, %v1829
      %v1842 = vpack.c.b16 %v1833, %v1830
      %v1843 = vpack.c.b16 %v1834, %v1831
      %v1844 = vpack.c.b16 %v1838, %v1835
      %v1845 = vpack.c.b16 %v1839, %v1836
      %v1846 = vpack.c.b16 %v1840, %v1837
      %v1852 = vsel %vm1216, %v1843, 0
      %v1855 = vsel %vm1216, %v1846, 0
      %1857 = vmatprep.subr.bf16.mxu0 %v1762
      %1858 = vmatpush1.bf16.msra.mxu0 %v1761
      %1859 = vmatprep.subr.bf16.mxu0 %v1764
      %1860 = vmatpush1.bf16.msra.mxu0 %v1763
      %1861 = vmatprep.subr.bf16.mxu0 %v1766
      %1862 = vmatpush1.bf16.msra.mxu0 %v1765
      %1863 = vmatprep.subr.bf16.mxu0 %v1768
      %1864 = vmatpush1.bf16.msra.mxu0 %v1767
      %1865 = vmatprep.subr.bf16.mxu0 %v1770
      %1866 = vmatpush1.bf16.msra.mxu0 %v1769
      %1867 = vmatprep.subr.bf16.mxu0 %v1772
      %1868 = vmatpush1.bf16.msra.mxu0 %v1771
      %1869 = vmatprep.subr.bf16.mxu0 %v1774
      %1870 = vmatpush1.bf16.msra.mxu0 %v1773
      %1871 = vmatprep.subr.bf16.mxu0 %v1776
      %1872 = vmatpush1.bf16.msra.mxu0 %v1775
      %1873 = vmatprep.subr.bf16.mxu0 %v1778
      %1874 = vmatpush1.bf16.msra.mxu0 %v1777
      %1875 = vmatprep.subr.bf16.mxu0 %v1780
      %1876 = vmatpush1.bf16.msra.mxu0 %v1779
      %1877 = vmatprep.subr.bf16.mxu0 %v1782
      %1878 = vmatpush1.bf16.msra.mxu0 %v1781
      %1879 = vmatprep.subr.bf16.mxu0 %v1784
      %1880 = vmatpush1.bf16.msra.mxu0 %v1783
      %1881 = vmatprep.subr.bf16.mxu0 %v1786
      %1882 = vmatpush1.bf16.msra.mxu0 %v1785
      %1883 = vmatprep.subr.bf16.mxu0 %v1788
      %1884 = vmatpush1.bf16.msra.mxu0 %v1787
      %1885 = vmatprep.subr.bf16.mxu0 %v1790
      %1886 = vmatpush1.bf16.msra.mxu0 %v1789
      %1887 = vmatprep.subr.bf16.mxu0 %v1792
      %1888 = vmatpush1.bf16.msra.mxu0 %v1791
      %1889 = vmatprep.mubr.bf16.mxu0 %v1842
      %1890 = vmatmul.mubr.bf16.gmra.mrb[0].mxu0 %v1841
      %v1891 = vpop.f32.mrb[0].mxu0
      %v1892 = vadd.f32 %v1804, %v1891
      %v1893 = vpop.f32.mrb[0].mxu0
      %v1894 = vadd.f32 %v1804, %v1893
      %v1895 = vpop.f32.mrb[0].mxu0
      %v1896 = vadd.f32 %v1809, %v1895
      %v1897 = vpop.f32.mrb[0].mxu0
      %v1898 = vadd.f32 %v1809, %v1897
      %1899 = vmatprep.mubr.bf16.mxu0 %v1845
      %1900 = vmatmul.mubr.bf16.gmra.mrb[0].mxu0 %v1844
      %v1901 = vpop.f32.mrb[0].mxu0
      %v1902 = vadd.f32 %v1814, %v1901
      %v1903 = vpop.f32.mrb[0].mxu0
      %v1904 = vadd.f32 %v1814, %v1903
      %v1905 = vpop.f32.mrb[0].mxu0
      %v1906 = vadd.f32 %v1819, %v1905
      %v1907 = vpop.f32.mrb[0].mxu0
      %v1908 = vadd.f32 %v1819, %v1907
      %1909 = vdwg.mxu0
      %1910 = vmatprep.subr.bf16.mxu0 %v1794
      %1911 = vmatpush1.bf16.msra.mxu0 %v1793
      %1912 = vmatprep.subr.bf16.mxu0 %v1796
      %1913 = vmatpush1.bf16.msra.mxu0 %v1795
      %1914 = vmatprep.subr.bf16.mxu0 0
      %1915 = vmatpush1.bf16.msra.mxu0 0
      %1916 = vmatprep.subr.bf16.mxu0 0
      %1917 = vmatpush1.bf16.msra.mxu0 0
      %1918 = vmatprep.subr.bf16.mxu0 0
      %1919 = vmatpush1.bf16.msra.mxu0 0
      %1920 = vmatprep.subr.bf16.mxu0 0
      %1921 = vmatpush1.bf16.msra.mxu0 0
      %1922 = vmatprep.subr.bf16.mxu0 0
      %1923 = vmatpush1.bf16.msra.mxu0 0
      %1924 = vmatprep.subr.bf16.mxu0 0
      %1925 = vmatpush1.bf16.msra.mxu0 0
      %1926 = vmatprep.subr.bf16.mxu0 0
      %1927 = vmatpush1.bf16.msra.mxu0 0
      %1928 = vmatprep.subr.bf16.mxu0 0
      %1929 = vmatpush1.bf16.msra.mxu0 0
      %1930 = vmatprep.subr.bf16.mxu0 0
      %1931 = vmatpush1.bf16.msra.mxu0 0
      %1932 = vmatprep.subr.bf16.mxu0 0
      %1933 = vmatpush1.bf16.msra.mxu0 0
      %1934 = vmatprep.subr.bf16.mxu0 0
      %1935 = vmatpush1.bf16.msra.mxu0 0
      %1936 = vmatprep.subr.bf16.mxu0 0
      %1937 = vmatpush1.bf16.msra.mxu0 0
      %1938 = vmatprep.subr.bf16.mxu0 0
      %1939 = vmatpush1.bf16.msra.mxu0 0
      %1940 = vmatprep.subr.bf16.mxu0 0
      %1941 = vmatpush1.bf16.msra.mxu0 0
      %1942 = vmatprep.mubr.bf16.mxu0 0
      %1943 = vmatmul.mubr.bf16.gmra.mrb[0].mxu0 %v1852
      %v1944 = vpop.f32.mrb[0].mxu0
      %v1945 = vadd.f32 %v1892, %v1944
      %v1946 = vpop.f32.mrb[0].mxu0
      %v1947 = vadd.f32 %v1894, %v1946
      %v1948 = vpop.f32.mrb[0].mxu0
      %v1949 = vadd.f32 %v1896, %v1948
      %v1950 = vpop.f32.mrb[0].mxu0
      %v1951 = vadd.f32 %v1898, %v1950
      %1952 = vmatprep.mubr.bf16.mxu0 0
      %1953 = vmatmul.mubr.bf16.gmra.mrb[0].mxu0 %v1855
      %v1954 = vpop.f32.mrb[0].mxu0
      %v1955 = vadd.f32 %v1902, %v1954
      %v1956 = vpop.f32.mrb[0].mxu0
      %v1957 = vadd.f32 %v1904, %v1956
      %v1958 = vpop.f32.mrb[0].mxu0
      %v1959 = vadd.f32 %v1906, %v1958
      %v1960 = vpop.f32.mrb[0].mxu0
      %v1961 = vadd.f32 %v1908, %v1960
      %1962 = vdwg.mxu0
      %vm1963 = vcmp.ge.f32.partialorder %v1945, 0.0
      %vm1964 = vcmp.ge.f32.partialorder %v1947, 0.0
      %vm1965 = vcmp.ge.f32.partialorder %v1949, 0.0
      %vm1966 = vcmp.ge.f32.partialorder %v1951, 0.0
      %vm1967 = vcmp.ge.f32.partialorder %v1955, 0.0
      %vm1968 = vcmp.ge.f32.partialorder %v1957, 0.0
      %vm1969 = vcmp.ge.f32.partialorder %v1959, 0.0
      %vm1970 = vcmp.ge.f32.partialorder %v1961, 0.0
      %v1971 = vmul.f32 %v1945, 0.2
      %v1972 = vmul.f32 %v1947, 0.2
      %v1973 = vmul.f32 %v1949, 0.2
      %v1974 = vmul.f32 %v1951, 0.2
      %v1975 = vmul.f32 %v1955, 0.2
      %v1976 = vmul.f32 %v1957, 0.2
      %v1977 = vmul.f32 %v1959, 0.2
      %v1978 = vmul.f32 %v1961, 0.2
      %v1979 = vsel %vm1963, %v1945, %v1971
      %v1980 = vsel %vm1964, %v1947, %v1972
      %v1981 = vsel %vm1965, %v1949, %v1973
      %v1982 = vsel %vm1966, %v1951, %v1974
      %v1983 = vsel %vm1967, %v1955, %v1975
      %v1984 = vsel %vm1968, %v1957, %v1976
      %v1985 = vsel %vm1969, %v1959, %v1977
      %v1986 = vsel %vm1970, %v1961, %v1978
      %1987 = vst [vmem:[#allocation4] sm:$0xff] %v1979
      %1988 = vst [vmem:[#allocation4 + $0x8] sm:$0xff] %v1980
      %1989 = vst [vmem:[#allocation4 + $0x10] sm:$0xff] %v1981
      %1990 = vst [vmem:[#allocation4 + $0x18] sm:$0xff] %v1982
      %1991 = vst [vmem:[#allocation4 + $0x20] sm:$0xff] %v1983
      %1992 = vst [vmem:[#allocation4 + $0x28] sm:$0xff] %v1984
      %1993 = vst [vmem:[#allocation4 + $0x30] sm:$0xff] %v1985
      %1994 = vst [vmem:[#allocation4 + $0x38] sm:$0xff] %v1986
      %v1995 = vld [vmem:[#allocation4] sm:$0xff]
      %v1996 = vld [vmem:[#allocation4 + $0x8] sm:$0xff]
      %v1997 = vld [vmem:[#allocation4 + $0x10] sm:$0xff]
      %v1998 = vld [vmem:[#allocation4 + $0x18] sm:$0xff]
      %v1999 = vld [vmem:[#allocation4 + $0x20] sm:$0xff]
      %v2000 = vld [vmem:[#allocation4 + $0x28] sm:$0xff]
      %v2001 = vld [vmem:[#allocation4 + $0x30] sm:$0xff]
      %v2002 = vld [vmem:[#allocation4 + $0x38] sm:$0xff]
      %2011 = vrot.lane.b32.xlu0 %v1995, 17
      %v2012 = vpop.permute.xlu0 %2011
      %2013 = vrot.lane.b32.xlu0 %v1996, 17
      %v2014 = vpop.permute.xlu0 %2013
      %2015 = vrot.lane.b32.xlu0 %v1997, 17
      %v2016 = vpop.permute.xlu0 %2015
      %2017 = vrot.lane.b32.xlu0 %v1998, 17
      %v2018 = vpop.permute.xlu0 %2017
      %2019 = vrot.lane.b32.xlu0 %v1999, 17
      %v2020 = vpop.permute.xlu0 %2019
      %2021 = vrot.lane.b32.xlu0 %v2000, 17
      %v2022 = vpop.permute.xlu0 %2021
      %2023 = vrot.lane.b32.xlu0 %v2001, 17
      %v2024 = vpop.permute.xlu0 %2023
      %2025 = vrot.lane.b32.xlu0 %v2002, 17
      %v2026 = vpop.permute.xlu0 %2025
      %v2027 = vsel %vm374, %v2012, %v2014
      %v2028 = vsel %vm374, %v2016, %v2018
      %v2029 = vsel %vm374, %v2020, %v2022
      %v2030 = vsel %vm374, %v2024, %v2026
      %v2039 = vsel %vm374, 0.0, %v2012
      %v2040 = vsel %vm374, 0.0, %v2016
      %v2041 = vsel %vm374, 0.0, %v2020
      %v2042 = vsel %vm374, 0.0, %v2024
      %v2043 = vsel %vm381, %v2039, 0.0
      %v2044 = vsel %vm382, %v2027, 0.0
      %v2045 = vsel %vm381, %v2040, 0.0
      %v2046 = vsel %vm382, %v2028, 0.0
      %v2047 = vsel %vm381, %v2041, 0.0
      %v2048 = vsel %vm382, %v2029, 0.0
      %v2049 = vsel %vm381, %v2042, 0.0
      %v2050 = vsel %vm382, %v2030, 0.0
      %v2051 = vpack.c.bf16 %v2045, %v2043
      %v2052 = vpack.c.bf16 %v2046, %v2044
      %v2053 = vpack.c.bf16 %v2049, %v2047
      %v2054 = vpack.c.bf16 %v2050, %v2048
      %2055 = vst [vmem:[#allocation3] sm:$0xff] %v2051
      %2056 = vst [vmem:[#allocation3 + $0x8] sm:$0xff] %v2052
      %2057 = vst [vmem:[#allocation3 + $0x10] sm:$0xff] %v2053
      %2058 = vst [vmem:[#allocation3 + $0x18] sm:$0xff] %v2054
      %2059 = vrot.lane.b32.xlu0 %v1995, 16
      %v2060 = vpop.permute.xlu0 %2059
      %2061 = vrot.lane.b32.xlu0 %v1996, 16
      %v2062 = vpop.permute.xlu0 %2061
      %2063 = vrot.lane.b32.xlu0 %v1997, 16
      %v2064 = vpop.permute.xlu0 %2063
      %2065 = vrot.lane.b32.xlu0 %v1998, 16
      %v2066 = vpop.permute.xlu0 %2065
      %2067 = vrot.lane.b32.xlu0 %v1999, 16
      %v2068 = vpop.permute.xlu0 %2067
      %2069 = vrot.lane.b32.xlu0 %v2000, 16
      %v2070 = vpop.permute.xlu0 %2069
      %2071 = vrot.lane.b32.xlu0 %v2001, 16
      %v2072 = vpop.permute.xlu0 %2071
      %2073 = vrot.lane.b32.xlu0 %v2002, 16
      %v2074 = vpop.permute.xlu0 %2073
      %v2075 = vsel %vm398, %v2060, %v2062
      %v2076 = vsel %vm398, %v2064, %v2066
      %v2077 = vsel %vm398, %v2068, %v2070
      %v2078 = vsel %vm398, %v2072, %v2074
      %v2087 = vsel %vm398, 0.0, %v2060
      %v2088 = vsel %vm398, 0.0, %v2064
      %v2089 = vsel %vm398, 0.0, %v2068
      %v2090 = vsel %vm398, 0.0, %v2072
      %v2091 = vpack.c.bf16 %v2088, %v2087
      %v2092 = vpack.c.bf16 %v2076, %v2075
      %v2093 = vpack.c.bf16 %v2090, %v2089
      %v2094 = vpack.c.bf16 %v2078, %v2077
      %2095 = vst [vmem:[#allocation3 + $0x20] sm:$0xff] %v2091
      %2096 = vst [vmem:[#allocation3 + $0x28] sm:$0xff] %v2092
      %2097 = vst [vmem:[#allocation3 + $0x30] sm:$0xff] %v2093
      %2098 = vst [vmem:[#allocation3 + $0x38] sm:$0xff] %v2094
      %2099 = vrot.lane.b32.xlu0 %v1995, 15
      %v2100 = vpop.permute.xlu0 %2099
      %2101 = vrot.lane.b32.xlu0 %v1996, 15
      %v2102 = vpop.permute.xlu0 %2101
      %2103 = vrot.lane.b32.xlu0 %v1997, 15
      %v2104 = vpop.permute.xlu0 %2103
      %2105 = vrot.lane.b32.xlu0 %v1998, 15
      %v2106 = vpop.permute.xlu0 %2105
      %2107 = vrot.lane.b32.xlu0 %v1999, 15
      %v2108 = vpop.permute.xlu0 %2107
      %2109 = vrot.lane.b32.xlu0 %v2000, 15
      %v2110 = vpop.permute.xlu0 %2109
      %2111 = vrot.lane.b32.xlu0 %v2001, 15
      %v2112 = vpop.permute.xlu0 %2111
      %2113 = vrot.lane.b32.xlu0 %v2002, 15
      %v2114 = vpop.permute.xlu0 %2113
      %v2115 = vsel %vm416, %v2100, %v2102
      %v2116 = vsel %vm416, %v2104, %v2106
      %v2117 = vsel %vm416, %v2108, %v2110
      %v2118 = vsel %vm416, %v2112, %v2114
      %v2127 = vsel %vm416, 0.0, %v2100
      %v2128 = vsel %vm416, 0.0, %v2104
      %v2129 = vsel %vm416, 0.0, %v2108
      %v2130 = vsel %vm416, 0.0, %v2112
      %v2131 = vsel %vm423, %v2127, 0.0
      %v2132 = vsel %vm424, %v2115, 0.0
      %v2133 = vsel %vm423, %v2128, 0.0
      %v2134 = vsel %vm424, %v2116, 0.0
      %v2135 = vsel %vm423, %v2129, 0.0
      %v2136 = vsel %vm424, %v2117, 0.0
      %v2137 = vsel %vm423, %v2130, 0.0
      %v2138 = vsel %vm424, %v2118, 0.0
      %v2139 = vpack.c.bf16 %v2133, %v2131
      %v2140 = vpack.c.bf16 %v2134, %v2132
      %v2141 = vpack.c.bf16 %v2137, %v2135
      %v2142 = vpack.c.bf16 %v2138, %v2136
      %2143 = vst [vmem:[#allocation3 + $0x40] sm:$0xff] %v2139
      %2144 = vst [vmem:[#allocation3 + $0x48] sm:$0xff] %v2140
      %2145 = vst [vmem:[#allocation3 + $0x50] sm:$0xff] %v2141
      %2146 = vst [vmem:[#allocation3 + $0x58] sm:$0xff] %v2142
      %2147 = vrot.lane.b32.xlu0 %v1995, 1
      %v2148 = vpop.permute.xlu0 %2147
      %2149 = vrot.lane.b32.xlu0 %v1996, 1
      %v2150 = vpop.permute.xlu0 %2149
      %2151 = vrot.lane.b32.xlu0 %v1997, 1
      %v2152 = vpop.permute.xlu0 %2151
      %2153 = vrot.lane.b32.xlu0 %v1998, 1
      %v2154 = vpop.permute.xlu0 %2153
      %2155 = vrot.lane.b32.xlu0 %v1999, 1
      %v2156 = vpop.permute.xlu0 %2155
      %2157 = vrot.lane.b32.xlu0 %v2000, 1
      %v2158 = vpop.permute.xlu0 %2157
      %2159 = vrot.lane.b32.xlu0 %v2001, 1
      %v2160 = vpop.permute.xlu0 %2159
      %2161 = vrot.lane.b32.xlu0 %v2002, 1
      %v2162 = vpop.permute.xlu0 %2161
      %v2163 = vsel %vm440, %v2148, %v2150
      %v2164 = vsel %vm440, %v2152, %v2154
      %v2165 = vsel %vm440, %v2156, %v2158
      %v2166 = vsel %vm440, %v2160, %v2162
      %v2175 = vsel %vm440, 0.0, %v2148
      %v2176 = vsel %vm440, 0.0, %v2152
      %v2177 = vsel %vm440, 0.0, %v2156
      %v2178 = vsel %vm440, 0.0, %v2160
      %v2179 = vsel %vm381, %v2175, 0.0
      %v2180 = vsel %vm382, %v2163, 0.0
      %v2181 = vsel %vm381, %v2176, 0.0
      %v2182 = vsel %vm382, %v2164, 0.0
      %v2183 = vsel %vm381, %v2177, 0.0
      %v2184 = vsel %vm382, %v2165, 0.0
      %v2185 = vsel %vm381, %v2178, 0.0
      %v2186 = vsel %vm382, %v2166, 0.0
      %v2187 = vpack.c.bf16 %v2181, %v2179
      %v2188 = vpack.c.bf16 %v2182, %v2180
      %v2189 = vpack.c.bf16 %v2185, %v2183
      %v2190 = vpack.c.bf16 %v2186, %v2184
      %2191 = vst [vmem:[#allocation3 + $0x60] sm:$0xff] %v2187
      %2192 = vst [vmem:[#allocation3 + $0x68] sm:$0xff] %v2188
      %2193 = vst [vmem:[#allocation3 + $0x70] sm:$0xff] %v2189
      %2194 = vst [vmem:[#allocation3 + $0x78] sm:$0xff] %v2190
      %v2195 = vpack.c.bf16 %v1997, %v1995
      %v2196 = vpack.c.bf16 %v1998, %v1996
      %v2197 = vpack.c.bf16 %v2001, %v1999
      %v2198 = vpack.c.bf16 %v2002, %v2000
      %2199 = vst [vmem:[#allocation3 + $0x80] sm:$0xff] %v2195
      %2200 = vst [vmem:[#allocation3 + $0x88] sm:$0xff] %v2196
      %2201 = vst [vmem:[#allocation3 + $0x90] sm:$0xff] %v2197
      %2202 = vst [vmem:[#allocation3 + $0x98] sm:$0xff] %v2198
      %2203 = vrot.lane.b32.xlu0 %v1995, 127
      %v2204 = vpop.permute.xlu0 %2203
      %2205 = vrot.lane.b32.xlu0 %v1996, 127
      %v2206 = vpop.permute.xlu0 %2205
      %2207 = vrot.lane.b32.xlu0 %v1997, 127
      %v2208 = vpop.permute.xlu0 %2207
      %2209 = vrot.lane.b32.xlu0 %v1998, 127
      %v2210 = vpop.permute.xlu0 %2209
      %2211 = vrot.lane.b32.xlu0 %v1999, 127
      %v2212 = vpop.permute.xlu0 %2211
      %2213 = vrot.lane.b32.xlu0 %v2000, 127
      %v2214 = vpop.permute.xlu0 %2213
      %2215 = vrot.lane.b32.xlu0 %v2001, 127
      %v2216 = vpop.permute.xlu0 %2215
      %2217 = vrot.lane.b32.xlu0 %v2002, 127
      %v2218 = vpop.permute.xlu0 %2217
      %v2219 = vsel %vm461, %v2204, %v2206
      %v2220 = vsel %vm461, %v2208, %v2210
      %v2221 = vsel %vm461, %v2212, %v2214
      %v2222 = vsel %vm461, %v2216, %v2218
      %v2231 = vsel %vm461, %v2206, 0.0
      %v2232 = vsel %vm461, %v2210, 0.0
      %v2233 = vsel %vm461, %v2214, 0.0
      %v2234 = vsel %vm461, %v2218, 0.0
      %v2235 = vsel %vm423, %v2219, 0.0
      %v2236 = vsel %vm424, %v2231, 0.0
      %v2237 = vsel %vm423, %v2220, 0.0
      %v2238 = vsel %vm424, %v2232, 0.0
      %v2239 = vsel %vm423, %v2221, 0.0
      %v2240 = vsel %vm424, %v2233, 0.0
      %v2241 = vsel %vm423, %v2222, 0.0
      %v2242 = vsel %vm424, %v2234, 0.0
      %v2243 = vpack.c.bf16 %v2237, %v2235
      %v2244 = vpack.c.bf16 %v2238, %v2236
      %v2245 = vpack.c.bf16 %v2241, %v2239
      %v2246 = vpack.c.bf16 %v2242, %v2240
      %2247 = vst [vmem:[#allocation3 + $0xa0] sm:$0xff] %v2243
      %2248 = vst [vmem:[#allocation3 + $0xa8] sm:$0xff] %v2244
      %2249 = vst [vmem:[#allocation3 + $0xb0] sm:$0xff] %v2245
      %2250 = vst [vmem:[#allocation3 + $0xb8] sm:$0xff] %v2246
      %2251 = vrot.lane.b32.xlu0 %v1995, 113
      %v2252 = vpop.permute.xlu0 %2251
      %2253 = vrot.lane.b32.xlu0 %v1996, 113
      %v2254 = vpop.permute.xlu0 %2253
      %2255 = vrot.lane.b32.xlu0 %v1997, 113
      %v2256 = vpop.permute.xlu0 %2255
      %2257 = vrot.lane.b32.xlu0 %v1998, 113
      %v2258 = vpop.permute.xlu0 %2257
      %2259 = vrot.lane.b32.xlu0 %v1999, 113
      %v2260 = vpop.permute.xlu0 %2259
      %2261 = vrot.lane.b32.xlu0 %v2000, 113
      %v2262 = vpop.permute.xlu0 %2261
      %2263 = vrot.lane.b32.xlu0 %v2001, 113
      %v2264 = vpop.permute.xlu0 %2263
      %2265 = vrot.lane.b32.xlu0 %v2002, 113
      %v2266 = vpop.permute.xlu0 %2265
      %v2267 = vsel %vm481, %v2252, %v2254
      %v2268 = vsel %vm481, %v2256, %v2258
      %v2269 = vsel %vm481, %v2260, %v2262
      %v2270 = vsel %vm481, %v2264, %v2266
      %v2279 = vsel %vm481, %v2254, 0.0
      %v2280 = vsel %vm481, %v2258, 0.0
      %v2281 = vsel %vm481, %v2262, 0.0
      %v2282 = vsel %vm481, %v2266, 0.0
      %v2283 = vsel %vm381, %v2267, 0.0
      %v2284 = vsel %vm382, %v2279, 0.0
      %v2285 = vsel %vm381, %v2268, 0.0
      %v2286 = vsel %vm382, %v2280, 0.0
      %v2287 = vsel %vm381, %v2269, 0.0
      %v2288 = vsel %vm382, %v2281, 0.0
      %v2289 = vsel %vm381, %v2270, 0.0
      %v2290 = vsel %vm382, %v2282, 0.0
      %v2291 = vpack.c.bf16 %v2285, %v2283
      %v2292 = vpack.c.bf16 %v2286, %v2284
      %v2293 = vpack.c.bf16 %v2289, %v2287
      %v2294 = vpack.c.bf16 %v2290, %v2288
      %2295 = vst [vmem:[#allocation3 + $0xc0] sm:$0xff] %v2291
      %2296 = vst [vmem:[#allocation3 + $0xc8] sm:$0xff] %v2292
      %2297 = vst [vmem:[#allocation3 + $0xd0] sm:$0xff] %v2293
      %2298 = vst [vmem:[#allocation3 + $0xd8] sm:$0xff] %v2294
      %2299 = vrot.lane.b32.xlu0 %v1995, 112
      %v2300 = vpop.permute.xlu0 %2299
      %2301 = vrot.lane.b32.xlu0 %v1996, 112
      %v2302 = vpop.permute.xlu0 %2301
      %2303 = vrot.lane.b32.xlu0 %v1997, 112
      %v2304 = vpop.permute.xlu0 %2303
      %2305 = vrot.lane.b32.xlu0 %v1998, 112
      %v2306 = vpop.permute.xlu0 %2305
      %2307 = vrot.lane.b32.xlu0 %v1999, 112
      %v2308 = vpop.permute.xlu0 %2307
      %2309 = vrot.lane.b32.xlu0 %v2000, 112
      %v2310 = vpop.permute.xlu0 %2309
      %2311 = vrot.lane.b32.xlu0 %v2001, 112
      %v2312 = vpop.permute.xlu0 %2311
      %2313 = vrot.lane.b32.xlu0 %v2002, 112
      %v2314 = vpop.permute.xlu0 %2313
      %v2315 = vsel %vm501, %v2300, %v2302
      %v2316 = vsel %vm501, %v2304, %v2306
      %v2317 = vsel %vm501, %v2308, %v2310
      %v2318 = vsel %vm501, %v2312, %v2314
      %v2327 = vsel %vm501, %v2302, 0.0
      %v2328 = vsel %vm501, %v2306, 0.0
      %v2329 = vsel %vm501, %v2310, 0.0
      %v2330 = vsel %vm501, %v2314, 0.0
      %v2331 = vpack.c.bf16 %v2316, %v2315
      %v2332 = vpack.c.bf16 %v2328, %v2327
      %v2333 = vpack.c.bf16 %v2318, %v2317
      %v2334 = vpack.c.bf16 %v2330, %v2329
      %2335 = vst [vmem:[#allocation3 + $0xe0] sm:$0xff] %v2331
      %2336 = vst [vmem:[#allocation3 + $0xe8] sm:$0xff] %v2332
      %2337 = vst [vmem:[#allocation3 + $0xf0] sm:$0xff] %v2333
      %2338 = vst [vmem:[#allocation3 + $0xf8] sm:$0xff] %v2334
      %2339 = vrot.lane.b32.xlu0 %v1995, 111
      %v2340 = vpop.permute.xlu0 %2339
      %2341 = vrot.lane.b32.xlu0 %v1996, 111
      %v2342 = vpop.permute.xlu0 %2341
      %2343 = vrot.lane.b32.xlu0 %v1997, 111
      %v2344 = vpop.permute.xlu0 %2343
      %2345 = vrot.lane.b32.xlu0 %v1998, 111
      %v2346 = vpop.permute.xlu0 %2345
      %2347 = vrot.lane.b32.xlu0 %v1999, 111
      %v2348 = vpop.permute.xlu0 %2347
      %2349 = vrot.lane.b32.xlu0 %v2000, 111
      %v2350 = vpop.permute.xlu0 %2349
      %2351 = vrot.lane.b32.xlu0 %v2001, 111
      %v2352 = vpop.permute.xlu0 %2351
      %2353 = vrot.lane.b32.xlu0 %v2002, 111
      %v2354 = vpop.permute.xlu0 %2353
      %v2355 = vsel %vm519, %v2340, %v2342
      %v2356 = vsel %vm519, %v2344, %v2346
      %v2357 = vsel %vm519, %v2348, %v2350
      %v2358 = vsel %vm519, %v2352, %v2354
      %v2367 = vsel %vm519, %v2342, 0.0
      %v2368 = vsel %vm519, %v2346, 0.0
      %v2369 = vsel %vm519, %v2350, 0.0
      %v2370 = vsel %vm519, %v2354, 0.0
      %v2371 = vsel %vm423, %v2355, 0.0
      %v2372 = vsel %vm424, %v2367, 0.0
      %v2373 = vsel %vm423, %v2356, 0.0
      %v2374 = vsel %vm424, %v2368, 0.0
      %v2375 = vsel %vm423, %v2357, 0.0
      %v2376 = vsel %vm424, %v2369, 0.0
      %v2377 = vsel %vm423, %v2358, 0.0
      %v2378 = vsel %vm424, %v2370, 0.0
      %v2379 = vpack.c.bf16 %v2373, %v2371
      %v2380 = vpack.c.bf16 %v2374, %v2372
      %v2381 = vpack.c.bf16 %v2377, %v2375
      %v2382 = vpack.c.bf16 %v2378, %v2376
      %2383 = vst [vmem:[#allocation3 + $0x100] sm:$0xff] %v2379
      %2384 = vst [vmem:[#allocation3 + $0x108] sm:$0xff] %v2380
      %2385 = vst [vmem:[#allocation3 + $0x110] sm:$0xff] %v2381
      %2386 = vst [vmem:[#allocation3 + $0x118] sm:$0xff] %v2382
      %v2387 = vld [vmem:[%s7] sm:$0x3f]
      %v2388 = vld [vmem:[#allocation3] sm:$0xff]
      %v2389 = vld [vmem:[#allocation3 + $0x8] sm:$0xff]
      %v2390 = vld [vmem:[#allocation3 + $0x10] sm:$0xff]
      %v2391 = vld [vmem:[#allocation3 + $0x18] sm:$0xff]
      %v2392 = vld [vmem:[#allocation3 + $0x20] sm:$0xff]
      %v2393 = vld [vmem:[#allocation3 + $0x28] sm:$0xff]
      %v2394 = vld [vmem:[#allocation3 + $0x30] sm:$0xff]
      %v2395 = vld [vmem:[#allocation3 + $0x38] sm:$0xff]
      %v2396 = vld [vmem:[#allocation3 + $0x40] sm:$0xff]
      %v2397 = vld [vmem:[#allocation3 + $0x48] sm:$0xff]
      %v2398 = vld [vmem:[#allocation3 + $0x50] sm:$0xff]
      %v2399 = vld [vmem:[#allocation3 + $0x58] sm:$0xff]
      %v2400 = vld [vmem:[#allocation3 + $0x60] sm:$0xff]
      %v2401 = vld [vmem:[#allocation3 + $0x68] sm:$0xff]
      %v2402 = vld [vmem:[#allocation3 + $0x70] sm:$0xff]
      %v2403 = vld [vmem:[#allocation3 + $0x78] sm:$0xff]
      %v2404 = vld [vmem:[#allocation3 + $0x80] sm:$0xff]
      %v2405 = vld [vmem:[#allocation3 + $0x88] sm:$0xff]
      %v2406 = vld [vmem:[#allocation3 + $0x90] sm:$0xff]
      %v2407 = vld [vmem:[#allocation3 + $0x98] sm:$0xff]
      %v2408 = vld [vmem:[#allocation3 + $0xa0] sm:$0xff]
      %v2409 = vld [vmem:[#allocation3 + $0xa8] sm:$0xff]
      %v2410 = vld [vmem:[#allocation3 + $0xb0] sm:$0xff]
      %v2411 = vld [vmem:[#allocation3 + $0xb8] sm:$0xff]
      %v2412 = vld [vmem:[#allocation3 + $0xc0] sm:$0xff]
      %v2413 = vld [vmem:[#allocation3 + $0xc8] sm:$0xff]
      %v2414 = vld [vmem:[#allocation3 + $0xd0] sm:$0xff]
      %v2415 = vld [vmem:[#allocation3 + $0xd8] sm:$0xff]
      %v2416 = vld [vmem:[#allocation3 + $0xe0] sm:$0xff]
      %v2417 = vld [vmem:[#allocation3 + $0xe8] sm:$0xff]
      %v2418 = vld [vmem:[#allocation3 + $0xf0] sm:$0xff]
      %v2419 = vld [vmem:[#allocation3 + $0xf8] sm:$0xff]
      %v2420 = vld [vmem:[#allocation3 + $0x100] sm:$0xff]
      %v2421 = vld [vmem:[#allocation3 + $0x108] sm:$0xff]
      %v2422 = vld [vmem:[#allocation3 + $0x110] sm:$0xff]
      %v2423 = vld [vmem:[#allocation3 + $0x118] sm:$0xff]
      %v2424 = vld [vmem:[%s8] sm:$0xf]
      %2426 = vset.pattern.permute.xlu0 0
      %2427 = vperm.xlu0 %2426, %v2424
      %v2428 = vpop.permute.xlu0 %2427
      %v2431 = vcombine.high %v2387, %v2387
      %v2433 = vunpack.c.l.s4 1983009808
      %v2434 = vunpack.c.0.s8 %v2433
      %v2435 = vlaneseq
      %v2436 = vshrl.u32 %v2435, 7
      %v2437 = vsub.s32 %v2434, %v2436
      %v2438 = vrot.slane %v2387, %v2437
      %v2440 = vunpack.c.l.s4 1983009808
      %v2441 = vunpack.c.0.s8 %v2440
      %v2442 = vlaneseq
      %v2443 = vshrl.u32 %v2442, 7
      %v2444 = vsub.s32 %v2441, %v2443
      %v2445 = vrot.slane %v2431, %v2444
      %v2446 = vcombine.high %v2438, %v2438
      %v2450 = vsel %vm1216, %v2445, 0
      %2452 = vmatprep.subr.bf16.mxu0 %v2389
      %2453 = vmatpush1.bf16.msra.mxu0 %v2388
      %2454 = vmatprep.subr.bf16.mxu0 %v2391
      %2455 = vmatpush1.bf16.msra.mxu0 %v2390
      %2456 = vmatprep.subr.bf16.mxu0 %v2393
      %2457 = vmatpush1.bf16.msra.mxu0 %v2392
      %2458 = vmatprep.subr.bf16.mxu0 %v2395
      %2459 = vmatpush1.bf16.msra.mxu0 %v2394
      %2460 = vmatprep.subr.bf16.mxu0 %v2397
      %2461 = vmatpush1.bf16.msra.mxu0 %v2396
      %2462 = vmatprep.subr.bf16.mxu0 %v2399
      %2463 = vmatpush1.bf16.msra.mxu0 %v2398
      %2464 = vmatprep.subr.bf16.mxu0 %v2401
      %2465 = vmatpush1.bf16.msra.mxu0 %v2400
      %2466 = vmatprep.subr.bf16.mxu0 %v2403
      %2467 = vmatpush1.bf16.msra.mxu0 %v2402
      %2468 = vmatprep.subr.bf16.mxu0 %v2405
      %2469 = vmatpush1.bf16.msra.mxu0 %v2404
      %2470 = vmatprep.subr.bf16.mxu0 %v2407
      %2471 = vmatpush1.bf16.msra.mxu0 %v2406
      %2472 = vmatprep.subr.bf16.mxu0 %v2409
      %2473 = vmatpush1.bf16.msra.mxu0 %v2408
      %2474 = vmatprep.subr.bf16.mxu0 %v2411
      %2475 = vmatpush1.bf16.msra.mxu0 %v2410
      %2476 = vmatprep.subr.bf16.mxu0 %v2413
      %2477 = vmatpush1.bf16.msra.mxu0 %v2412
      %2478 = vmatprep.subr.bf16.mxu0 %v2415
      %2479 = vmatpush1.bf16.msra.mxu0 %v2414
      %2480 = vmatprep.subr.bf16.mxu0 %v2417
      %2481 = vmatpush1.bf16.msra.mxu0 %v2416
      %2482 = vmatprep.subr.bf16.mxu0 %v2419
      %2483 = vmatpush1.bf16.msra.mxu0 %v2418
      %2484 = vmatprep.mubr.bf16.mxu0 %v2446
      %2485 = vmatmul.mubr.bf16.gmra.mrb[0].mxu0 %v2438
      %v2486 = vpop.f32.mrb[0].mxu0
      %v2487 = vadd.f32 %v2428, %v2486
      %v2488 = vpop.f32.mrb[0].mxu0
      %v2489 = vadd.f32 %v2428, %v2488
      %v2490 = vpop.f32.mrb[0].mxu0
      %v2491 = vpop.f32.mrb[0].mxu0
      %2492 = vdwg.mxu0
      %2493 = vmatprep.subr.bf16.mxu0 %v2421
      %2494 = vmatpush1.bf16.msra.mxu0 %v2420
      %2495 = vmatprep.subr.bf16.mxu0 %v2423
      %2496 = vmatpush1.bf16.msra.mxu0 %v2422
      %2497 = vmatprep.subr.bf16.mxu0 0
      %2498 = vmatpush1.bf16.msra.mxu0 0
      %2499 = vmatprep.subr.bf16.mxu0 0
      %2500 = vmatpush1.bf16.msra.mxu0 0
      %2501 = vmatprep.subr.bf16.mxu0 0
      %2502 = vmatpush1.bf16.msra.mxu0 0
      %2503 = vmatprep.subr.bf16.mxu0 0
      %2504 = vmatpush1.bf16.msra.mxu0 0
      %2505 = vmatprep.subr.bf16.mxu0 0
      %2506 = vmatpush1.bf16.msra.mxu0 0
      %2507 = vmatprep.subr.bf16.mxu0 0
      %2508 = vmatpush1.bf16.msra.mxu0 0
      %2509 = vmatprep.subr.bf16.mxu0 0
      %2510 = vmatpush1.bf16.msra.mxu0 0
      %2511 = vmatprep.subr.bf16.mxu0 0
      %2512 = vmatpush1.bf16.msra.mxu0 0
      %2513 = vmatprep.subr.bf16.mxu0 0
      %2514 = vmatpush1.bf16.msra.mxu0 0
      %2515 = vmatprep.subr.bf16.mxu0 0
      %2516 = vmatpush1.bf16.msra.mxu0 0
      %2517 = vmatprep.subr.bf16.mxu0 0
      %2518 = vmatpush1.bf16.msra.mxu0 0
      %2519 = vmatprep.subr.bf16.mxu0 0
      %2520 = vmatpush1.bf16.msra.mxu0 0
      %2521 = vmatprep.subr.bf16.mxu0 0
      %2522 = vmatpush1.bf16.msra.mxu0 0
      %2523 = vmatprep.subr.bf16.mxu0 0
      %2524 = vmatpush1.bf16.msra.mxu0 0
      %2525 = vmatprep.mubr.bf16.mxu0 0
      %2526 = vmatmul.mubr.bf16.gmra.mrb[0].mxu0 %v2450
      %v2527 = vpop.f32.mrb[0].mxu0
      %v2528 = vadd.f32 %v2487, %v2527
      %v2529 = vpop.f32.mrb[0].mxu0
      %v2530 = vadd.f32 %v2489, %v2529
      %v2531 = vpop.f32.mrb[0].mxu0
      %v2532 = vpop.f32.mrb[0].mxu0
      %2533 = vdwg.mxu0
      %v2534 = vmax.f32 %v2528, 0.0
      %v2535 = vmax.f32 %v2530, 0.0
      %v2538 = vcombine.low %v2534, %v2535
      %2540 = vst [vmem:[%s332] sm:$0xff] %v2538
      %p2541 = scmp.lt.s32.totalorder %s20, 1
      %s2542 = scalar_select %p2541, %s20, 1
      %s2543 = smul.addr %s2542, 2
      %s2544 = smul.addr %s2543, 4
      %s2545 = scalar_lea.vmem %s9, %s2544
      // Predicated region
      $region57: #{inference_low_forward.1} parent=55 // pred_check
        %p2546 = pneg %p232
      $region58: #{inference_low_forward.1} parent=55 // pred_check_branch
        %2548 = sbr.rel (%p2546) target = $region60
      $region59: #{inference_low_forward.1} parent=55 // pred_region
        _
      $region60: #{inference_low_forward.1} parent=55 // pred_fallthru
        _
    $region56: #{inference_low_forward.1} parent=5 // pred_fallthru
      _
    %p2549 = scmp.le.s32.totalorder 2, %s15
    // Predicated region
    $region61: #{inference_low_forward.1} parent=5 // pred_check
      %p2550 = pneg %p2549
    $region62: #{inference_low_forward.1} parent=5 // pred_check_branch
      %2552 = sbr.rel (%p2550) target = $region64
    $region63: #{inference_low_forward.1} parent=5 // pred_region
      %s2553 = ssub.s32 %s15, 2
      // Predicated region
      $region65: #{inference_low_forward.1} parent=63 // pred_check
        %p2554 = pneg %p238
      $region66: #{inference_low_forward.1} parent=63 // pred_check_branch
        %2556 = sbr.rel (%p2554) target = $region68
      $region67: #{inference_low_forward.1} parent=63 // pred_region
        %p2557 = scmp.lt.s32.totalorder %s21, 1
        %s2558 = scalar_select %p2557, %s21, 1
        %s2559 = smul.addr %s2558, 2
        %s2560 = smul.addr %s2559, 4
        %s2561 = scalar_lea.vmem %s9, %s2560
      $region68: #{inference_low_forward.1} parent=63 // pred_fallthru
        _
    $region64: #{inference_low_forward.1} parent=5 // pred_fallthru
      _
  $region6: #{inference_low_forward.1} parent=0 // loop_footer
    %s19 = sadd.s32 1, %s15
  $region7: #{inference_low_forward.1} parent=0 // loop_footer_branch
    %14 = sbr.rel target = $region3
  $region8: #{inference_low_forward.1} parent=0 // loop_exit
    _

</llo_original>
